<compile_context>
chip_gen: v7x
topology: tpu7x:2x2x1
jax: 0.10.0
libtpu: 0.0.40
codegen_flags: <defaults>
</compile_context>

<pallas_src>
import jax
import jax.numpy as jnp
from jax.experimental import pallas as pl
from jax.experimental.pallas import tpu as pltpu


# ---------------------------------------------------------------------------
# Kernel
# ---------------------------------------------------------------------------
def lstm_fc_kernel(x_ref,        # (T*Bp, D)   bf16  time-major input, batch-padded, flattened
                   w_ih0_ref,    # (D,   4Hp)  bf16  layer-0 input weights (gate order i,f,o,g)
                   b0_ref,       # (1,   4Hp)  f32   layer-0 bias (b_ih + b_hh)
                   w_fused_ref,  # (2Hp, 8Hp)  bf16  [[W_ih1, W_hh0], [W_hh1, 0]]
                   b1_ref,       # (1,   4Hp)  f32   layer-1 bias (b_ih + b_hh)
                   w_fc_ref,     # (Hp,  Op)   bf16  fc weights (rows padded to Hp, cols to Op)
                   b_fc_ref,     # (1,   Op)   f32   fc bias (cols padded to Op)
                   out_ref):     # (Bp,  Op)   f32
    TB = x_ref.shape[0]
    Bp = out_ref.shape[0]
    T = TB // Bp
    Hp = w_fused_ref.shape[0] // 2
    Hp4 = 4 * Hp

    # Hoisted layer-0 input projection: independent of the recurrence, one big MXU pass
    # over all T*Bp rows instead of T small serialized matmuls.
    gx0 = jnp.dot(x_ref[...], w_ih0_ref[...],
                  preferred_element_type=jnp.float32) + b0_ref[...]      # (T*Bp, 4Hp) f32

    b1 = b1_ref[...]                                                     # tiny, 1 row

    def nonlin(gates, c):
        # Gate order (i, f, o, g): one sigmoid slab (3*Hp) + one tanh slab (Hp).
        s = jax.nn.sigmoid(gates[:, :3 * Hp])
        i = s[:, 0 * Hp:1 * Hp]
        f = s[:, 1 * Hp:2 * Hp]
        o = s[:, 2 * Hp:3 * Hp]
        g = jnp.tanh(gates[:, 3 * Hp:4 * Hp])
        c_new = f * c + i * g
        h_new = o * jnp.tanh(c_new)
        return h_new, c_new

    zeros_h = jnp.zeros((Bp, Hp), jnp.float32)
    h1, c0, c1 = zeros_h, zeros_h, zeros_h
    rec0 = jnp.zeros((Bp, Hp4), jnp.float32)      # h0_init @ W_hh0 == 0

    # T is a small static trace-time constant: fully unroll the recurrence so the
    # scheduler can overlap independent work across timesteps.
    for t in range(T):
        # Layer 0: recurrent term was produced by the previous step's fused matmul.
        g0 = gx0[t * Bp:(t + 1) * Bp, :] + rec0
        h0, c0 = nonlin(g0, c0)

        # Single fused matmul: layer-1 gates (cols :4Hp) + next-step layer-0 recurrent
        # term (cols 4Hp:).  Weights streamed from VMEM ref (no long-lived vreg hoist).
        hcat = jnp.concatenate([h0, h1], axis=-1).astype(jnp.bfloat16)   # (Bp, 2Hp)
        fused = jnp.dot(hcat, w_fused_ref[...],
                        preferred_element_type=jnp.float32)             # (Bp, 8Hp) f32
        g1 = fused[:, :Hp4] + b1
        h1, c1 = nonlin(g1, c1)
        rec0 = fused[:, Hp4:]

    # fc on the last timestep's top-layer hidden state (== lstm_out[:, -1, :]).
    out = jnp.dot(h1.astype(jnp.bfloat16), w_fc_ref[...],
                  preferred_element_type=jnp.float32) + b_fc_ref[...]
    out_ref[...] = out.astype(out_ref.dtype)


# ---------------------------------------------------------------------------
# One-time weight packing (gate reorder + lane padding + fused-RHS stacking)
# ---------------------------------------------------------------------------
def _pack_gate_cols(w, H, Hp):
    """(In, 4H) in PyTorch gate order (i, f, g, o) -> (In, 4*Hp) in order (i, f, o, g),
    each gate block zero-padded from H to Hp lanes."""
    i, f, g, o = (w[:, k * H:(k + 1) * H] for k in range(4))
    pad = lambda blk: jnp.pad(blk, ((0, 0), (0, Hp - H)))
    return jnp.concatenate([pad(i), pad(f), pad(o), pad(g)], axis=1)


def _pad_rows(w, n_from, n_to):
    return jnp.pad(w, ((0, n_to - n_from), (0, 0)))


def prepare_packed_params(params):
    """Call ONCE (e.g. at init).  Returns kernel-ready, bf16-cast, padded weights."""
    H = params["w_hh0"].shape[0]
    O = params["w_fc"].shape[1]
    Hp = max(128, ((H + 127) // 128) * 128)
    Op = max(128, ((O + 127) // 128) * 128)

    w_ih0 = _pack_gate_cols(params["w_ih0"], H, Hp).astype(jnp.bfloat16)      # (D,   4Hp)
    b0 = _pack_gate_cols(params["b0"], H, Hp)                                 # (1,   4Hp) f32
    w_hh0 = _pack_gate_cols(_pad_rows(params["w_hh0"], H, Hp), H, Hp)         # (Hp,  4Hp)
    w_ih1 = _pack_gate_cols(_pad_rows(params["w_ih1"], H, Hp), H, Hp)         # (Hp,  4Hp)
    w_hh1 = _pack_gate_cols(_pad_rows(params["w_hh1"], H, Hp), H, Hp)         # (Hp,  4Hp)
    # Fused RHS: rows 0:Hp multiply h0[t], rows Hp:2Hp multiply h1[t-1];
    # cols 0:4Hp -> layer-1 gates, cols 4Hp:8Hp -> layer-0 recurrent term for t+1.
    top = jnp.concatenate([w_ih1, w_hh0], axis=1)                             # (Hp, 8Hp)
    bot = jnp.concatenate([w_hh1, jnp.zeros((Hp, 4 * Hp), jnp.float32)], axis=1)
    w_fused = jnp.concatenate([top, bot], axis=0).astype(jnp.bfloat16)        # (2Hp, 8Hp)
    b1 = _pack_gate_cols(params["b1"], H, Hp)                                 # (1,   4Hp) f32
    w_fc = jnp.pad(params["w_fc"], ((0, Hp - H), (0, Op - O))).astype(jnp.bfloat16)  # (Hp, Op)
    b_fc = jnp.pad(params["b_fc"], ((0, 0), (0, Op - O)))                     # (1,   Op) f32

    return dict(w_ih0=w_ih0, b0=b0, w_fused=w_fused, b1=b1, w_fc=w_fc, b_fc=b_fc)


# ---------------------------------------------------------------------------
# Forward wrapper
# ---------------------------------------------------------------------------
def lstm_model_forward(x, packed, out_dim):
    """x: (B, T, D) float32, batch_first like the PyTorch module.  packed: prepare_packed_params()."""
    B, T, D = x.shape
    Hp = packed["w_fused"].shape[0] // 2
    Op = packed["w_fc"].shape[1]
    Bp = ((B + 7) // 8) * 8            # pad batch to the f32 sublane tile

    # time-major, batch-padded, flattened to (T*Bp, D); bf16 matmul operand
    x_tm = jnp.transpose(x, (1, 0, 2))                       # (T, B, D)
    x_tm = jnp.pad(x_tm, ((0, 0), (0, Bp - B), (0, 0)))      # (T, Bp, D)
    x_tm = x_tm.reshape(T * Bp, D).astype(jnp.bfloat16)

    vmem = pl.BlockSpec(memory_space=pltpu.MemorySpace.VMEM)
    out_p = pl.pallas_call(
        lstm_fc_kernel,
        out_shape=jax.ShapeDtypeStruct((Bp, Op), jnp.float32),
        in_specs=[vmem] * 7,
        out_specs=vmem,
    )(x_tm, packed["w_ih0"], packed["b0"], packed["w_fused"], packed["b1"],
      packed["w_fc"], packed["b_fc"])

    return out_p[:B, :out_dim]         # drop padded batch rows / padded fc lanes


# ---------------------------------------------------------------------------
# Params + pure-JAX f32 reference (unpadded, PyTorch gate order) for correctness
# ---------------------------------------------------------------------------
def init_params(key, input_dim, hidden_dim, output_dim):
    H = hidden_dim
    ks = jax.random.split(key, 10)
    bound = 1.0 / jnp.sqrt(H)
    u = lambda k, shape: jax.random.uniform(k, shape, jnp.float32, -bound, bound)
    return {
        "w_ih0": u(ks[0], (input_dim, 4 * H)),
        "w_hh0": u(ks[1], (H, 4 * H)),
        "b0":    u(ks[2], (1, 4 * H)) + u(ks[3], (1, 4 * H)),   # b_ih + b_hh
        "w_ih1": u(ks[4], (H, 4 * H)),
        "w_hh1": u(ks[5], (H, 4 * H)),
        "b1":    u(ks[6], (1, 4 * H)) + u(ks[7], (1, 4 * H)),
        "w_fc":  u(ks[8], (H, output_dim)),
        "b_fc":  u(ks[9], (1, output_dim)),
    }


def reference_forward(x, params):
    """Pure-JAX f32 reference with PyTorch semantics (gate order i, f, g, o)."""
    H = params["w_hh0"].shape[0]

    def cell(x_t, h, c, w_ih, w_hh, b):
        gates = x_t @ w_ih + h @ w_hh + b
        i = jax.nn.sigmoid(gates[:, 0 * H:1 * H])
        f = jax.nn.sigmoid(gates[:, 1 * H:2 * H])
        g = jnp.tanh(gates[:, 2 * H:3 * H])
        o = jax.nn.sigmoid(gates[:, 3 * H:4 * H])
        c = f * c + i * g
        h = o * jnp.tanh(c)
        return h, c

    B, T, D = x.shape
    h0 = c0 = h1 = c1 = jnp.zeros((B, H), jnp.float32)
    for t in range(T):
        h0, c0 = cell(x[:, t, :], h0, c0, params["w_ih0"], params["w_hh0"], params["b0"])
        h1, c1 = cell(h0, h1, c1, params["w_ih1"], params["w_hh1"], params["b1"])
    return h1 @ params["w_fc"] + params["b_fc"]


if __name__ == "__main__":
    # Shapes implied by the module: latent=8 -> input_dim=9, output_dim=8, hidden_dim=40.
    latent = 8
    input_dim = latent + 1
    hidden_dim = 40
    output_dim = latent
    batch, seq = 2, 8

    key = jax.random.PRNGKey(0)
    kx, kp = jax.random.split(key)
    x = jax.random.normal(kx, (batch, seq, input_dim), jnp.float32)
    params = init_params(kp, input_dim, hidden_dim, output_dim)

    # Pack weights ONCE (gate reorder, padding, fused-RHS stacking, bf16 cast).
    packed = prepare_packed_params(params)

    forward = jax.jit(lstm_model_forward, static_argnames=("out_dim",))
    out = forward(x, packed, out_dim=output_dim)
    out = jax.block_until_ready(out)

    ref = reference_forward(x, params)
    assert out.shape == (batch, output_dim)
    # Tolerance intentionally loosened vs. the pure-f32 version: matmul operands are bf16
    # (f32 accumulation), which introduces ~1e-3..1e-2 absolute deviation at these scales.
    assert jnp.allclose(out, ref, atol=5e-2, rtol=5e-2), "mismatch vs reference"

    print("KERNEL_OK")
</pallas_src>

<mosaic_0001>
module attributes {stable_mosaic.version = 11 : i64} {
  func.func @lstm_fc_kernel(%arg0: memref<64x9xbf16, #tpu.memory_space<vmem>>, %arg1: memref<9x512xbf16, #tpu.memory_space<vmem>>, %arg2: memref<1x512xf32, #tpu.memory_space<vmem>>, %arg3: memref<256x1024xbf16, #tpu.memory_space<vmem>>, %arg4: memref<1x512xf32, #tpu.memory_space<vmem>>, %arg5: memref<128x128xbf16, #tpu.memory_space<vmem>>, %arg6: memref<1x128xf32, #tpu.memory_space<vmem>>, %arg7: memref<8x128xf32, #tpu.memory_space<vmem>>) attributes {dimension_semantics = [], scalar_prefetch = 0 : i64, scratch_operands = 0 : i64, tpu.core_type = #tpu.core_type<tc>} {
    %c0 = arith.constant 0 : index
    %c0_0 = arith.constant 0 : index
    %0 = vector.load %arg0[%c0, %c0_0] : memref<64x9xbf16, #tpu.memory_space<vmem>>, vector<64x9xbf16>
    %c0_1 = arith.constant 0 : index
    %c0_2 = arith.constant 0 : index
    %1 = vector.load %arg1[%c0_1, %c0_2] : memref<9x512xbf16, #tpu.memory_space<vmem>>, vector<9x512xbf16>
    %cst = arith.constant dense<0.000000e+00> : vector<64x512xf32>
    %2 = tpu.matmul %0, %1, %cst {dimension_numbers = #tpu.dot_dimension_numbers<[1], [0], [0], [1], [0, 0, 1, 1], [], []>} : vector<64x9xbf16>, vector<9x512xbf16>, vector<64x512xf32> -> vector<64x512xf32>
    %c0_3 = arith.constant 0 : index
    %c0_4 = arith.constant 0 : index
    %3 = vector.load %arg2[%c0_3, %c0_4] : memref<1x512xf32, #tpu.memory_space<vmem>>, vector<1x512xf32>
    %4 = vector.broadcast %3 : vector<1x512xf32> to vector<64x512xf32>
    %5 = arith.addf %2, %4 : vector<64x512xf32>
    %c0_5 = arith.constant 0 : index
    %c0_6 = arith.constant 0 : index
    %6 = vector.load %arg4[%c0_5, %c0_6] : memref<1x512xf32, #tpu.memory_space<vmem>>, vector<1x512xf32>
    %cst_7 = arith.constant 0.000000e+00 : f32
    %7 = vector.broadcast %cst_7 : f32 to vector<8x128xf32>
    %cst_8 = arith.constant 0.000000e+00 : f32
    %8 = vector.broadcast %cst_8 : f32 to vector<8x512xf32>
    %9 = vector.extract_strided_slice %5 {offsets = [0, 0], sizes = [8, 512], strides = [1, 1]} : vector<64x512xf32> to vector<8x512xf32>
    %10 = arith.addf %9, %8 : vector<8x512xf32>
    %11 = vector.extract_strided_slice %10 {offsets = [0, 0], sizes = [8, 384], strides = [1, 1]} : vector<8x512xf32> to vector<8x384xf32>
    %12 = arith.negf %11 : vector<8x384xf32>
    %13 = math.exp %12 : vector<8x384xf32>
    %cst_9 = arith.constant 1.000000e+00 : f32
    %14 = vector.broadcast %cst_9 : f32 to vector<8x384xf32>
    %15 = arith.addf %14, %13 : vector<8x384xf32>
    %16 = arith.divf %14, %15 : vector<8x384xf32>
    %17 = vector.extract_strided_slice %16 {offsets = [0, 0], sizes = [8, 128], strides = [1, 1]} : vector<8x384xf32> to vector<8x128xf32>
    %18 = vector.extract_strided_slice %16 {offsets = [0, 128], sizes = [8, 128], strides = [1, 1]} : vector<8x384xf32> to vector<8x128xf32>
    %19 = vector.extract_strided_slice %16 {offsets = [0, 256], sizes = [8, 128], strides = [1, 1]} : vector<8x384xf32> to vector<8x128xf32>
    %20 = vector.extract_strided_slice %10 {offsets = [0, 384], sizes = [8, 128], strides = [1, 1]} : vector<8x512xf32> to vector<8x128xf32>
    %21 = math.tanh %20 : vector<8x128xf32>
    %22 = arith.mulf %18, %7 : vector<8x128xf32>
    %23 = arith.mulf %17, %21 : vector<8x128xf32>
    %24 = arith.addf %22, %23 : vector<8x128xf32>
    %25 = math.tanh %24 : vector<8x128xf32>
    %26 = arith.mulf %19, %25 : vector<8x128xf32>
    %27 = tpu.concatenate %26, %7 in 1 : vector<8x128xf32>, vector<8x128xf32> -> vector<8x256xf32>
    %28 = arith.truncf %27 : vector<8x256xf32> to vector<8x256xbf16>
    %c0_10 = arith.constant 0 : index
    %c0_11 = arith.constant 0 : index
    %29 = vector.load %arg3[%c0_10, %c0_11] : memref<256x1024xbf16, #tpu.memory_space<vmem>>, vector<256x1024xbf16>
    %cst_12 = arith.constant dense<0.000000e+00> : vector<8x1024xf32>
    %30 = tpu.matmul %28, %29, %cst_12 {dimension_numbers = #tpu.dot_dimension_numbers<[1], [0], [0], [1], [0, 0, 1, 1], [], []>} : vector<8x256xbf16>, vector<256x1024xbf16>, vector<8x1024xf32> -> vector<8x1024xf32>
    %31 = vector.extract_strided_slice %30 {offsets = [0, 0], sizes = [8, 512], strides = [1, 1]} : vector<8x1024xf32> to vector<8x512xf32>
    %32 = vector.broadcast %6 : vector<1x512xf32> to vector<8x512xf32>
    %33 = arith.addf %31, %32 : vector<8x512xf32>
    %34 = vector.extract_strided_slice %33 {offsets = [0, 0], sizes = [8, 384], strides = [1, 1]} : vector<8x512xf32> to vector<8x384xf32>
    %35 = arith.negf %34 : vector<8x384xf32>
    %36 = math.exp %35 : vector<8x384xf32>
    %cst_13 = arith.constant 1.000000e+00 : f32
    %37 = vector.broadcast %cst_13 : f32 to vector<8x384xf32>
    %38 = arith.addf %37, %36 : vector<8x384xf32>
    %39 = arith.divf %37, %38 : vector<8x384xf32>
    %40 = vector.extract_strided_slice %39 {offsets = [0, 0], sizes = [8, 128], strides = [1, 1]} : vector<8x384xf32> to vector<8x128xf32>
    %41 = vector.extract_strided_slice %39 {offsets = [0, 128], sizes = [8, 128], strides = [1, 1]} : vector<8x384xf32> to vector<8x128xf32>
    %42 = vector.extract_strided_slice %39 {offsets = [0, 256], sizes = [8, 128], strides = [1, 1]} : vector<8x384xf32> to vector<8x128xf32>
    %43 = vector.extract_strided_slice %33 {offsets = [0, 384], sizes = [8, 128], strides = [1, 1]} : vector<8x512xf32> to vector<8x128xf32>
    %44 = math.tanh %43 : vector<8x128xf32>
    %45 = arith.mulf %41, %7 : vector<8x128xf32>
    %46 = arith.mulf %40, %44 : vector<8x128xf32>
    %47 = arith.addf %45, %46 : vector<8x128xf32>
    %48 = math.tanh %47 : vector<8x128xf32>
    %49 = arith.mulf %42, %48 : vector<8x128xf32>
    %50 = vector.extract_strided_slice %30 {offsets = [0, 512], sizes = [8, 512], strides = [1, 1]} : vector<8x1024xf32> to vector<8x512xf32>
    %51 = vector.extract_strided_slice %5 {offsets = [8, 0], sizes = [8, 512], strides = [1, 1]} : vector<64x512xf32> to vector<8x512xf32>
    %52 = arith.addf %51, %50 : vector<8x512xf32>
    %53 = vector.extract_strided_slice %52 {offsets = [0, 0], sizes = [8, 384], strides = [1, 1]} : vector<8x512xf32> to vector<8x384xf32>
    %54 = arith.negf %53 : vector<8x384xf32>
    %55 = math.exp %54 : vector<8x384xf32>
    %cst_14 = arith.constant 1.000000e+00 : f32
    %56 = vector.broadcast %cst_14 : f32 to vector<8x384xf32>
    %57 = arith.addf %56, %55 : vector<8x384xf32>
    %58 = arith.divf %56, %57 : vector<8x384xf32>
    %59 = vector.extract_strided_slice %58 {offsets = [0, 0], sizes = [8, 128], strides = [1, 1]} : vector<8x384xf32> to vector<8x128xf32>
    %60 = vector.extract_strided_slice %58 {offsets = [0, 128], sizes = [8, 128], strides = [1, 1]} : vector<8x384xf32> to vector<8x128xf32>
    %61 = vector.extract_strided_slice %58 {offsets = [0, 256], sizes = [8, 128], strides = [1, 1]} : vector<8x384xf32> to vector<8x128xf32>
    %62 = vector.extract_strided_slice %52 {offsets = [0, 384], sizes = [8, 128], strides = [1, 1]} : vector<8x512xf32> to vector<8x128xf32>
    %63 = math.tanh %62 : vector<8x128xf32>
    %64 = arith.mulf %60, %24 : vector<8x128xf32>
    %65 = arith.mulf %59, %63 : vector<8x128xf32>
    %66 = arith.addf %64, %65 : vector<8x128xf32>
    %67 = math.tanh %66 : vector<8x128xf32>
    %68 = arith.mulf %61, %67 : vector<8x128xf32>
    %69 = tpu.concatenate %68, %49 in 1 : vector<8x128xf32>, vector<8x128xf32> -> vector<8x256xf32>
    %70 = arith.truncf %69 : vector<8x256xf32> to vector<8x256xbf16>
    %c0_15 = arith.constant 0 : index
    %c0_16 = arith.constant 0 : index
    %71 = vector.load %arg3[%c0_15, %c0_16] : memref<256x1024xbf16, #tpu.memory_space<vmem>>, vector<256x1024xbf16>
    %cst_17 = arith.constant dense<0.000000e+00> : vector<8x1024xf32>
    %72 = tpu.matmul %70, %71, %cst_17 {dimension_numbers = #tpu.dot_dimension_numbers<[1], [0], [0], [1], [0, 0, 1, 1], [], []>} : vector<8x256xbf16>, vector<256x1024xbf16>, vector<8x1024xf32> -> vector<8x1024xf32>
    %73 = vector.extract_strided_slice %72 {offsets = [0, 0], sizes = [8, 512], strides = [1, 1]} : vector<8x1024xf32> to vector<8x512xf32>
    %74 = vector.broadcast %6 : vector<1x512xf32> to vector<8x512xf32>
    %75 = arith.addf %73, %74 : vector<8x512xf32>
    %76 = vector.extract_strided_slice %75 {offsets = [0, 0], sizes = [8, 384], strides = [1, 1]} : vector<8x512xf32> to vector<8x384xf32>
    %77 = arith.negf %76 : vector<8x384xf32>
    %78 = math.exp %77 : vector<8x384xf32>
    %cst_18 = arith.constant 1.000000e+00 : f32
    %79 = vector.broadcast %cst_18 : f32 to vector<8x384xf32>
    %80 = arith.addf %79, %78 : vector<8x384xf32>
    %81 = arith.divf %79, %80 : vector<8x384xf32>
    %82 = vector.extract_strided_slice %81 {offsets = [0, 0], sizes = [8, 128], strides = [1, 1]} : vector<8x384xf32> to vector<8x128xf32>
    %83 = vector.extract_strided_slice %81 {offsets = [0, 128], sizes = [8, 128], strides = [1, 1]} : vector<8x384xf32> to vector<8x128xf32>
    %84 = vector.extract_strided_slice %81 {offsets = [0, 256], sizes = [8, 128], strides = [1, 1]} : vector<8x384xf32> to vector<8x128xf32>
    %85 = vector.extract_strided_slice %75 {offsets = [0, 384], sizes = [8, 128], strides = [1, 1]} : vector<8x512xf32> to vector<8x128xf32>
    %86 = math.tanh %85 : vector<8x128xf32>
    %87 = arith.mulf %83, %47 : vector<8x128xf32>
    %88 = arith.mulf %82, %86 : vector<8x128xf32>
    %89 = arith.addf %87, %88 : vector<8x128xf32>
    %90 = math.tanh %89 : vector<8x128xf32>
    %91 = arith.mulf %84, %90 : vector<8x128xf32>
    %92 = vector.extract_strided_slice %72 {offsets = [0, 512], sizes = [8, 512], strides = [1, 1]} : vector<8x1024xf32> to vector<8x512xf32>
    %93 = vector.extract_strided_slice %5 {offsets = [16, 0], sizes = [8, 512], strides = [1, 1]} : vector<64x512xf32> to vector<8x512xf32>
    %94 = arith.addf %93, %92 : vector<8x512xf32>
    %95 = vector.extract_strided_slice %94 {offsets = [0, 0], sizes = [8, 384], strides = [1, 1]} : vector<8x512xf32> to vector<8x384xf32>
    %96 = arith.negf %95 : vector<8x384xf32>
    %97 = math.exp %96 : vector<8x384xf32>
    %cst_19 = arith.constant 1.000000e+00 : f32
    %98 = vector.broadcast %cst_19 : f32 to vector<8x384xf32>
    %99 = arith.addf %98, %97 : vector<8x384xf32>
    %100 = arith.divf %98, %99 : vector<8x384xf32>
    %101 = vector.extract_strided_slice %100 {offsets = [0, 0], sizes = [8, 128], strides = [1, 1]} : vector<8x384xf32> to vector<8x128xf32>
    %102 = vector.extract_strided_slice %100 {offsets = [0, 128], sizes = [8, 128], strides = [1, 1]} : vector<8x384xf32> to vector<8x128xf32>
    %103 = vector.extract_strided_slice %100 {offsets = [0, 256], sizes = [8, 128], strides = [1, 1]} : vector<8x384xf32> to vector<8x128xf32>
    %104 = vector.extract_strided_slice %94 {offsets = [0, 384], sizes = [8, 128], strides = [1, 1]} : vector<8x512xf32> to vector<8x128xf32>
    %105 = math.tanh %104 : vector<8x128xf32>
    %106 = arith.mulf %102, %66 : vector<8x128xf32>
    %107 = arith.mulf %101, %105 : vector<8x128xf32>
    %108 = arith.addf %106, %107 : vector<8x128xf32>
    %109 = math.tanh %108 : vector<8x128xf32>
    %110 = arith.mulf %103, %109 : vector<8x128xf32>
    %111 = tpu.concatenate %110, %91 in 1 : vector<8x128xf32>, vector<8x128xf32> -> vector<8x256xf32>
    %112 = arith.truncf %111 : vector<8x256xf32> to vector<8x256xbf16>
    %c0_20 = arith.constant 0 : index
    %c0_21 = arith.constant 0 : index
    %113 = vector.load %arg3[%c0_20, %c0_21] : memref<256x1024xbf16, #tpu.memory_space<vmem>>, vector<256x1024xbf16>
    %cst_22 = arith.constant dense<0.000000e+00> : vector<8x1024xf32>
    %114 = tpu.matmul %112, %113, %cst_22 {dimension_numbers = #tpu.dot_dimension_numbers<[1], [0], [0], [1], [0, 0, 1, 1], [], []>} : vector<8x256xbf16>, vector<256x1024xbf16>, vector<8x1024xf32> -> vector<8x1024xf32>
    %115 = vector.extract_strided_slice %114 {offsets = [0, 0], sizes = [8, 512], strides = [1, 1]} : vector<8x1024xf32> to vector<8x512xf32>
    %116 = vector.broadcast %6 : vector<1x512xf32> to vector<8x512xf32>
    %117 = arith.addf %115, %116 : vector<8x512xf32>
    %118 = vector.extract_strided_slice %117 {offsets = [0, 0], sizes = [8, 384], strides = [1, 1]} : vector<8x512xf32> to vector<8x384xf32>
    %119 = arith.negf %118 : vector<8x384xf32>
    %120 = math.exp %119 : vector<8x384xf32>
    %cst_23 = arith.constant 1.000000e+00 : f32
    %121 = vector.broadcast %cst_23 : f32 to vector<8x384xf32>
    %122 = arith.addf %121, %120 : vector<8x384xf32>
    %123 = arith.divf %121, %122 : vector<8x384xf32>
    %124 = vector.extract_strided_slice %123 {offsets = [0, 0], sizes = [8, 128], strides = [1, 1]} : vector<8x384xf32> to vector<8x128xf32>
    %125 = vector.extract_strided_slice %123 {offsets = [0, 128], sizes = [8, 128], strides = [1, 1]} : vector<8x384xf32> to vector<8x128xf32>
    %126 = vector.extract_strided_slice %123 {offsets = [0, 256], sizes = [8, 128], strides = [1, 1]} : vector<8x384xf32> to vector<8x128xf32>
    %127 = vector.extract_strided_slice %117 {offsets = [0, 384], sizes = [8, 128], strides = [1, 1]} : vector<8x512xf32> to vector<8x128xf32>
    %128 = math.tanh %127 : vector<8x128xf32>
    %129 = arith.mulf %125, %89 : vector<8x128xf32>
    %130 = arith.mulf %124, %128 : vector<8x128xf32>
    %131 = arith.addf %129, %130 : vector<8x128xf32>
    %132 = math.tanh %131 : vector<8x128xf32>
    %133 = arith.mulf %126, %132 : vector<8x128xf32>
    %134 = vector.extract_strided_slice %114 {offsets = [0, 512], sizes = [8, 512], strides = [1, 1]} : vector<8x1024xf32> to vector<8x512xf32>
    %135 = vector.extract_strided_slice %5 {offsets = [24, 0], sizes = [8, 512], strides = [1, 1]} : vector<64x512xf32> to vector<8x512xf32>
    %136 = arith.addf %135, %134 : vector<8x512xf32>
    %137 = vector.extract_strided_slice %136 {offsets = [0, 0], sizes = [8, 384], strides = [1, 1]} : vector<8x512xf32> to vector<8x384xf32>
    %138 = arith.negf %137 : vector<8x384xf32>
    %139 = math.exp %138 : vector<8x384xf32>
    %cst_24 = arith.constant 1.000000e+00 : f32
    %140 = vector.broadcast %cst_24 : f32 to vector<8x384xf32>
    %141 = arith.addf %140, %139 : vector<8x384xf32>
    %142 = arith.divf %140, %141 : vector<8x384xf32>
    %143 = vector.extract_strided_slice %142 {offsets = [0, 0], sizes = [8, 128], strides = [1, 1]} : vector<8x384xf32> to vector<8x128xf32>
    %144 = vector.extract_strided_slice %142 {offsets = [0, 128], sizes = [8, 128], strides = [1, 1]} : vector<8x384xf32> to vector<8x128xf32>
    %145 = vector.extract_strided_slice %142 {offsets = [0, 256], sizes = [8, 128], strides = [1, 1]} : vector<8x384xf32> to vector<8x128xf32>
    %146 = vector.extract_strided_slice %136 {offsets = [0, 384], sizes = [8, 128], strides = [1, 1]} : vector<8x512xf32> to vector<8x128xf32>
    %147 = math.tanh %146 : vector<8x128xf32>
    %148 = arith.mulf %144, %108 : vector<8x128xf32>
    %149 = arith.mulf %143, %147 : vector<8x128xf32>
    %150 = arith.addf %148, %149 : vector<8x128xf32>
    %151 = math.tanh %150 : vector<8x128xf32>
    %152 = arith.mulf %145, %151 : vector<8x128xf32>
    %153 = tpu.concatenate %152, %133 in 1 : vector<8x128xf32>, vector<8x128xf32> -> vector<8x256xf32>
    %154 = arith.truncf %153 : vector<8x256xf32> to vector<8x256xbf16>
    %c0_25 = arith.constant 0 : index
    %c0_26 = arith.constant 0 : index
    %155 = vector.load %arg3[%c0_25, %c0_26] : memref<256x1024xbf16, #tpu.memory_space<vmem>>, vector<256x1024xbf16>
    %cst_27 = arith.constant dense<0.000000e+00> : vector<8x1024xf32>
    %156 = tpu.matmul %154, %155, %cst_27 {dimension_numbers = #tpu.dot_dimension_numbers<[1], [0], [0], [1], [0, 0, 1, 1], [], []>} : vector<8x256xbf16>, vector<256x1024xbf16>, vector<8x1024xf32> -> vector<8x1024xf32>
    %157 = vector.extract_strided_slice %156 {offsets = [0, 0], sizes = [8, 512], strides = [1, 1]} : vector<8x1024xf32> to vector<8x512xf32>
    %158 = vector.broadcast %6 : vector<1x512xf32> to vector<8x512xf32>
    %159 = arith.addf %157, %158 : vector<8x512xf32>
    %160 = vector.extract_strided_slice %159 {offsets = [0, 0], sizes = [8, 384], strides = [1, 1]} : vector<8x512xf32> to vector<8x384xf32>
    %161 = arith.negf %160 : vector<8x384xf32>
    %162 = math.exp %161 : vector<8x384xf32>
    %cst_28 = arith.constant 1.000000e+00 : f32
    %163 = vector.broadcast %cst_28 : f32 to vector<8x384xf32>
    %164 = arith.addf %163, %162 : vector<8x384xf32>
    %165 = arith.divf %163, %164 : vector<8x384xf32>
    %166 = vector.extract_strided_slice %165 {offsets = [0, 0], sizes = [8, 128], strides = [1, 1]} : vector<8x384xf32> to vector<8x128xf32>
    %167 = vector.extract_strided_slice %165 {offsets = [0, 128], sizes = [8, 128], strides = [1, 1]} : vector<8x384xf32> to vector<8x128xf32>
    %168 = vector.extract_strided_slice %165 {offsets = [0, 256], sizes = [8, 128], strides = [1, 1]} : vector<8x384xf32> to vector<8x128xf32>
    %169 = vector.extract_strided_slice %159 {offsets = [0, 384], sizes = [8, 128], strides = [1, 1]} : vector<8x512xf32> to vector<8x128xf32>
    %170 = math.tanh %169 : vector<8x128xf32>
    %171 = arith.mulf %167, %131 : vector<8x128xf32>
    %172 = arith.mulf %166, %170 : vector<8x128xf32>
    %173 = arith.addf %171, %172 : vector<8x128xf32>
    %174 = math.tanh %173 : vector<8x128xf32>
    %175 = arith.mulf %168, %174 : vector<8x128xf32>
    %176 = vector.extract_strided_slice %156 {offsets = [0, 512], sizes = [8, 512], strides = [1, 1]} : vector<8x1024xf32> to vector<8x512xf32>
    %177 = vector.extract_strided_slice %5 {offsets = [32, 0], sizes = [8, 512], strides = [1, 1]} : vector<64x512xf32> to vector<8x512xf32>
    %178 = arith.addf %177, %176 : vector<8x512xf32>
    %179 = vector.extract_strided_slice %178 {offsets = [0, 0], sizes = [8, 384], strides = [1, 1]} : vector<8x512xf32> to vector<8x384xf32>
    %180 = arith.negf %179 : vector<8x384xf32>
    %181 = math.exp %180 : vector<8x384xf32>
    %cst_29 = arith.constant 1.000000e+00 : f32
    %182 = vector.broadcast %cst_29 : f32 to vector<8x384xf32>
    %183 = arith.addf %182, %181 : vector<8x384xf32>
    %184 = arith.divf %182, %183 : vector<8x384xf32>
    %185 = vector.extract_strided_slice %184 {offsets = [0, 0], sizes = [8, 128], strides = [1, 1]} : vector<8x384xf32> to vector<8x128xf32>
    %186 = vector.extract_strided_slice %184 {offsets = [0, 128], sizes = [8, 128], strides = [1, 1]} : vector<8x384xf32> to vector<8x128xf32>
    %187 = vector.extract_strided_slice %184 {offsets = [0, 256], sizes = [8, 128], strides = [1, 1]} : vector<8x384xf32> to vector<8x128xf32>
    %188 = vector.extract_strided_slice %178 {offsets = [0, 384], sizes = [8, 128], strides = [1, 1]} : vector<8x512xf32> to vector<8x128xf32>
    %189 = math.tanh %188 : vector<8x128xf32>
    %190 = arith.mulf %186, %150 : vector<8x128xf32>
    %191 = arith.mulf %185, %189 : vector<8x128xf32>
    %192 = arith.addf %190, %191 : vector<8x128xf32>
    %193 = math.tanh %192 : vector<8x128xf32>
    %194 = arith.mulf %187, %193 : vector<8x128xf32>
    %195 = tpu.concatenate %194, %175 in 1 : vector<8x128xf32>, vector<8x128xf32> -> vector<8x256xf32>
    %196 = arith.truncf %195 : vector<8x256xf32> to vector<8x256xbf16>
    %c0_30 = arith.constant 0 : index
    %c0_31 = arith.constant 0 : index
    %197 = vector.load %arg3[%c0_30, %c0_31] : memref<256x1024xbf16, #tpu.memory_space<vmem>>, vector<256x1024xbf16>
    %cst_32 = arith.constant dense<0.000000e+00> : vector<8x1024xf32>
    %198 = tpu.matmul %196, %197, %cst_32 {dimension_numbers = #tpu.dot_dimension_numbers<[1], [0], [0], [1], [0, 0, 1, 1], [], []>} : vector<8x256xbf16>, vector<256x1024xbf16>, vector<8x1024xf32> -> vector<8x1024xf32>
    %199 = vector.extract_strided_slice %198 {offsets = [0, 0], sizes = [8, 512], strides = [1, 1]} : vector<8x1024xf32> to vector<8x512xf32>
    %200 = vector.broadcast %6 : vector<1x512xf32> to vector<8x512xf32>
    %201 = arith.addf %199, %200 : vector<8x512xf32>
    %202 = vector.extract_strided_slice %201 {offsets = [0, 0], sizes = [8, 384], strides = [1, 1]} : vector<8x512xf32> to vector<8x384xf32>
    %203 = arith.negf %202 : vector<8x384xf32>
    %204 = math.exp %203 : vector<8x384xf32>
    %cst_33 = arith.constant 1.000000e+00 : f32
    %205 = vector.broadcast %cst_33 : f32 to vector<8x384xf32>
    %206 = arith.addf %205, %204 : vector<8x384xf32>
    %207 = arith.divf %205, %206 : vector<8x384xf32>
    %208 = vector.extract_strided_slice %207 {offsets = [0, 0], sizes = [8, 128], strides = [1, 1]} : vector<8x384xf32> to vector<8x128xf32>
    %209 = vector.extract_strided_slice %207 {offsets = [0, 128], sizes = [8, 128], strides = [1, 1]} : vector<8x384xf32> to vector<8x128xf32>
    %210 = vector.extract_strided_slice %207 {offsets = [0, 256], sizes = [8, 128], strides = [1, 1]} : vector<8x384xf32> to vector<8x128xf32>
    %211 = vector.extract_strided_slice %201 {offsets = [0, 384], sizes = [8, 128], strides = [1, 1]} : vector<8x512xf32> to vector<8x128xf32>
    %212 = math.tanh %211 : vector<8x128xf32>
    %213 = arith.mulf %209, %173 : vector<8x128xf32>
    %214 = arith.mulf %208, %212 : vector<8x128xf32>
    %215 = arith.addf %213, %214 : vector<8x128xf32>
    %216 = math.tanh %215 : vector<8x128xf32>
    %217 = arith.mulf %210, %216 : vector<8x128xf32>
    %218 = vector.extract_strided_slice %198 {offsets = [0, 512], sizes = [8, 512], strides = [1, 1]} : vector<8x1024xf32> to vector<8x512xf32>
    %219 = vector.extract_strided_slice %5 {offsets = [40, 0], sizes = [8, 512], strides = [1, 1]} : vector<64x512xf32> to vector<8x512xf32>
    %220 = arith.addf %219, %218 : vector<8x512xf32>
    %221 = vector.extract_strided_slice %220 {offsets = [0, 0], sizes = [8, 384], strides = [1, 1]} : vector<8x512xf32> to vector<8x384xf32>
    %222 = arith.negf %221 : vector<8x384xf32>
    %223 = math.exp %222 : vector<8x384xf32>
    %cst_34 = arith.constant 1.000000e+00 : f32
    %224 = vector.broadcast %cst_34 : f32 to vector<8x384xf32>
    %225 = arith.addf %224, %223 : vector<8x384xf32>
    %226 = arith.divf %224, %225 : vector<8x384xf32>
    %227 = vector.extract_strided_slice %226 {offsets = [0, 0], sizes = [8, 128], strides = [1, 1]} : vector<8x384xf32> to vector<8x128xf32>
    %228 = vector.extract_strided_slice %226 {offsets = [0, 128], sizes = [8, 128], strides = [1, 1]} : vector<8x384xf32> to vector<8x128xf32>
    %229 = vector.extract_strided_slice %226 {offsets = [0, 256], sizes = [8, 128], strides = [1, 1]} : vector<8x384xf32> to vector<8x128xf32>
    %230 = vector.extract_strided_slice %220 {offsets = [0, 384], sizes = [8, 128], strides = [1, 1]} : vector<8x512xf32> to vector<8x128xf32>
    %231 = math.tanh %230 : vector<8x128xf32>
    %232 = arith.mulf %228, %192 : vector<8x128xf32>
    %233 = arith.mulf %227, %231 : vector<8x128xf32>
    %234 = arith.addf %232, %233 : vector<8x128xf32>
    %235 = math.tanh %234 : vector<8x128xf32>
    %236 = arith.mulf %229, %235 : vector<8x128xf32>
    %237 = tpu.concatenate %236, %217 in 1 : vector<8x128xf32>, vector<8x128xf32> -> vector<8x256xf32>
    %238 = arith.truncf %237 : vector<8x256xf32> to vector<8x256xbf16>
    %c0_35 = arith.constant 0 : index
    %c0_36 = arith.constant 0 : index
    %239 = vector.load %arg3[%c0_35, %c0_36] : memref<256x1024xbf16, #tpu.memory_space<vmem>>, vector<256x1024xbf16>
    %cst_37 = arith.constant dense<0.000000e+00> : vector<8x1024xf32>
    %240 = tpu.matmul %238, %239, %cst_37 {dimension_numbers = #tpu.dot_dimension_numbers<[1], [0], [0], [1], [0, 0, 1, 1], [], []>} : vector<8x256xbf16>, vector<256x1024xbf16>, vector<8x1024xf32> -> vector<8x1024xf32>
    %241 = vector.extract_strided_slice %240 {offsets = [0, 0], sizes = [8, 512], strides = [1, 1]} : vector<8x1024xf32> to vector<8x512xf32>
    %242 = vector.broadcast %6 : vector<1x512xf32> to vector<8x512xf32>
    %243 = arith.addf %241, %242 : vector<8x512xf32>
    %244 = vector.extract_strided_slice %243 {offsets = [0, 0], sizes = [8, 384], strides = [1, 1]} : vector<8x512xf32> to vector<8x384xf32>
    %245 = arith.negf %244 : vector<8x384xf32>
    %246 = math.exp %245 : vector<8x384xf32>
    %cst_38 = arith.constant 1.000000e+00 : f32
    %247 = vector.broadcast %cst_38 : f32 to vector<8x384xf32>
    %248 = arith.addf %247, %246 : vector<8x384xf32>
    %249 = arith.divf %247, %248 : vector<8x384xf32>
    %250 = vector.extract_strided_slice %249 {offsets = [0, 0], sizes = [8, 128], strides = [1, 1]} : vector<8x384xf32> to vector<8x128xf32>
    %251 = vector.extract_strided_slice %249 {offsets = [0, 128], sizes = [8, 128], strides = [1, 1]} : vector<8x384xf32> to vector<8x128xf32>
    %252 = vector.extract_strided_slice %249 {offsets = [0, 256], sizes = [8, 128], strides = [1, 1]} : vector<8x384xf32> to vector<8x128xf32>
    %253 = vector.extract_strided_slice %243 {offsets = [0, 384], sizes = [8, 128], strides = [1, 1]} : vector<8x512xf32> to vector<8x128xf32>
    %254 = math.tanh %253 : vector<8x128xf32>
    %255 = arith.mulf %251, %215 : vector<8x128xf32>
    %256 = arith.mulf %250, %254 : vector<8x128xf32>
    %257 = arith.addf %255, %256 : vector<8x128xf32>
    %258 = math.tanh %257 : vector<8x128xf32>
    %259 = arith.mulf %252, %258 : vector<8x128xf32>
    %260 = vector.extract_strided_slice %240 {offsets = [0, 512], sizes = [8, 512], strides = [1, 1]} : vector<8x1024xf32> to vector<8x512xf32>
    %261 = vector.extract_strided_slice %5 {offsets = [48, 0], sizes = [8, 512], strides = [1, 1]} : vector<64x512xf32> to vector<8x512xf32>
    %262 = arith.addf %261, %260 : vector<8x512xf32>
    %263 = vector.extract_strided_slice %262 {offsets = [0, 0], sizes = [8, 384], strides = [1, 1]} : vector<8x512xf32> to vector<8x384xf32>
    %264 = arith.negf %263 : vector<8x384xf32>
    %265 = math.exp %264 : vector<8x384xf32>
    %cst_39 = arith.constant 1.000000e+00 : f32
    %266 = vector.broadcast %cst_39 : f32 to vector<8x384xf32>
    %267 = arith.addf %266, %265 : vector<8x384xf32>
    %268 = arith.divf %266, %267 : vector<8x384xf32>
    %269 = vector.extract_strided_slice %268 {offsets = [0, 0], sizes = [8, 128], strides = [1, 1]} : vector<8x384xf32> to vector<8x128xf32>
    %270 = vector.extract_strided_slice %268 {offsets = [0, 128], sizes = [8, 128], strides = [1, 1]} : vector<8x384xf32> to vector<8x128xf32>
    %271 = vector.extract_strided_slice %268 {offsets = [0, 256], sizes = [8, 128], strides = [1, 1]} : vector<8x384xf32> to vector<8x128xf32>
    %272 = vector.extract_strided_slice %262 {offsets = [0, 384], sizes = [8, 128], strides = [1, 1]} : vector<8x512xf32> to vector<8x128xf32>
    %273 = math.tanh %272 : vector<8x128xf32>
    %274 = arith.mulf %270, %234 : vector<8x128xf32>
    %275 = arith.mulf %269, %273 : vector<8x128xf32>
    %276 = arith.addf %274, %275 : vector<8x128xf32>
    %277 = math.tanh %276 : vector<8x128xf32>
    %278 = arith.mulf %271, %277 : vector<8x128xf32>
    %279 = tpu.concatenate %278, %259 in 1 : vector<8x128xf32>, vector<8x128xf32> -> vector<8x256xf32>
    %280 = arith.truncf %279 : vector<8x256xf32> to vector<8x256xbf16>
    %c0_40 = arith.constant 0 : index
    %c0_41 = arith.constant 0 : index
    %281 = vector.load %arg3[%c0_40, %c0_41] : memref<256x1024xbf16, #tpu.memory_space<vmem>>, vector<256x1024xbf16>
    %cst_42 = arith.constant dense<0.000000e+00> : vector<8x1024xf32>
    %282 = tpu.matmul %280, %281, %cst_42 {dimension_numbers = #tpu.dot_dimension_numbers<[1], [0], [0], [1], [0, 0, 1, 1], [], []>} : vector<8x256xbf16>, vector<256x1024xbf16>, vector<8x1024xf32> -> vector<8x1024xf32>
    %283 = vector.extract_strided_slice %282 {offsets = [0, 0], sizes = [8, 512], strides = [1, 1]} : vector<8x1024xf32> to vector<8x512xf32>
    %284 = vector.broadcast %6 : vector<1x512xf32> to vector<8x512xf32>
    %285 = arith.addf %283, %284 : vector<8x512xf32>
    %286 = vector.extract_strided_slice %285 {offsets = [0, 0], sizes = [8, 384], strides = [1, 1]} : vector<8x512xf32> to vector<8x384xf32>
    %287 = arith.negf %286 : vector<8x384xf32>
    %288 = math.exp %287 : vector<8x384xf32>
    %cst_43 = arith.constant 1.000000e+00 : f32
    %289 = vector.broadcast %cst_43 : f32 to vector<8x384xf32>
    %290 = arith.addf %289, %288 : vector<8x384xf32>
    %291 = arith.divf %289, %290 : vector<8x384xf32>
    %292 = vector.extract_strided_slice %291 {offsets = [0, 0], sizes = [8, 128], strides = [1, 1]} : vector<8x384xf32> to vector<8x128xf32>
    %293 = vector.extract_strided_slice %291 {offsets = [0, 128], sizes = [8, 128], strides = [1, 1]} : vector<8x384xf32> to vector<8x128xf32>
    %294 = vector.extract_strided_slice %291 {offsets = [0, 256], sizes = [8, 128], strides = [1, 1]} : vector<8x384xf32> to vector<8x128xf32>
    %295 = vector.extract_strided_slice %285 {offsets = [0, 384], sizes = [8, 128], strides = [1, 1]} : vector<8x512xf32> to vector<8x128xf32>
    %296 = math.tanh %295 : vector<8x128xf32>
    %297 = arith.mulf %293, %257 : vector<8x128xf32>
    %298 = arith.mulf %292, %296 : vector<8x128xf32>
    %299 = arith.addf %297, %298 : vector<8x128xf32>
    %300 = math.tanh %299 : vector<8x128xf32>
    %301 = arith.mulf %294, %300 : vector<8x128xf32>
    %302 = vector.extract_strided_slice %282 {offsets = [0, 512], sizes = [8, 512], strides = [1, 1]} : vector<8x1024xf32> to vector<8x512xf32>
    %303 = vector.extract_strided_slice %5 {offsets = [56, 0], sizes = [8, 512], strides = [1, 1]} : vector<64x512xf32> to vector<8x512xf32>
    %304 = arith.addf %303, %302 : vector<8x512xf32>
    %305 = vector.extract_strided_slice %304 {offsets = [0, 0], sizes = [8, 384], strides = [1, 1]} : vector<8x512xf32> to vector<8x384xf32>
    %306 = arith.negf %305 : vector<8x384xf32>
    %307 = math.exp %306 : vector<8x384xf32>
    %cst_44 = arith.constant 1.000000e+00 : f32
    %308 = vector.broadcast %cst_44 : f32 to vector<8x384xf32>
    %309 = arith.addf %308, %307 : vector<8x384xf32>
    %310 = arith.divf %308, %309 : vector<8x384xf32>
    %311 = vector.extract_strided_slice %310 {offsets = [0, 0], sizes = [8, 128], strides = [1, 1]} : vector<8x384xf32> to vector<8x128xf32>
    %312 = vector.extract_strided_slice %310 {offsets = [0, 128], sizes = [8, 128], strides = [1, 1]} : vector<8x384xf32> to vector<8x128xf32>
    %313 = vector.extract_strided_slice %310 {offsets = [0, 256], sizes = [8, 128], strides = [1, 1]} : vector<8x384xf32> to vector<8x128xf32>
    %314 = vector.extract_strided_slice %304 {offsets = [0, 384], sizes = [8, 128], strides = [1, 1]} : vector<8x512xf32> to vector<8x128xf32>
    %315 = math.tanh %314 : vector<8x128xf32>
    %316 = arith.mulf %312, %276 : vector<8x128xf32>
    %317 = arith.mulf %311, %315 : vector<8x128xf32>
    %318 = arith.addf %316, %317 : vector<8x128xf32>
    %319 = math.tanh %318 : vector<8x128xf32>
    %320 = arith.mulf %313, %319 : vector<8x128xf32>
    %321 = tpu.concatenate %320, %301 in 1 : vector<8x128xf32>, vector<8x128xf32> -> vector<8x256xf32>
    %322 = arith.truncf %321 : vector<8x256xf32> to vector<8x256xbf16>
    %c0_45 = arith.constant 0 : index
    %c0_46 = arith.constant 0 : index
    %323 = vector.load %arg3[%c0_45, %c0_46] : memref<256x1024xbf16, #tpu.memory_space<vmem>>, vector<256x1024xbf16>
    %cst_47 = arith.constant dense<0.000000e+00> : vector<8x1024xf32>
    %324 = tpu.matmul %322, %323, %cst_47 {dimension_numbers = #tpu.dot_dimension_numbers<[1], [0], [0], [1], [0, 0, 1, 1], [], []>} : vector<8x256xbf16>, vector<256x1024xbf16>, vector<8x1024xf32> -> vector<8x1024xf32>
    %325 = vector.extract_strided_slice %324 {offsets = [0, 0], sizes = [8, 512], strides = [1, 1]} : vector<8x1024xf32> to vector<8x512xf32>
    %326 = vector.broadcast %6 : vector<1x512xf32> to vector<8x512xf32>
    %327 = arith.addf %325, %326 : vector<8x512xf32>
    %328 = vector.extract_strided_slice %327 {offsets = [0, 0], sizes = [8, 384], strides = [1, 1]} : vector<8x512xf32> to vector<8x384xf32>
    %329 = arith.negf %328 : vector<8x384xf32>
    %330 = math.exp %329 : vector<8x384xf32>
    %cst_48 = arith.constant 1.000000e+00 : f32
    %331 = vector.broadcast %cst_48 : f32 to vector<8x384xf32>
    %332 = arith.addf %331, %330 : vector<8x384xf32>
    %333 = arith.divf %331, %332 : vector<8x384xf32>
    %334 = vector.extract_strided_slice %333 {offsets = [0, 0], sizes = [8, 128], strides = [1, 1]} : vector<8x384xf32> to vector<8x128xf32>
    %335 = vector.extract_strided_slice %333 {offsets = [0, 128], sizes = [8, 128], strides = [1, 1]} : vector<8x384xf32> to vector<8x128xf32>
    %336 = vector.extract_strided_slice %333 {offsets = [0, 256], sizes = [8, 128], strides = [1, 1]} : vector<8x384xf32> to vector<8x128xf32>
    %337 = vector.extract_strided_slice %327 {offsets = [0, 384], sizes = [8, 128], strides = [1, 1]} : vector<8x512xf32> to vector<8x128xf32>
    %338 = math.tanh %337 : vector<8x128xf32>
    %339 = arith.mulf %335, %299 : vector<8x128xf32>
    %340 = arith.mulf %334, %338 : vector<8x128xf32>
    %341 = arith.addf %339, %340 : vector<8x128xf32>
    %342 = math.tanh %341 : vector<8x128xf32>
    %343 = arith.mulf %336, %342 : vector<8x128xf32>
    %344 = arith.truncf %343 : vector<8x128xf32> to vector<8x128xbf16>
    %c0_49 = arith.constant 0 : index
    %c0_50 = arith.constant 0 : index
    %345 = vector.load %arg5[%c0_49, %c0_50] : memref<128x128xbf16, #tpu.memory_space<vmem>>, vector<128x128xbf16>
    %cst_51 = arith.constant dense<0.000000e+00> : vector<8x128xf32>
    %346 = tpu.matmul %344, %345, %cst_51 {dimension_numbers = #tpu.dot_dimension_numbers<[1], [0], [0], [1], [0, 0, 1, 1], [], []>} : vector<8x128xbf16>, vector<128x128xbf16>, vector<8x128xf32> -> vector<8x128xf32>
    %c0_52 = arith.constant 0 : index
    %c0_53 = arith.constant 0 : index
    %347 = vector.load %arg6[%c0_52, %c0_53] : memref<1x128xf32, #tpu.memory_space<vmem>>, vector<1x128xf32>
    %348 = vector.broadcast %347 : vector<1x128xf32> to vector<8x128xf32>
    %349 = arith.addf %346, %348 : vector<8x128xf32>
    %c0_54 = arith.constant 0 : index
    %c0_55 = arith.constant 0 : index
    %350 = vector.load %arg7[%c0_54, %c0_55] : memref<8x128xf32, #tpu.memory_space<vmem>>, vector<8x128xf32>
    tpu.vector_store %arg7[%c0_54, %c0_55], %349 {strides = array<i32>} : memref<8x128xf32, #tpu.memory_space<vmem>>, vector<8x128xf32>,
    return
  }
}

</mosaic_0001>

<llo_original>
// kernel: lstm_model_forward.1
$region0: #{lstm_model_forward.1}
  #allocation0 [shape = 'u32[]', space=smem, size = 0x4, offset = 0x4, fixed_abs, tag = 'smem constant byte address 0x4 - core index']
  #allocation1 [shape = 'u32[144,128]{1,0:T(1,128)}', space=vmem, size = 0x12000, scoped, tag = 'internal scratch']
  %s0 = inlined_call_operand.vmem [shape: bf16[64,9], index: 0, kind: input, shape index: {}]
  %s1 = inlined_call_operand.vmem [shape: bf16[9,512], index: 1, kind: input, shape index: {}]
  %s2 = inlined_call_operand.hbm [shape: f32[1,512], index: 2, kind: input, shape index: {}]
  %s3 = inlined_call_operand.hbm [shape: bf16[256,1024], index: 3, kind: input, shape index: {}]
  %s4 = inlined_call_operand.hbm [shape: f32[1,512], index: 4, kind: input, shape index: {}]
  %s5 = inlined_call_operand.vmem [shape: bf16[128,128], index: 5, kind: input, shape index: {}]
  %s6 = inlined_call_operand.vmem [shape: f32[1,128], index: 6, kind: input, shape index: {}]
  %s7 = inlined_call_operand.vmem [shape: f32[8,128], index: 7, kind: output, shape index: {}]
  %s8 = sld [smem:[#allocation0]]
  $region50: #{lstm_model_forward.1} parent=0
    _
  %s10 = ssub.s32 1, %s8
  %s11 = scalar_select 0, %s10, %s8
  $region1: #{lstm_model_forward.1} parent=0
    #allocation2 [shape = 'u8[2048]{0}', space=vmem, size = 0x800, scoped, tag = 'input window, operand 2, single buffered']
    #allocation3 [shape = 's32[1]{0}', space=sflag, size = 0x4, scoped, tag = 'scoped memory for lstm_model_forward.1']
    #allocation4 [shape = 'u8[524288]{0}', space=vmem, size = 0x80000, scoped, tag = 'input window, operand 3, single buffered']
    #allocation5 [shape = 's32[1]{0}', space=sflag, size = 0x4, scoped, tag = 'scoped memory for lstm_model_forward.1']
    #allocation6 [shape = 'u8[2048]{0}', space=vmem, size = 0x800, scoped, tag = 'input window, operand 4, single buffered']
    %12 = vsyncpa [#allocation3], 0
    %13 = vsyncpa [#allocation5], 0
    // Predicated region
    $region2: #{lstm_model_forward.1} parent=1 // pred_check
      _
    $region3: #{lstm_model_forward.1} parent=1 // pred_check_branch
      %15 = sbr.rel (0) target = $region5
    $region4: #{lstm_model_forward.1} parent=1 // pred_region
      _
    $region5: #{lstm_model_forward.1} parent=1 // pred_fallthru
      _
    // Predicated region
    $region6: #{lstm_model_forward.1} parent=1 // pred_check
      _
    $region7: #{lstm_model_forward.1} parent=1 // pred_check_branch
      %17 = sbr.rel (0) target = $region9
    $region8: #{lstm_model_forward.1} parent=1 // pred_region
      _
    $region9: #{lstm_model_forward.1} parent=1 // pred_fallthru
      _
    // Predicated region
    $region10: #{lstm_model_forward.1} parent=1 // pred_check
      _
    $region11: #{lstm_model_forward.1} parent=1 // pred_check_branch
      %19 = sbr.rel (0) target = $region13
    $region12: #{lstm_model_forward.1} parent=1 // pred_region
      %s21 = ssub.s32 64, 64
      %22 = vsyncadd [#allocation3], %s21
      %s24 = sshll.u32 [#allocation2], 4
      %s25 = int_to_ptr.vmem [resolvable:$true] %s24
      %27 = dma.hbm_to_vmem [thread:$0]  %s2, 64, %s25, [#allocation3]
    $region13: #{lstm_model_forward.1} parent=1 // pred_fallthru
      _
    // Predicated region
    $region14: #{lstm_model_forward.1} parent=1 // pred_check
      _
    $region15: #{lstm_model_forward.1} parent=1 // pred_check_branch
      %29 = sbr.rel (0) target = $region17
    $region16: #{lstm_model_forward.1} parent=1 // pred_region
      %s31 = ssub.s32 16384, 16384
      %32 = vsyncadd [#allocation5], %s31
      %s33 = sshll.u32 [#allocation4], 4
      %s34 = int_to_ptr.vmem [resolvable:$true] %s33
      %39 = dma.hbm_to_vmem [thread:$0]  %s3, 16384, %s34, [#allocation5], 512, 512, 32
    $region17: #{lstm_model_forward.1} parent=1 // pred_fallthru
      _
    // Predicated region
    $region18: #{lstm_model_forward.1} parent=1 // pred_check
      _
    $region19: #{lstm_model_forward.1} parent=1 // pred_check_branch
      %41 = sbr.rel (0) target = $region21
    $region20: #{lstm_model_forward.1} parent=1 // pred_region
      %s43 = ssub.s32 64, 64
      %44 = vsyncadd [#allocation5], %s43
      %s46 = sshll.u32 [#allocation6], 4
      %s47 = int_to_ptr.vmem [resolvable:$true] %s46
      %49 = dma.hbm_to_vmem [thread:$0]  %s4, 64, %s47, [#allocation5]
    $region21: #{lstm_model_forward.1} parent=1 // pred_fallthru
      _
    // Predicated region
    $region22: #{lstm_model_forward.1} parent=1 // pred_check
      _
    $region23: #{lstm_model_forward.1} parent=1 // pred_check_branch
      %51 = sbr.rel (0) target = $region25
    $region24: #{lstm_model_forward.1} parent=1 // pred_region
      _
    $region25: #{lstm_model_forward.1} parent=1 // pred_fallthru
      _
    // Predicated region
    $region26: #{lstm_model_forward.1} parent=1 // pred_check
      _
    $region27: #{lstm_model_forward.1} parent=1 // pred_check_branch
      %53 = sbr.rel (0) target = $region29
    $region28: #{lstm_model_forward.1} parent=1 // pred_region
      _
    $region29: #{lstm_model_forward.1} parent=1 // pred_fallthru
      _
    // Predicated region
    $region30: #{lstm_model_forward.1} parent=1 // pred_check
      _
    $region31: #{lstm_model_forward.1} parent=1 // pred_check_branch
      %55 = sbr.rel (0) target = $region33
    $region32: #{lstm_model_forward.1} parent=1 // pred_region
      %56 = dma.done [#allocation3], 64
    $region33: #{lstm_model_forward.1} parent=1 // pred_fallthru
      _
    // Predicated region
    $region34: #{lstm_model_forward.1} parent=1 // pred_check
      _
    $region35: #{lstm_model_forward.1} parent=1 // pred_check_branch
      %58 = sbr.rel (0) target = $region37
    $region36: #{lstm_model_forward.1} parent=1 // pred_region
      %59 = dma.done [#allocation5], 16384
    $region37: #{lstm_model_forward.1} parent=1 // pred_fallthru
      _
    // Predicated region
    $region38: #{lstm_model_forward.1} parent=1 // pred_check
      _
    $region39: #{lstm_model_forward.1} parent=1 // pred_check_branch
      %61 = sbr.rel (0) target = $region41
    $region40: #{lstm_model_forward.1} parent=1 // pred_region
      %62 = dma.done [#allocation5], 64
    $region41: #{lstm_model_forward.1} parent=1 // pred_fallthru
      _
    %v64 = vld [vmem:[%s0] sm:$0xf]
    %v65 = vld [vmem:[%s0 + $0x4] sm:$0xf]
    %v66 = vld [vmem:[%s0 + $0x8] sm:$0xf]
    %v67 = vld [vmem:[%s0 + $0xc] sm:$0xf]
    %v68 = vld [vmem:[%s0 + $0x10] sm:$0xf]
    %v69 = vld [vmem:[%s0 + $0x14] sm:$0xf]
    %v70 = vld [vmem:[%s0 + $0x18] sm:$0xf]
    %v71 = vld [vmem:[%s0 + $0x1c] sm:$0xf]
    %v72 = vld [vmem:[%s1] sm:$0xff]
    %v73 = vld [vmem:[%s1 + $0x8] sm:$0xff]
    %v74 = vld [vmem:[%s1 + $0x10] sm:$0x11]
    %v75 = vld [vmem:[%s1 + $0x18] sm:$0x11]
    %v76 = vld [vmem:[#allocation2] sm:$0xf]
    %v78 = vlaneseq
    %v79 = vshrl.u32 %v78, 7
    %v80 = vsub.s32 0, %v79
    %v81 = vrot.slane %v76, %v80
    %v82 = vlaneseq
    %v83 = vshrl.u32 %v82, 7
    %v84 = vsub.s32 1, %v83
    %v85 = vrot.slane %v76, %v84
    %v86 = vlaneseq
    %v87 = vshrl.u32 %v86, 7
    %v88 = vsub.s32 2, %v87
    %v89 = vrot.slane %v76, %v88
    %v90 = vlaneseq
    %v91 = vshrl.u32 %v90, 7
    %v92 = vsub.s32 3, %v91
    %v93 = vrot.slane %v76, %v92
    %v106 = vunpack.c.l.b16 %v64
    %v107 = vunpack.c.l.b16 %v65
    %v108 = vunpack.c.l.b16 %v66
    %v109 = vunpack.c.l.b16 %v67
    %v110 = vunpack.c.l.b16 %v68
    %v111 = vunpack.c.l.b16 %v69
    %v112 = vunpack.c.l.b16 %v70
    %v113 = vunpack.c.l.b16 %v71
    %v114 = vpack.c.b16 %v107, %v106
    %v115 = vpack.c.b16 %v109, %v108
    %v116 = vpack.c.b16 %v111, %v110
    %v117 = vpack.c.b16 %v113, %v112
    %v122 = vunpack.c.l.b16 %v72
    %v123 = vunpack.c.h.b16 %v72
    %v124 = vunpack.c.l.b16 %v73
    %v125 = vunpack.c.h.b16 %v73
    %v126 = vunpack.c.l.b16 %v74
    %v127 = vunpack.c.h.b16 %v74
    %v128 = vunpack.c.l.b16 %v75
    %v129 = vunpack.c.h.b16 %v75
    %v130 = vpack.c.b16 %v126, %v122
    %v131 = vpack.c.b16 %v127, %v123
    %v132 = vpack.c.b16 %v128, %v124
    %v133 = vpack.c.b16 %v129, %v125
    %vm134 = vcmask 72704
    %v136 = vsel %vm134, %v114, 0
    %v139 = vsel %vm134, %v115, 0
    %v142 = vsel %vm134, %v116, 0
    %v145 = vsel %vm134, %v117, 0
    %vm147 = vcmask 1043456
    %vm148 = vcmask 1044480
    %v149 = vsel %vm147, 4294967295, 65535
    %v150 = vsel %vm148, %v149, 0
    %v152 = vand.u32 %v130, %v150
    %v155 = vand.u32 %v131, %v150
    %v158 = vand.u32 %v132, %v150
    %v161 = vand.u32 %v133, %v150
    %163 = vmatprep.subr.bf16.mxu0 %v155
    %164 = vmatpush1.bf16.msra.mxu0 %v152
    %165 = vmatprep.subr.bf16.mxu0 0
    %166 = vmatpush1.bf16.msra.mxu0 0
    %167 = vmatprep.subr.bf16.mxu0 0
    %168 = vmatpush1.bf16.msra.mxu0 0
    %169 = vmatprep.subr.bf16.mxu0 0
    %170 = vmatpush1.bf16.msra.mxu0 0
    %171 = vmatprep.subr.bf16.mxu0 0
    %172 = vmatpush1.bf16.msra.mxu0 0
    %173 = vmatprep.subr.bf16.mxu0 0
    %174 = vmatpush1.bf16.msra.mxu0 0
    %175 = vmatprep.subr.bf16.mxu0 0
    %176 = vmatpush1.bf16.msra.mxu0 0
    %177 = vmatprep.subr.bf16.mxu0 0
    %178 = vmatpush1.bf16.msra.mxu0 0
    %179 = vmatprep.subr.bf16.mxu0 0
    %180 = vmatpush1.bf16.msra.mxu0 0
    %181 = vmatprep.subr.bf16.mxu0 0
    %182 = vmatpush1.bf16.msra.mxu0 0
    %183 = vmatprep.subr.bf16.mxu0 0
    %184 = vmatpush1.bf16.msra.mxu0 0
    %185 = vmatprep.subr.bf16.mxu0 0
    %186 = vmatpush1.bf16.msra.mxu0 0
    %187 = vmatprep.subr.bf16.mxu0 0
    %188 = vmatpush1.bf16.msra.mxu0 0
    %189 = vmatprep.subr.bf16.mxu0 0
    %190 = vmatpush1.bf16.msra.mxu0 0
    %191 = vmatprep.subr.bf16.mxu0 0
    %192 = vmatpush1.bf16.msra.mxu0 0
    %193 = vmatprep.subr.bf16.mxu0 0
    %194 = vmatpush1.bf16.msra.mxu0 0
    %195 = vmatprep.mubr.bf16.mxu0 0
    %196 = vmatmul.mubr.bf16.gmra.mrb[0].mxu0 %v136
    %v197 = vpop.f32.mrb[0].mxu0
    %v198 = vadd.f32 %v81, %v197
    %v199 = vpop.f32.mrb[0].mxu0
    %v200 = vadd.f32 %v85, %v199
    %v201 = vpop.f32.mrb[0].mxu0
    %v202 = vadd.f32 %v81, %v201
    %v203 = vpop.f32.mrb[0].mxu0
    %v204 = vadd.f32 %v85, %v203
    %205 = vmatprep.mubr.bf16.mxu0 0
    %206 = vmatmul.mubr.bf16.gmra.mrb[0].mxu0 %v139
    %v207 = vpop.f32.mrb[0].mxu0
    %v208 = vadd.f32 %v81, %v207
    %v209 = vpop.f32.mrb[0].mxu0
    %v210 = vadd.f32 %v85, %v209
    %v211 = vpop.f32.mrb[0].mxu0
    %v212 = vadd.f32 %v81, %v211
    %v213 = vpop.f32.mrb[0].mxu0
    %v214 = vadd.f32 %v85, %v213
    %215 = vmatprep.mubr.bf16.mxu0 0
    %216 = vmatmul.mubr.bf16.gmra.mrb[0].mxu0 %v142
    %v217 = vpop.f32.mrb[0].mxu0
    %v218 = vadd.f32 %v81, %v217
    %v219 = vpop.f32.mrb[0].mxu0
    %v220 = vadd.f32 %v85, %v219
    %v221 = vpop.f32.mrb[0].mxu0
    %v222 = vadd.f32 %v81, %v221
    %v223 = vpop.f32.mrb[0].mxu0
    %v224 = vadd.f32 %v85, %v223
    %225 = vmatprep.mubr.bf16.mxu0 0
    %226 = vmatmul.mubr.bf16.gmra.mrb[0].mxu0 %v145
    %v227 = vpop.f32.mrb[0].mxu0
    %v228 = vadd.f32 %v81, %v227
    %v229 = vpop.f32.mrb[0].mxu0
    %v230 = vadd.f32 %v85, %v229
    %v231 = vpop.f32.mrb[0].mxu0
    %v232 = vadd.f32 %v81, %v231
    %v233 = vpop.f32.mrb[0].mxu0
    %v234 = vadd.f32 %v85, %v233
    %235 = vdwg.mxu0
    %236 = vmatprep.subr.bf16.mxu0 %v161
    %237 = vmatpush1.bf16.msra.mxu0 %v158
    %238 = vmatprep.subr.bf16.mxu0 0
    %239 = vmatpush1.bf16.msra.mxu0 0
    %240 = vmatprep.subr.bf16.mxu0 0
    %241 = vmatpush1.bf16.msra.mxu0 0
    %242 = vmatprep.subr.bf16.mxu0 0
    %243 = vmatpush1.bf16.msra.mxu0 0
    %244 = vmatprep.subr.bf16.mxu0 0
    %245 = vmatpush1.bf16.msra.mxu0 0
    %246 = vmatprep.subr.bf16.mxu0 0
    %247 = vmatpush1.bf16.msra.mxu0 0
    %248 = vmatprep.subr.bf16.mxu0 0
    %249 = vmatpush1.bf16.msra.mxu0 0
    %250 = vmatprep.subr.bf16.mxu0 0
    %251 = vmatpush1.bf16.msra.mxu0 0
    %252 = vmatprep.subr.bf16.mxu0 0
    %253 = vmatpush1.bf16.msra.mxu0 0
    %254 = vmatprep.subr.bf16.mxu0 0
    %255 = vmatpush1.bf16.msra.mxu0 0
    %256 = vmatprep.subr.bf16.mxu0 0
    %257 = vmatpush1.bf16.msra.mxu0 0
    %258 = vmatprep.subr.bf16.mxu0 0
    %259 = vmatpush1.bf16.msra.mxu0 0
    %260 = vmatprep.subr.bf16.mxu0 0
    %261 = vmatpush1.bf16.msra.mxu0 0
    %262 = vmatprep.subr.bf16.mxu0 0
    %263 = vmatpush1.bf16.msra.mxu0 0
    %264 = vmatprep.subr.bf16.mxu0 0
    %265 = vmatpush1.bf16.msra.mxu0 0
    %266 = vmatprep.subr.bf16.mxu0 0
    %267 = vmatpush1.bf16.msra.mxu0 0
    %268 = vmatprep.mubr.bf16.mxu0 0
    %269 = vmatmul.mubr.bf16.gmra.mrb[0].mxu0 %v136
    %v270 = vpop.f32.mrb[0].mxu0
    %v271 = vadd.f32 %v89, %v270
    %v272 = vpop.f32.mrb[0].mxu0
    %v273 = vadd.f32 %v93, %v272
    %v274 = vpop.f32.mrb[0].mxu0
    %v275 = vadd.f32 %v89, %v274
    %v276 = vpop.f32.mrb[0].mxu0
    %v277 = vadd.f32 %v93, %v276
    %278 = vmatprep.mubr.bf16.mxu0 0
    %279 = vmatmul.mubr.bf16.gmra.mrb[0].mxu0 %v139
    %v280 = vpop.f32.mrb[0].mxu0
    %v281 = vadd.f32 %v89, %v280
    %v282 = vpop.f32.mrb[0].mxu0
    %v283 = vadd.f32 %v93, %v282
    %v284 = vpop.f32.mrb[0].mxu0
    %v285 = vadd.f32 %v89, %v284
    %v286 = vpop.f32.mrb[0].mxu0
    %v287 = vadd.f32 %v93, %v286
    %288 = vmatprep.mubr.bf16.mxu0 0
    %289 = vmatmul.mubr.bf16.gmra.mrb[0].mxu0 %v142
    %v290 = vpop.f32.mrb[0].mxu0
    %v291 = vadd.f32 %v89, %v290
    %v292 = vpop.f32.mrb[0].mxu0
    %v293 = vadd.f32 %v93, %v292
    %v294 = vpop.f32.mrb[0].mxu0
    %v295 = vadd.f32 %v89, %v294
    %v296 = vpop.f32.mrb[0].mxu0
    %v297 = vadd.f32 %v93, %v296
    %298 = vmatprep.mubr.bf16.mxu0 0
    %299 = vmatmul.mubr.bf16.gmra.mrb[0].mxu0 %v145
    %v300 = vpop.f32.mrb[0].mxu0
    %v301 = vadd.f32 %v89, %v300
    %v302 = vpop.f32.mrb[0].mxu0
    %v303 = vadd.f32 %v93, %v302
    %v304 = vpop.f32.mrb[0].mxu0
    %v305 = vadd.f32 %v89, %v304
    %v306 = vpop.f32.mrb[0].mxu0
    %v307 = vadd.f32 %v93, %v306
    %308 = vdwg.mxu0
    %v309 = vld [vmem:[#allocation6] sm:$0xf]
    %v310 = vadd.f32 %v198, 0.0
    %v311 = vadd.f32 %v200, 0.0
    %v312 = vadd.f32 %v271, 0.0
    %v313 = vadd.f32 %v273, 0.0
    %v314 = vxor.u32 %v310, 2147483648
    %v315 = vxor.u32 %v311, 2147483648
    %v316 = vxor.u32 %v312, 2147483648
    %v317 = vmul.f32 %v314, 1.442695
    %v318 = vpow.pop %v317
    %v319 = vmul.f32 %v315, 1.442695
    %v320 = vpow.pop %v319
    %v321 = vmul.f32 %v316, 1.442695
    %v322 = vpow.pop %v321
    %v323 = vadd.f32 %v318, 1.0
    %v324 = vadd.f32 %v320, 1.0
    %v325 = vadd.f32 %v322, 1.0
    %v326 = vrcp.pop %v323
    %v327 = vmul.f32 1.0, %v326
    %v328 = vrcp.pop %v324
    %v329 = vmul.f32 1.0, %v328
    %v330 = vrcp.pop %v325
    %v331 = vmul.f32 1.0, %v330
    %v332 = vtanh.pop %v313
    %v333 = vmul.f32 %v329, 0.0
    %v334 = vmul.f32 %v327, %v332
    %v335 = vadd.f32 %v333, %v334
    %v336 = vtanh.pop %v335
    %v337 = vmul.f32 %v331, %v336
    %v338 = vpack.c.bf16 %v337, %v337
    %v339 = vpack.c.bf16 0.0, 0.0
    %v340 = vld [vmem:[#allocation4] sm:$0xff]
    %v341 = vld [vmem:[#allocation4 + $0x8] sm:$0xff]
    %v342 = vld [vmem:[#allocation4 + $0x10] sm:$0xff]
    %v343 = vld [vmem:[#allocation4 + $0x18] sm:$0xff]
    %v344 = vld [vmem:[#allocation4 + $0x20] sm:$0xff]
    %v345 = vld [vmem:[#allocation4 + $0x28] sm:$0xff]
    %v346 = vld [vmem:[#allocation4 + $0x30] sm:$0xff]
    %v347 = vld [vmem:[#allocation4 + $0x38] sm:$0xff]
    %v348 = vld [vmem:[#allocation4 + $0x40] sm:$0xff]
    %v349 = vld [vmem:[#allocation4 + $0x48] sm:$0xff]
    %v350 = vld [vmem:[#allocation4 + $0x50] sm:$0xff]
    %v351 = vld [vmem:[#allocation4 + $0x58] sm:$0xff]
    %v352 = vld [vmem:[#allocation4 + $0x60] sm:$0xff]
    %v353 = vld [vmem:[#allocation4 + $0x68] sm:$0xff]
    %v354 = vld [vmem:[#allocation4 + $0x70] sm:$0xff]
    %v355 = vld [vmem:[#allocation4 + $0x78] sm:$0xff]
    %v356 = vld [vmem:[#allocation4 + $0x80] sm:$0xff]
    %v357 = vld [vmem:[#allocation4 + $0x88] sm:$0xff]
    %v358 = vld [vmem:[#allocation4 + $0x90] sm:$0xff]
    %v359 = vld [vmem:[#allocation4 + $0x98] sm:$0xff]
    %v360 = vld [vmem:[#allocation4 + $0xa0] sm:$0xff]
    %v361 = vld [vmem:[#allocation4 + $0xa8] sm:$0xff]
    %v362 = vld [vmem:[#allocation4 + $0xb0] sm:$0xff]
    %v363 = vld [vmem:[#allocation4 + $0xb8] sm:$0xff]
    %v364 = vld [vmem:[#allocation4 + $0xc0] sm:$0xff]
    %v365 = vld [vmem:[#allocation4 + $0xc8] sm:$0xff]
    %v366 = vld [vmem:[#allocation4 + $0xd0] sm:$0xff]
    %v367 = vld [vmem:[#allocation4 + $0xd8] sm:$0xff]
    %v368 = vld [vmem:[#allocation4 + $0xe0] sm:$0xff]
    %v369 = vld [vmem:[#allocation4 + $0xe8] sm:$0xff]
    %v370 = vld [vmem:[#allocation4 + $0xf0] sm:$0xff]
    %v371 = vld [vmem:[#allocation4 + $0xf8] sm:$0xff]
    %v372 = vld [vmem:[#allocation4 + $0x100] sm:$0xff]
    %v373 = vld [vmem:[#allocation4 + $0x108] sm:$0xff]
    %v374 = vld [vmem:[#allocation4 + $0x110] sm:$0xff]
    %v375 = vld [vmem:[#allocation4 + $0x118] sm:$0xff]
    %v376 = vld [vmem:[#allocation4 + $0x120] sm:$0xff]
    %v377 = vld [vmem:[#allocation4 + $0x128] sm:$0xff]
    %v378 = vld [vmem:[#allocation4 + $0x130] sm:$0xff]
    %v379 = vld [vmem:[#allocation4 + $0x138] sm:$0xff]
    %v380 = vld [vmem:[#allocation4 + $0x140] sm:$0xff]
    %v381 = vld [vmem:[#allocation4 + $0x148] sm:$0xff]
    %v382 = vld [vmem:[#allocation4 + $0x150] sm:$0xff]
    %v383 = vld [vmem:[#allocation4 + $0x158] sm:$0xff]
    %v384 = vld [vmem:[#allocation4 + $0x160] sm:$0xff]
    %v385 = vld [vmem:[#allocation4 + $0x168] sm:$0xff]
    %v386 = vld [vmem:[#allocation4 + $0x170] sm:$0xff]
    %v387 = vld [vmem:[#allocation4 + $0x178] sm:$0xff]
    %v388 = vld [vmem:[#allocation4 + $0x180] sm:$0xff]
    %v389 = vld [vmem:[#allocation4 + $0x188] sm:$0xff]
    %v390 = vld [vmem:[#allocation4 + $0x190] sm:$0xff]
    %v391 = vld [vmem:[#allocation4 + $0x198] sm:$0xff]
    %v392 = vld [vmem:[#allocation4 + $0x1a0] sm:$0xff]
    %v393 = vld [vmem:[#allocation4 + $0x1a8] sm:$0xff]
    %v394 = vld [vmem:[#allocation4 + $0x1b0] sm:$0xff]
    %v395 = vld [vmem:[#allocation4 + $0x1b8] sm:$0xff]
    %v396 = vld [vmem:[#allocation4 + $0x1c0] sm:$0xff]
    %v397 = vld [vmem:[#allocation4 + $0x1c8] sm:$0xff]
    %v398 = vld [vmem:[#allocation4 + $0x1d0] sm:$0xff]
    %v399 = vld [vmem:[#allocation4 + $0x1d8] sm:$0xff]
    %v400 = vld [vmem:[#allocation4 + $0x1e0] sm:$0xff]
    %v401 = vld [vmem:[#allocation4 + $0x1e8] sm:$0xff]
    %v402 = vld [vmem:[#allocation4 + $0x1f0] sm:$0xff]
    %v403 = vld [vmem:[#allocation4 + $0x1f8] sm:$0xff]
    %v404 = vld [vmem:[#allocation4 + $0x200] sm:$0xff]
    %v405 = vld [vmem:[#allocation4 + $0x208] sm:$0xff]
    %v406 = vld [vmem:[#allocation4 + $0x210] sm:$0xff]
    %v407 = vld [vmem:[#allocation4 + $0x218] sm:$0xff]
    %v408 = vld [vmem:[#allocation4 + $0x220] sm:$0xff]
    %v409 = vld [vmem:[#allocation4 + $0x228] sm:$0xff]
    %v410 = vld [vmem:[#allocation4 + $0x230] sm:$0xff]
    %v411 = vld [vmem:[#allocation4 + $0x238] sm:$0xff]
    %v412 = vld [vmem:[#allocation4 + $0x240] sm:$0xff]
    %v413 = vld [vmem:[#allocation4 + $0x248] sm:$0xff]
    %v414 = vld [vmem:[#allocation4 + $0x250] sm:$0xff]
    %v415 = vld [vmem:[#allocation4 + $0x258] sm:$0xff]
    %v416 = vld [vmem:[#allocation4 + $0x260] sm:$0xff]
    %v417 = vld [vmem:[#allocation4 + $0x268] sm:$0xff]
    %v418 = vld [vmem:[#allocation4 + $0x270] sm:$0xff]
    %v419 = vld [vmem:[#allocation4 + $0x278] sm:$0xff]
    %v420 = vld [vmem:[#allocation4 + $0x280] sm:$0xff]
    %v421 = vld [vmem:[#allocation4 + $0x288] sm:$0xff]
    %v422 = vld [vmem:[#allocation4 + $0x290] sm:$0xff]
    %v423 = vld [vmem:[#allocation4 + $0x298] sm:$0xff]
    %v424 = vld [vmem:[#allocation4 + $0x2a0] sm:$0xff]
    %v425 = vld [vmem:[#allocation4 + $0x2a8] sm:$0xff]
    %v426 = vld [vmem:[#allocation4 + $0x2b0] sm:$0xff]
    %v427 = vld [vmem:[#allocation4 + $0x2b8] sm:$0xff]
    %v428 = vld [vmem:[#allocation4 + $0x2c0] sm:$0xff]
    %v429 = vld [vmem:[#allocation4 + $0x2c8] sm:$0xff]
    %v430 = vld [vmem:[#allocation4 + $0x2d0] sm:$0xff]
    %v431 = vld [vmem:[#allocation4 + $0x2d8] sm:$0xff]
    %v432 = vld [vmem:[#allocation4 + $0x2e0] sm:$0xff]
    %v433 = vld [vmem:[#allocation4 + $0x2e8] sm:$0xff]
    %v434 = vld [vmem:[#allocation4 + $0x2f0] sm:$0xff]
    %v435 = vld [vmem:[#allocation4 + $0x2f8] sm:$0xff]
    %v436 = vld [vmem:[#allocation4 + $0x300] sm:$0xff]
    %v437 = vld [vmem:[#allocation4 + $0x308] sm:$0xff]
    %v438 = vld [vmem:[#allocation4 + $0x310] sm:$0xff]
    %v439 = vld [vmem:[#allocation4 + $0x318] sm:$0xff]
    %v440 = vld [vmem:[#allocation4 + $0x320] sm:$0xff]
    %v441 = vld [vmem:[#allocation4 + $0x328] sm:$0xff]
    %v442 = vld [vmem:[#allocation4 + $0x330] sm:$0xff]
    %v443 = vld [vmem:[#allocation4 + $0x338] sm:$0xff]
    %v444 = vld [vmem:[#allocation4 + $0x340] sm:$0xff]
    %v445 = vld [vmem:[#allocation4 + $0x348] sm:$0xff]
    %v446 = vld [vmem:[#allocation4 + $0x350] sm:$0xff]
    %v447 = vld [vmem:[#allocation4 + $0x358] sm:$0xff]
    %v448 = vld [vmem:[#allocation4 + $0x360] sm:$0xff]
    %v449 = vld [vmem:[#allocation4 + $0x368] sm:$0xff]
    %v450 = vld [vmem:[#allocation4 + $0x370] sm:$0xff]
    %v451 = vld [vmem:[#allocation4 + $0x378] sm:$0xff]
    %v452 = vld [vmem:[#allocation4 + $0x380] sm:$0xff]
    %v453 = vld [vmem:[#allocation4 + $0x388] sm:$0xff]
    %v454 = vld [vmem:[#allocation4 + $0x390] sm:$0xff]
    %v455 = vld [vmem:[#allocation4 + $0x398] sm:$0xff]
    %v456 = vld [vmem:[#allocation4 + $0x3a0] sm:$0xff]
    %v457 = vld [vmem:[#allocation4 + $0x3a8] sm:$0xff]
    %v458 = vld [vmem:[#allocation4 + $0x3b0] sm:$0xff]
    %v459 = vld [vmem:[#allocation4 + $0x3b8] sm:$0xff]
    %v460 = vld [vmem:[#allocation4 + $0x3c0] sm:$0xff]
    %v461 = vld [vmem:[#allocation4 + $0x3c8] sm:$0xff]
    %v462 = vld [vmem:[#allocation4 + $0x3d0] sm:$0xff]
    %v463 = vld [vmem:[#allocation4 + $0x3d8] sm:$0xff]
    %v464 = vld [vmem:[#allocation4 + $0x3e0] sm:$0xff]
    %v465 = vld [vmem:[#allocation4 + $0x3e8] sm:$0xff]
    %v466 = vld [vmem:[#allocation4 + $0x3f0] sm:$0xff]
    %v467 = vld [vmem:[#allocation4 + $0x3f8] sm:$0xff]
    %v596 = vunpack.c.l.b16 %v340
    %v597 = vunpack.c.h.b16 %v340
    %v598 = vunpack.c.l.b16 %v341
    %v599 = vunpack.c.h.b16 %v341
    %v600 = vunpack.c.l.b16 %v342
    %v601 = vunpack.c.h.b16 %v342
    %v602 = vunpack.c.l.b16 %v343
    %v603 = vunpack.c.h.b16 %v343
    %v604 = vunpack.c.l.b16 %v344
    %v605 = vunpack.c.h.b16 %v344
    %v606 = vunpack.c.l.b16 %v345
    %v607 = vunpack.c.h.b16 %v345
    %v608 = vunpack.c.l.b16 %v346
    %v609 = vunpack.c.h.b16 %v346
    %v610 = vunpack.c.l.b16 %v347
    %v611 = vunpack.c.h.b16 %v347
    %v612 = vunpack.c.l.b16 %v348
    %v613 = vunpack.c.h.b16 %v348
    %v614 = vunpack.c.l.b16 %v349
    %v615 = vunpack.c.h.b16 %v349
    %v616 = vunpack.c.l.b16 %v350
    %v617 = vunpack.c.h.b16 %v350
    %v618 = vunpack.c.l.b16 %v351
    %v619 = vunpack.c.h.b16 %v351
    %v620 = vunpack.c.l.b16 %v352
    %v621 = vunpack.c.h.b16 %v352
    %v622 = vunpack.c.l.b16 %v353
    %v623 = vunpack.c.h.b16 %v353
    %v624 = vunpack.c.l.b16 %v354
    %v625 = vunpack.c.h.b16 %v354
    %v626 = vunpack.c.l.b16 %v355
    %v627 = vunpack.c.h.b16 %v355
    %v628 = vunpack.c.l.b16 %v356
    %v629 = vunpack.c.h.b16 %v356
    %v630 = vunpack.c.l.b16 %v357
    %v631 = vunpack.c.h.b16 %v357
    %v632 = vunpack.c.l.b16 %v358
    %v633 = vunpack.c.h.b16 %v358
    %v634 = vunpack.c.l.b16 %v359
    %v635 = vunpack.c.h.b16 %v359
    %v636 = vunpack.c.l.b16 %v360
    %v637 = vunpack.c.h.b16 %v360
    %v638 = vunpack.c.l.b16 %v361
    %v639 = vunpack.c.h.b16 %v361
    %v640 = vunpack.c.l.b16 %v362
    %v641 = vunpack.c.h.b16 %v362
    %v642 = vunpack.c.l.b16 %v363
    %v643 = vunpack.c.h.b16 %v363
    %v644 = vunpack.c.l.b16 %v364
    %v645 = vunpack.c.h.b16 %v364
    %v646 = vunpack.c.l.b16 %v365
    %v647 = vunpack.c.h.b16 %v365
    %v648 = vunpack.c.l.b16 %v366
    %v649 = vunpack.c.h.b16 %v366
    %v650 = vunpack.c.l.b16 %v367
    %v651 = vunpack.c.h.b16 %v367
    %v652 = vunpack.c.l.b16 %v368
    %v653 = vunpack.c.h.b16 %v368
    %v654 = vunpack.c.l.b16 %v369
    %v655 = vunpack.c.h.b16 %v369
    %v656 = vunpack.c.l.b16 %v370
    %v657 = vunpack.c.h.b16 %v370
    %v658 = vunpack.c.l.b16 %v371
    %v659 = vunpack.c.h.b16 %v371
    %v660 = vunpack.c.l.b16 %v372
    %v661 = vunpack.c.h.b16 %v372
    %v662 = vunpack.c.l.b16 %v373
    %v663 = vunpack.c.h.b16 %v373
    %v664 = vunpack.c.l.b16 %v374
    %v665 = vunpack.c.h.b16 %v374
    %v666 = vunpack.c.l.b16 %v375
    %v667 = vunpack.c.h.b16 %v375
    %v668 = vunpack.c.l.b16 %v376
    %v669 = vunpack.c.h.b16 %v376
    %v670 = vunpack.c.l.b16 %v377
    %v671 = vunpack.c.h.b16 %v377
    %v672 = vunpack.c.l.b16 %v378
    %v673 = vunpack.c.h.b16 %v378
    %v674 = vunpack.c.l.b16 %v379
    %v675 = vunpack.c.h.b16 %v379
    %v676 = vunpack.c.l.b16 %v380
    %v677 = vunpack.c.h.b16 %v380
    %v678 = vunpack.c.l.b16 %v381
    %v679 = vunpack.c.h.b16 %v381
    %v680 = vunpack.c.l.b16 %v382
    %v681 = vunpack.c.h.b16 %v382
    %v682 = vunpack.c.l.b16 %v383
    %v683 = vunpack.c.h.b16 %v383
    %v684 = vunpack.c.l.b16 %v384
    %v685 = vunpack.c.h.b16 %v384
    %v686 = vunpack.c.l.b16 %v385
    %v687 = vunpack.c.h.b16 %v385
    %v688 = vunpack.c.l.b16 %v386
    %v689 = vunpack.c.h.b16 %v386
    %v690 = vunpack.c.l.b16 %v387
    %v691 = vunpack.c.h.b16 %v387
    %v692 = vunpack.c.l.b16 %v388
    %v693 = vunpack.c.h.b16 %v388
    %v694 = vunpack.c.l.b16 %v389
    %v695 = vunpack.c.h.b16 %v389
    %v696 = vunpack.c.l.b16 %v390
    %v697 = vunpack.c.h.b16 %v390
    %v698 = vunpack.c.l.b16 %v391
    %v699 = vunpack.c.h.b16 %v391
    %v700 = vunpack.c.l.b16 %v392
    %v701 = vunpack.c.h.b16 %v392
    %v702 = vunpack.c.l.b16 %v393
    %v703 = vunpack.c.h.b16 %v393
    %v704 = vunpack.c.l.b16 %v394
    %v705 = vunpack.c.h.b16 %v394
    %v706 = vunpack.c.l.b16 %v395
    %v707 = vunpack.c.h.b16 %v395
    %v708 = vunpack.c.l.b16 %v396
    %v709 = vunpack.c.h.b16 %v396
    %v710 = vunpack.c.l.b16 %v397
    %v711 = vunpack.c.h.b16 %v397
    %v712 = vunpack.c.l.b16 %v398
    %v713 = vunpack.c.h.b16 %v398
    %v714 = vunpack.c.l.b16 %v399
    %v715 = vunpack.c.h.b16 %v399
    %v716 = vunpack.c.l.b16 %v400
    %v717 = vunpack.c.h.b16 %v400
    %v718 = vunpack.c.l.b16 %v401
    %v719 = vunpack.c.h.b16 %v401
    %v720 = vunpack.c.l.b16 %v402
    %v721 = vunpack.c.h.b16 %v402
    %v722 = vunpack.c.l.b16 %v403
    %v723 = vunpack.c.h.b16 %v403
    %v724 = vunpack.c.l.b16 %v404
    %v725 = vunpack.c.h.b16 %v404
    %v726 = vunpack.c.l.b16 %v405
    %v727 = vunpack.c.h.b16 %v405
    %v728 = vunpack.c.l.b16 %v406
    %v729 = vunpack.c.h.b16 %v406
    %v730 = vunpack.c.l.b16 %v407
    %v731 = vunpack.c.h.b16 %v407
    %v732 = vunpack.c.l.b16 %v408
    %v733 = vunpack.c.h.b16 %v408
    %v734 = vunpack.c.l.b16 %v409
    %v735 = vunpack.c.h.b16 %v409
    %v736 = vunpack.c.l.b16 %v410
    %v737 = vunpack.c.h.b16 %v410
    %v738 = vunpack.c.l.b16 %v411
    %v739 = vunpack.c.h.b16 %v411
    %v740 = vunpack.c.l.b16 %v412
    %v741 = vunpack.c.h.b16 %v412
    %v742 = vunpack.c.l.b16 %v413
    %v743 = vunpack.c.h.b16 %v413
    %v744 = vunpack.c.l.b16 %v414
    %v745 = vunpack.c.h.b16 %v414
    %v746 = vunpack.c.l.b16 %v415
    %v747 = vunpack.c.h.b16 %v415
    %v748 = vunpack.c.l.b16 %v416
    %v749 = vunpack.c.h.b16 %v416
    %v750 = vunpack.c.l.b16 %v417
    %v751 = vunpack.c.h.b16 %v417
    %v752 = vunpack.c.l.b16 %v418
    %v753 = vunpack.c.h.b16 %v418
    %v754 = vunpack.c.l.b16 %v419
    %v755 = vunpack.c.h.b16 %v419
    %v756 = vunpack.c.l.b16 %v420
    %v757 = vunpack.c.h.b16 %v420
    %v758 = vunpack.c.l.b16 %v421
    %v759 = vunpack.c.h.b16 %v421
    %v760 = vunpack.c.l.b16 %v422
    %v761 = vunpack.c.h.b16 %v422
    %v762 = vunpack.c.l.b16 %v423
    %v763 = vunpack.c.h.b16 %v423
    %v764 = vunpack.c.l.b16 %v424
    %v765 = vunpack.c.h.b16 %v424
    %v766 = vunpack.c.l.b16 %v425
    %v767 = vunpack.c.h.b16 %v425
    %v768 = vunpack.c.l.b16 %v426
    %v769 = vunpack.c.h.b16 %v426
    %v770 = vunpack.c.l.b16 %v427
    %v771 = vunpack.c.h.b16 %v427
    %v772 = vunpack.c.l.b16 %v428
    %v773 = vunpack.c.h.b16 %v428
    %v774 = vunpack.c.l.b16 %v429
    %v775 = vunpack.c.h.b16 %v429
    %v776 = vunpack.c.l.b16 %v430
    %v777 = vunpack.c.h.b16 %v430
    %v778 = vunpack.c.l.b16 %v431
    %v779 = vunpack.c.h.b16 %v431
    %v780 = vunpack.c.l.b16 %v432
    %v781 = vunpack.c.h.b16 %v432
    %v782 = vunpack.c.l.b16 %v433
    %v783 = vunpack.c.h.b16 %v433
    %v784 = vunpack.c.l.b16 %v434
    %v785 = vunpack.c.h.b16 %v434
    %v786 = vunpack.c.l.b16 %v435
    %v787 = vunpack.c.h.b16 %v435
    %v788 = vunpack.c.l.b16 %v436
    %v789 = vunpack.c.h.b16 %v436
    %v790 = vunpack.c.l.b16 %v437
    %v791 = vunpack.c.h.b16 %v437
    %v792 = vunpack.c.l.b16 %v438
    %v793 = vunpack.c.h.b16 %v438
    %v794 = vunpack.c.l.b16 %v439
    %v795 = vunpack.c.h.b16 %v439
    %v796 = vunpack.c.l.b16 %v440
    %v797 = vunpack.c.h.b16 %v440
    %v798 = vunpack.c.l.b16 %v441
    %v799 = vunpack.c.h.b16 %v441
    %v800 = vunpack.c.l.b16 %v442
    %v801 = vunpack.c.h.b16 %v442
    %v802 = vunpack.c.l.b16 %v443
    %v803 = vunpack.c.h.b16 %v443
    %v804 = vunpack.c.l.b16 %v444
    %v805 = vunpack.c.h.b16 %v444
    %v806 = vunpack.c.l.b16 %v445
    %v807 = vunpack.c.h.b16 %v445
    %v808 = vunpack.c.l.b16 %v446
    %v809 = vunpack.c.h.b16 %v446
    %v810 = vunpack.c.l.b16 %v447
    %v811 = vunpack.c.h.b16 %v447
    %v812 = vunpack.c.l.b16 %v448
    %v813 = vunpack.c.h.b16 %v448
    %v814 = vunpack.c.l.b16 %v449
    %v815 = vunpack.c.h.b16 %v449
    %v816 = vunpack.c.l.b16 %v450
    %v817 = vunpack.c.h.b16 %v450
    %v818 = vunpack.c.l.b16 %v451
    %v819 = vunpack.c.h.b16 %v451
    %v820 = vunpack.c.l.b16 %v452
    %v821 = vunpack.c.h.b16 %v452
    %v822 = vunpack.c.l.b16 %v453
    %v823 = vunpack.c.h.b16 %v453
    %v824 = vunpack.c.l.b16 %v454
    %v825 = vunpack.c.h.b16 %v454
    %v826 = vunpack.c.l.b16 %v455
    %v827 = vunpack.c.h.b16 %v455
    %v828 = vunpack.c.l.b16 %v456
    %v829 = vunpack.c.h.b16 %v456
    %v830 = vunpack.c.l.b16 %v457
    %v831 = vunpack.c.h.b16 %v457
    %v832 = vunpack.c.l.b16 %v458
    %v833 = vunpack.c.h.b16 %v458
    %v834 = vunpack.c.l.b16 %v459
    %v835 = vunpack.c.h.b16 %v459
    %v836 = vunpack.c.l.b16 %v460
    %v837 = vunpack.c.h.b16 %v460
    %v838 = vunpack.c.l.b16 %v461
    %v839 = vunpack.c.h.b16 %v461
    %v840 = vunpack.c.l.b16 %v462
    %v841 = vunpack.c.h.b16 %v462
    %v842 = vunpack.c.l.b16 %v463
    %v843 = vunpack.c.h.b16 %v463
    %v844 = vunpack.c.l.b16 %v464
    %v845 = vunpack.c.h.b16 %v464
    %v846 = vunpack.c.l.b16 %v465
    %v847 = vunpack.c.h.b16 %v465
    %v848 = vunpack.c.l.b16 %v466
    %v849 = vunpack.c.h.b16 %v466
    %v850 = vunpack.c.l.b16 %v467
    %v851 = vunpack.c.h.b16 %v467
    %v852 = vpack.c.b16 %v604, %v596
    %v853 = vpack.c.b16 %v605, %v597
    %v854 = vpack.c.b16 %v606, %v598
    %v855 = vpack.c.b16 %v607, %v599
    %v856 = vpack.c.b16 %v608, %v600
    %v857 = vpack.c.b16 %v609, %v601
    %v858 = vpack.c.b16 %v610, %v602
    %v859 = vpack.c.b16 %v611, %v603
    %v860 = vpack.c.b16 %v620, %v612
    %v861 = vpack.c.b16 %v621, %v613
    %v862 = vpack.c.b16 %v622, %v614
    %v863 = vpack.c.b16 %v623, %v615
    %v864 = vpack.c.b16 %v624, %v616
    %v865 = vpack.c.b16 %v625, %v617
    %v866 = vpack.c.b16 %v626, %v618
    %v867 = vpack.c.b16 %v627, %v619
    %v868 = vpack.c.b16 %v636, %v628
    %v869 = vpack.c.b16 %v637, %v629
    %v870 = vpack.c.b16 %v638, %v630
    %v871 = vpack.c.b16 %v639, %v631
    %v872 = vpack.c.b16 %v640, %v632
    %v873 = vpack.c.b16 %v641, %v633
    %v874 = vpack.c.b16 %v642, %v634
    %v875 = vpack.c.b16 %v643, %v635
    %v876 = vpack.c.b16 %v652, %v644
    %v877 = vpack.c.b16 %v653, %v645
    %v878 = vpack.c.b16 %v654, %v646
    %v879 = vpack.c.b16 %v655, %v647
    %v880 = vpack.c.b16 %v656, %v648
    %v881 = vpack.c.b16 %v657, %v649
    %v882 = vpack.c.b16 %v658, %v650
    %v883 = vpack.c.b16 %v659, %v651
    %v884 = vpack.c.b16 %v668, %v660
    %v885 = vpack.c.b16 %v669, %v661
    %v886 = vpack.c.b16 %v670, %v662
    %v887 = vpack.c.b16 %v671, %v663
    %v888 = vpack.c.b16 %v672, %v664
    %v889 = vpack.c.b16 %v673, %v665
    %v890 = vpack.c.b16 %v674, %v666
    %v891 = vpack.c.b16 %v675, %v667
    %v892 = vpack.c.b16 %v684, %v676
    %v893 = vpack.c.b16 %v685, %v677
    %v894 = vpack.c.b16 %v686, %v678
    %v895 = vpack.c.b16 %v687, %v679
    %v896 = vpack.c.b16 %v688, %v680
    %v897 = vpack.c.b16 %v689, %v681
    %v898 = vpack.c.b16 %v690, %v682
    %v899 = vpack.c.b16 %v691, %v683
    %v900 = vpack.c.b16 %v700, %v692
    %v901 = vpack.c.b16 %v701, %v693
    %v902 = vpack.c.b16 %v702, %v694
    %v903 = vpack.c.b16 %v703, %v695
    %v904 = vpack.c.b16 %v704, %v696
    %v905 = vpack.c.b16 %v705, %v697
    %v906 = vpack.c.b16 %v706, %v698
    %v907 = vpack.c.b16 %v707, %v699
    %v908 = vpack.c.b16 %v716, %v708
    %v909 = vpack.c.b16 %v717, %v709
    %v910 = vpack.c.b16 %v718, %v710
    %v911 = vpack.c.b16 %v719, %v711
    %v912 = vpack.c.b16 %v720, %v712
    %v913 = vpack.c.b16 %v721, %v713
    %v914 = vpack.c.b16 %v722, %v714
    %v915 = vpack.c.b16 %v723, %v715
    %v916 = vpack.c.b16 %v732, %v724
    %v917 = vpack.c.b16 %v733, %v725
    %v918 = vpack.c.b16 %v734, %v726
    %v919 = vpack.c.b16 %v735, %v727
    %v920 = vpack.c.b16 %v736, %v728
    %v921 = vpack.c.b16 %v737, %v729
    %v922 = vpack.c.b16 %v738, %v730
    %v923 = vpack.c.b16 %v739, %v731
    %v924 = vpack.c.b16 %v748, %v740
    %v925 = vpack.c.b16 %v749, %v741
    %v926 = vpack.c.b16 %v750, %v742
    %v927 = vpack.c.b16 %v751, %v743
    %v928 = vpack.c.b16 %v752, %v744
    %v929 = vpack.c.b16 %v753, %v745
    %v930 = vpack.c.b16 %v754, %v746
    %v931 = vpack.c.b16 %v755, %v747
    %v932 = vpack.c.b16 %v764, %v756
    %v933 = vpack.c.b16 %v765, %v757
    %v934 = vpack.c.b16 %v766, %v758
    %v935 = vpack.c.b16 %v767, %v759
    %v936 = vpack.c.b16 %v768, %v760
    %v937 = vpack.c.b16 %v769, %v761
    %v938 = vpack.c.b16 %v770, %v762
    %v939 = vpack.c.b16 %v771, %v763
    %v940 = vpack.c.b16 %v780, %v772
    %v941 = vpack.c.b16 %v781, %v773
    %v942 = vpack.c.b16 %v782, %v774
    %v943 = vpack.c.b16 %v783, %v775
    %v944 = vpack.c.b16 %v784, %v776
    %v945 = vpack.c.b16 %v785, %v777
    %v946 = vpack.c.b16 %v786, %v778
    %v947 = vpack.c.b16 %v787, %v779
    %v948 = vpack.c.b16 %v796, %v788
    %v949 = vpack.c.b16 %v797, %v789
    %v950 = vpack.c.b16 %v798, %v790
    %v951 = vpack.c.b16 %v799, %v791
    %v952 = vpack.c.b16 %v800, %v792
    %v953 = vpack.c.b16 %v801, %v793
    %v954 = vpack.c.b16 %v802, %v794
    %v955 = vpack.c.b16 %v803, %v795
    %v956 = vpack.c.b16 %v812, %v804
    %v957 = vpack.c.b16 %v813, %v805
    %v958 = vpack.c.b16 %v814, %v806
    %v959 = vpack.c.b16 %v815, %v807
    %v960 = vpack.c.b16 %v816, %v808
    %v961 = vpack.c.b16 %v817, %v809
    %v962 = vpack.c.b16 %v818, %v810
    %v963 = vpack.c.b16 %v819, %v811
    %v964 = vpack.c.b16 %v828, %v820
    %v965 = vpack.c.b16 %v829, %v821
    %v966 = vpack.c.b16 %v830, %v822
    %v967 = vpack.c.b16 %v831, %v823
    %v968 = vpack.c.b16 %v832, %v824
    %v969 = vpack.c.b16 %v833, %v825
    %v970 = vpack.c.b16 %v834, %v826
    %v971 = vpack.c.b16 %v835, %v827
    %v972 = vpack.c.b16 %v844, %v836
    %v973 = vpack.c.b16 %v845, %v837
    %v974 = vpack.c.b16 %v846, %v838
    %v975 = vpack.c.b16 %v847, %v839
    %v976 = vpack.c.b16 %v848, %v840
    %v977 = vpack.c.b16 %v849, %v841
    %v978 = vpack.c.b16 %v850, %v842
    %v979 = vpack.c.b16 %v851, %v843
    %1108 = vmatprep.subr.bf16.mxu0 %v853
    %1109 = vmatpush1.bf16.msra.mxu0 %v852
    %1110 = vmatprep.subr.bf16.mxu0 %v861
    %1111 = vmatpush1.bf16.msra.mxu0 %v860
    %1112 = vmatprep.subr.bf16.mxu0 %v869
    %1113 = vmatpush1.bf16.msra.mxu0 %v868
    %1114 = vmatprep.subr.bf16.mxu0 %v877
    %1115 = vmatpush1.bf16.msra.mxu0 %v876
    %1116 = vmatprep.subr.bf16.mxu0 %v885
    %1117 = vmatpush1.bf16.msra.mxu0 %v884
    %1118 = vmatprep.subr.bf16.mxu0 %v893
    %1119 = vmatpush1.bf16.msra.mxu0 %v892
    %1120 = vmatprep.subr.bf16.mxu0 %v901
    %1121 = vmatpush1.bf16.msra.mxu0 %v900
    %1122 = vmatprep.subr.bf16.mxu0 %v909
    %1123 = vmatpush1.bf16.msra.mxu0 %v908
    %1124 = vmatprep.subr.bf16.mxu0 %v917
    %1125 = vmatpush1.bf16.msra.mxu0 %v916
    %1126 = vmatprep.subr.bf16.mxu0 %v925
    %1127 = vmatpush1.bf16.msra.mxu0 %v924
    %1128 = vmatprep.subr.bf16.mxu0 %v933
    %1129 = vmatpush1.bf16.msra.mxu0 %v932
    %1130 = vmatprep.subr.bf16.mxu0 %v941
    %1131 = vmatpush1.bf16.msra.mxu0 %v940
    %1132 = vmatprep.subr.bf16.mxu0 %v949
    %1133 = vmatpush1.bf16.msra.mxu0 %v948
    %1134 = vmatprep.subr.bf16.mxu0 %v957
    %1135 = vmatpush1.bf16.msra.mxu0 %v956
    %1136 = vmatprep.subr.bf16.mxu0 %v965
    %1137 = vmatpush1.bf16.msra.mxu0 %v964
    %1138 = vmatprep.subr.bf16.mxu0 %v973
    %1139 = vmatpush1.bf16.msra.mxu0 %v972
    %1140 = vmatprep.mubr.bf16.mxu0 %v339
    %1141 = vmatmul.mubr.bf16.gmra.mrb[0].mxu0 %v338
    %v1142 = vpop.f32.mrb[0].mxu0
    %v1143 = vadd.f32 0.0, %v1142
    %v1144 = vpop.f32.mrb[0].mxu0
    %v1145 = vadd.f32 0.0, %v1144
    %v1146 = vpop.f32.mrb[0].mxu0
    %v1147 = vpop.f32.mrb[0].mxu0
    %1148 = vdwg.mxu0
    %1149 = vmatprep.subr.bf16.mxu0 %v855
    %1150 = vmatpush1.bf16.msra.mxu0 %v854
    %1151 = vmatprep.subr.bf16.mxu0 %v863
    %1152 = vmatpush1.bf16.msra.mxu0 %v862
    %1153 = vmatprep.subr.bf16.mxu0 %v871
    %1154 = vmatpush1.bf16.msra.mxu0 %v870
    %1155 = vmatprep.subr.bf16.mxu0 %v879
    %1156 = vmatpush1.bf16.msra.mxu0 %v878
    %1157 = vmatprep.subr.bf16.mxu0 %v887
    %1158 = vmatpush1.bf16.msra.mxu0 %v886
    %1159 = vmatprep.subr.bf16.mxu0 %v895
    %1160 = vmatpush1.bf16.msra.mxu0 %v894
    %1161 = vmatprep.subr.bf16.mxu0 %v903
    %1162 = vmatpush1.bf16.msra.mxu0 %v902
    %1163 = vmatprep.subr.bf16.mxu0 %v911
    %1164 = vmatpush1.bf16.msra.mxu0 %v910
    %1165 = vmatprep.subr.bf16.mxu0 %v919
    %1166 = vmatpush1.bf16.msra.mxu0 %v918
    %1167 = vmatprep.subr.bf16.mxu0 %v927
    %1168 = vmatpush1.bf16.msra.mxu0 %v926
    %1169 = vmatprep.subr.bf16.mxu0 %v935
    %1170 = vmatpush1.bf16.msra.mxu0 %v934
    %1171 = vmatprep.subr.bf16.mxu0 %v943
    %1172 = vmatpush1.bf16.msra.mxu0 %v942
    %1173 = vmatprep.subr.bf16.mxu0 %v951
    %1174 = vmatpush1.bf16.msra.mxu0 %v950
    %1175 = vmatprep.subr.bf16.mxu0 %v959
    %1176 = vmatpush1.bf16.msra.mxu0 %v958
    %1177 = vmatprep.subr.bf16.mxu0 %v967
    %1178 = vmatpush1.bf16.msra.mxu0 %v966
    %1179 = vmatprep.subr.bf16.mxu0 %v975
    %1180 = vmatpush1.bf16.msra.mxu0 %v974
    %1181 = vmatprep.mubr.bf16.mxu0 %v339
    %1182 = vmatmul.mubr.bf16.gmra.mrb[0].mxu0 %v338
    %v1183 = vpop.f32.mrb[0].mxu0
    %v1184 = vadd.f32 0.0, %v1183
    %v1185 = vpop.f32.mrb[0].mxu0
    %v1186 = vadd.f32 0.0, %v1185
    %v1187 = vpop.f32.mrb[0].mxu0
    %v1188 = vpop.f32.mrb[0].mxu0
    %1189 = vdwg.mxu0
    %1190 = vmatprep.subr.bf16.mxu0 %v857
    %1191 = vmatpush1.bf16.msra.mxu0 %v856
    %1192 = vmatprep.subr.bf16.mxu0 %v865
    %1193 = vmatpush1.bf16.msra.mxu0 %v864
    %1194 = vmatprep.subr.bf16.mxu0 %v873
    %1195 = vmatpush1.bf16.msra.mxu0 %v872
    %1196 = vmatprep.subr.bf16.mxu0 %v881
    %1197 = vmatpush1.bf16.msra.mxu0 %v880
    %1198 = vmatprep.subr.bf16.mxu0 %v889
    %1199 = vmatpush1.bf16.msra.mxu0 %v888
    %1200 = vmatprep.subr.bf16.mxu0 %v897
    %1201 = vmatpush1.bf16.msra.mxu0 %v896
    %1202 = vmatprep.subr.bf16.mxu0 %v905
    %1203 = vmatpush1.bf16.msra.mxu0 %v904
    %1204 = vmatprep.subr.bf16.mxu0 %v913
    %1205 = vmatpush1.bf16.msra.mxu0 %v912
    %1206 = vmatprep.subr.bf16.mxu0 %v921
    %1207 = vmatpush1.bf16.msra.mxu0 %v920
    %1208 = vmatprep.subr.bf16.mxu0 %v929
    %1209 = vmatpush1.bf16.msra.mxu0 %v928
    %1210 = vmatprep.subr.bf16.mxu0 %v937
    %1211 = vmatpush1.bf16.msra.mxu0 %v936
    %1212 = vmatprep.subr.bf16.mxu0 %v945
    %1213 = vmatpush1.bf16.msra.mxu0 %v944
    %1214 = vmatprep.subr.bf16.mxu0 %v953
    %1215 = vmatpush1.bf16.msra.mxu0 %v952
    %1216 = vmatprep.subr.bf16.mxu0 %v961
    %1217 = vmatpush1.bf16.msra.mxu0 %v960
    %1218 = vmatprep.subr.bf16.mxu0 %v969
    %1219 = vmatpush1.bf16.msra.mxu0 %v968
    %1220 = vmatprep.subr.bf16.mxu0 %v977
    %1221 = vmatpush1.bf16.msra.mxu0 %v976
    %1222 = vmatprep.mubr.bf16.mxu0 %v339
    %1223 = vmatmul.mubr.bf16.gmra.mrb[0].mxu0 %v338
    %v1224 = vpop.f32.mrb[0].mxu0
    %v1225 = vadd.f32 0.0, %v1224
    %v1226 = vpop.f32.mrb[0].mxu0
    %v1227 = vadd.f32 0.0, %v1226
    %v1228 = vpop.f32.mrb[0].mxu0
    %v1229 = vpop.f32.mrb[0].mxu0
    %1230 = vdwg.mxu0
    %1231 = vmatprep.subr.bf16.mxu0 %v859
    %1232 = vmatpush1.bf16.msra.mxu0 %v858
    %1233 = vmatprep.subr.bf16.mxu0 %v867
    %1234 = vmatpush1.bf16.msra.mxu0 %v866
    %1235 = vmatprep.subr.bf16.mxu0 %v875
    %1236 = vmatpush1.bf16.msra.mxu0 %v874
    %1237 = vmatprep.subr.bf16.mxu0 %v883
    %1238 = vmatpush1.bf16.msra.mxu0 %v882
    %1239 = vmatprep.subr.bf16.mxu0 %v891
    %1240 = vmatpush1.bf16.msra.mxu0 %v890
    %1241 = vmatprep.subr.bf16.mxu0 %v899
    %1242 = vmatpush1.bf16.msra.mxu0 %v898
    %1243 = vmatprep.subr.bf16.mxu0 %v907
    %1244 = vmatpush1.bf16.msra.mxu0 %v906
    %1245 = vmatprep.subr.bf16.mxu0 %v915
    %1246 = vmatpush1.bf16.msra.mxu0 %v914
    %1247 = vmatprep.subr.bf16.mxu0 %v923
    %1248 = vmatpush1.bf16.msra.mxu0 %v922
    %1249 = vmatprep.subr.bf16.mxu0 %v931
    %1250 = vmatpush1.bf16.msra.mxu0 %v930
    %1251 = vmatprep.subr.bf16.mxu0 %v939
    %1252 = vmatpush1.bf16.msra.mxu0 %v938
    %1253 = vmatprep.subr.bf16.mxu0 %v947
    %1254 = vmatpush1.bf16.msra.mxu0 %v946
    %1255 = vmatprep.subr.bf16.mxu0 %v955
    %1256 = vmatpush1.bf16.msra.mxu0 %v954
    %1257 = vmatprep.subr.bf16.mxu0 %v963
    %1258 = vmatpush1.bf16.msra.mxu0 %v962
    %1259 = vmatprep.subr.bf16.mxu0 %v971
    %1260 = vmatpush1.bf16.msra.mxu0 %v970
    %1261 = vmatprep.subr.bf16.mxu0 %v979
    %1262 = vmatpush1.bf16.msra.mxu0 %v978
    %1263 = vmatprep.mubr.bf16.mxu0 %v339
    %1264 = vmatmul.mubr.bf16.gmra.mrb[0].mxu0 %v338
    %v1265 = vpop.f32.mrb[0].mxu0
    %v1266 = vadd.f32 0.0, %v1265
    %v1267 = vpop.f32.mrb[0].mxu0
    %v1268 = vadd.f32 0.0, %v1267
    %v1269 = vpop.f32.mrb[0].mxu0
    %v1270 = vpop.f32.mrb[0].mxu0
    %1271 = vdwg.mxu0
    %v1273 = vlaneseq
    %v1274 = vshrl.u32 %v1273, 7
    %v1275 = vsub.s32 0, %v1274
    %v1276 = vrot.slane %v309, %v1275
    %v1277 = vlaneseq
    %v1278 = vshrl.u32 %v1277, 7
    %v1279 = vsub.s32 1, %v1278
    %v1280 = vrot.slane %v309, %v1279
    %v1281 = vlaneseq
    %v1282 = vshrl.u32 %v1281, 7
    %v1283 = vsub.s32 2, %v1282
    %v1284 = vrot.slane %v309, %v1283
    %v1285 = vlaneseq
    %v1286 = vshrl.u32 %v1285, 7
    %v1287 = vsub.s32 3, %v1286
    %v1288 = vrot.slane %v309, %v1287
    %v1293 = vadd.f32 %v1143, %v1276
    %v1294 = vadd.f32 %v1145, %v1280
    %v1295 = vadd.f32 %v1184, %v1284
    %v1296 = vadd.f32 %v1186, %v1288
    %v1297 = vxor.u32 %v1293, 2147483648
    %v1298 = vxor.u32 %v1294, 2147483648
    %v1299 = vxor.u32 %v1295, 2147483648
    %v1300 = vmul.f32 %v1297, 1.442695
    %v1301 = vpow.pop %v1300
    %v1302 = vmul.f32 %v1298, 1.442695
    %v1303 = vpow.pop %v1302
    %v1304 = vmul.f32 %v1299, 1.442695
    %v1305 = vpow.pop %v1304
    %v1306 = vadd.f32 %v1301, 1.0
    %v1307 = vadd.f32 %v1303, 1.0
    %v1308 = vadd.f32 %v1305, 1.0
    %v1309 = vrcp.pop %v1306
    %v1310 = vmul.f32 1.0, %v1309
    %v1311 = vrcp.pop %v1307
    %v1312 = vmul.f32 1.0, %v1311
    %v1313 = vrcp.pop %v1308
    %v1314 = vmul.f32 1.0, %v1313
    %v1315 = vtanh.pop %v1296
    %v1316 = vmul.f32 %v1312, 0.0
    %v1317 = vmul.f32 %v1310, %v1315
    %v1318 = vadd.f32 %v1316, %v1317
    %v1319 = vtanh.pop %v1318
    %v1320 = vmul.f32 %v1314, %v1319
    %v1321 = vadd.f32 %v202, %v1225
    %v1322 = vadd.f32 %v204, %v1227
    %v1323 = vadd.f32 %v275, %v1266
    %v1324 = vadd.f32 %v277, %v1268
    %v1325 = vxor.u32 %v1321, 2147483648
    %v1326 = vxor.u32 %v1322, 2147483648
    %v1327 = vxor.u32 %v1323, 2147483648
    %v1328 = vmul.f32 %v1325, 1.442695
    %v1329 = vpow.pop %v1328
    %v1330 = vmul.f32 %v1326, 1.442695
    %v1331 = vpow.pop %v1330
    %v1332 = vmul.f32 %v1327, 1.442695
    %v1333 = vpow.pop %v1332
    %v1334 = vadd.f32 %v1329, 1.0
    %v1335 = vadd.f32 %v1331, 1.0
    %v1336 = vadd.f32 %v1333, 1.0
    %v1337 = vrcp.pop %v1334
    %v1338 = vmul.f32 1.0, %v1337
    %v1339 = vrcp.pop %v1335
    %v1340 = vmul.f32 1.0, %v1339
    %v1341 = vrcp.pop %v1336
    %v1342 = vmul.f32 1.0, %v1341
    %v1343 = vtanh.pop %v1324
    %v1344 = vmul.f32 %v1340, %v335
    %v1345 = vmul.f32 %v1338, %v1343
    %v1346 = vadd.f32 %v1344, %v1345
    %v1347 = vtanh.pop %v1346
    %v1348 = vmul.f32 %v1342, %v1347
    %v1349 = vpack.c.bf16 %v1348, %v1348
    %v1350 = vpack.c.bf16 %v1320, %v1320
    %1351 = vmatprep.subr.bf16.mxu0 %v853
    %1352 = vmatpush1.bf16.msra.mxu0 %v852
    %1353 = vmatprep.subr.bf16.mxu0 %v861
    %1354 = vmatpush1.bf16.msra.mxu0 %v860
    %1355 = vmatprep.subr.bf16.mxu0 %v869
    %1356 = vmatpush1.bf16.msra.mxu0 %v868
    %1357 = vmatprep.subr.bf16.mxu0 %v877
    %1358 = vmatpush1.bf16.msra.mxu0 %v876
    %1359 = vmatprep.subr.bf16.mxu0 %v885
    %1360 = vmatpush1.bf16.msra.mxu0 %v884
    %1361 = vmatprep.subr.bf16.mxu0 %v893
    %1362 = vmatpush1.bf16.msra.mxu0 %v892
    %1363 = vmatprep.subr.bf16.mxu0 %v901
    %1364 = vmatpush1.bf16.msra.mxu0 %v900
    %1365 = vmatprep.subr.bf16.mxu0 %v909
    %1366 = vmatpush1.bf16.msra.mxu0 %v908
    %1367 = vmatprep.subr.bf16.mxu0 %v917
    %1368 = vmatpush1.bf16.msra.mxu0 %v916
    %1369 = vmatprep.subr.bf16.mxu0 %v925
    %1370 = vmatpush1.bf16.msra.mxu0 %v924
    %1371 = vmatprep.subr.bf16.mxu0 %v933
    %1372 = vmatpush1.bf16.msra.mxu0 %v932
    %1373 = vmatprep.subr.bf16.mxu0 %v941
    %1374 = vmatpush1.bf16.msra.mxu0 %v940
    %1375 = vmatprep.subr.bf16.mxu0 %v949
    %1376 = vmatpush1.bf16.msra.mxu0 %v948
    %1377 = vmatprep.subr.bf16.mxu0 %v957
    %1378 = vmatpush1.bf16.msra.mxu0 %v956
    %1379 = vmatprep.subr.bf16.mxu0 %v965
    %1380 = vmatpush1.bf16.msra.mxu0 %v964
    %1381 = vmatprep.subr.bf16.mxu0 %v973
    %1382 = vmatpush1.bf16.msra.mxu0 %v972
    %1383 = vmatprep.mubr.bf16.mxu0 %v1350
    %1384 = vmatmul.mubr.bf16.gmra.mrb[0].mxu0 %v1349
    %v1385 = vpop.f32.mrb[0].mxu0
    %v1386 = vadd.f32 0.0, %v1385
    %v1387 = vpop.f32.mrb[0].mxu0
    %v1388 = vadd.f32 0.0, %v1387
    %v1389 = vpop.f32.mrb[0].mxu0
    %v1390 = vpop.f32.mrb[0].mxu0
    %1391 = vdwg.mxu0
    %1392 = vmatprep.subr.bf16.mxu0 %v855
    %1393 = vmatpush1.bf16.msra.mxu0 %v854
    %1394 = vmatprep.subr.bf16.mxu0 %v863
    %1395 = vmatpush1.bf16.msra.mxu0 %v862
    %1396 = vmatprep.subr.bf16.mxu0 %v871
    %1397 = vmatpush1.bf16.msra.mxu0 %v870
    %1398 = vmatprep.subr.bf16.mxu0 %v879
    %1399 = vmatpush1.bf16.msra.mxu0 %v878
    %1400 = vmatprep.subr.bf16.mxu0 %v887
    %1401 = vmatpush1.bf16.msra.mxu0 %v886
    %1402 = vmatprep.subr.bf16.mxu0 %v895
    %1403 = vmatpush1.bf16.msra.mxu0 %v894
    %1404 = vmatprep.subr.bf16.mxu0 %v903
    %1405 = vmatpush1.bf16.msra.mxu0 %v902
    %1406 = vmatprep.subr.bf16.mxu0 %v911
    %1407 = vmatpush1.bf16.msra.mxu0 %v910
    %1408 = vmatprep.subr.bf16.mxu0 %v919
    %1409 = vmatpush1.bf16.msra.mxu0 %v918
    %1410 = vmatprep.subr.bf16.mxu0 %v927
    %1411 = vmatpush1.bf16.msra.mxu0 %v926
    %1412 = vmatprep.subr.bf16.mxu0 %v935
    %1413 = vmatpush1.bf16.msra.mxu0 %v934
    %1414 = vmatprep.subr.bf16.mxu0 %v943
    %1415 = vmatpush1.bf16.msra.mxu0 %v942
    %1416 = vmatprep.subr.bf16.mxu0 %v951
    %1417 = vmatpush1.bf16.msra.mxu0 %v950
    %1418 = vmatprep.subr.bf16.mxu0 %v959
    %1419 = vmatpush1.bf16.msra.mxu0 %v958
    %1420 = vmatprep.subr.bf16.mxu0 %v967
    %1421 = vmatpush1.bf16.msra.mxu0 %v966
    %1422 = vmatprep.subr.bf16.mxu0 %v975
    %1423 = vmatpush1.bf16.msra.mxu0 %v974
    %1424 = vmatprep.mubr.bf16.mxu0 %v1350
    %1425 = vmatmul.mubr.bf16.gmra.mrb[0].mxu0 %v1349
    %v1426 = vpop.f32.mrb[0].mxu0
    %v1427 = vadd.f32 0.0, %v1426
    %v1428 = vpop.f32.mrb[0].mxu0
    %v1429 = vadd.f32 0.0, %v1428
    %v1430 = vpop.f32.mrb[0].mxu0
    %v1431 = vpop.f32.mrb[0].mxu0
    %1432 = vdwg.mxu0
    %1433 = vmatprep.subr.bf16.mxu0 %v857
    %1434 = vmatpush1.bf16.msra.mxu0 %v856
    %1435 = vmatprep.subr.bf16.mxu0 %v865
    %1436 = vmatpush1.bf16.msra.mxu0 %v864
    %1437 = vmatprep.subr.bf16.mxu0 %v873
    %1438 = vmatpush1.bf16.msra.mxu0 %v872
    %1439 = vmatprep.subr.bf16.mxu0 %v881
    %1440 = vmatpush1.bf16.msra.mxu0 %v880
    %1441 = vmatprep.subr.bf16.mxu0 %v889
    %1442 = vmatpush1.bf16.msra.mxu0 %v888
    %1443 = vmatprep.subr.bf16.mxu0 %v897
    %1444 = vmatpush1.bf16.msra.mxu0 %v896
    %1445 = vmatprep.subr.bf16.mxu0 %v905
    %1446 = vmatpush1.bf16.msra.mxu0 %v904
    %1447 = vmatprep.subr.bf16.mxu0 %v913
    %1448 = vmatpush1.bf16.msra.mxu0 %v912
    %1449 = vmatprep.subr.bf16.mxu0 %v921
    %1450 = vmatpush1.bf16.msra.mxu0 %v920
    %1451 = vmatprep.subr.bf16.mxu0 %v929
    %1452 = vmatpush1.bf16.msra.mxu0 %v928
    %1453 = vmatprep.subr.bf16.mxu0 %v937
    %1454 = vmatpush1.bf16.msra.mxu0 %v936
    %1455 = vmatprep.subr.bf16.mxu0 %v945
    %1456 = vmatpush1.bf16.msra.mxu0 %v944
    %1457 = vmatprep.subr.bf16.mxu0 %v953
    %1458 = vmatpush1.bf16.msra.mxu0 %v952
    %1459 = vmatprep.subr.bf16.mxu0 %v961
    %1460 = vmatpush1.bf16.msra.mxu0 %v960
    %1461 = vmatprep.subr.bf16.mxu0 %v969
    %1462 = vmatpush1.bf16.msra.mxu0 %v968
    %1463 = vmatprep.subr.bf16.mxu0 %v977
    %1464 = vmatpush1.bf16.msra.mxu0 %v976
    %1465 = vmatprep.mubr.bf16.mxu0 %v1350
    %1466 = vmatmul.mubr.bf16.gmra.mrb[0].mxu0 %v1349
    %v1467 = vpop.f32.mrb[0].mxu0
    %v1468 = vadd.f32 0.0, %v1467
    %v1469 = vpop.f32.mrb[0].mxu0
    %v1470 = vadd.f32 0.0, %v1469
    %v1471 = vpop.f32.mrb[0].mxu0
    %v1472 = vpop.f32.mrb[0].mxu0
    %1473 = vdwg.mxu0
    %1474 = vmatprep.subr.bf16.mxu0 %v859
    %1475 = vmatpush1.bf16.msra.mxu0 %v858
    %1476 = vmatprep.subr.bf16.mxu0 %v867
    %1477 = vmatpush1.bf16.msra.mxu0 %v866
    %1478 = vmatprep.subr.bf16.mxu0 %v875
    %1479 = vmatpush1.bf16.msra.mxu0 %v874
    %1480 = vmatprep.subr.bf16.mxu0 %v883
    %1481 = vmatpush1.bf16.msra.mxu0 %v882
    %1482 = vmatprep.subr.bf16.mxu0 %v891
    %1483 = vmatpush1.bf16.msra.mxu0 %v890
    %1484 = vmatprep.subr.bf16.mxu0 %v899
    %1485 = vmatpush1.bf16.msra.mxu0 %v898
    %1486 = vmatprep.subr.bf16.mxu0 %v907
    %1487 = vmatpush1.bf16.msra.mxu0 %v906
    %1488 = vmatprep.subr.bf16.mxu0 %v915
    %1489 = vmatpush1.bf16.msra.mxu0 %v914
    %1490 = vmatprep.subr.bf16.mxu0 %v923
    %1491 = vmatpush1.bf16.msra.mxu0 %v922
    %1492 = vmatprep.subr.bf16.mxu0 %v931
    %1493 = vmatpush1.bf16.msra.mxu0 %v930
    %1494 = vmatprep.subr.bf16.mxu0 %v939
    %1495 = vmatpush1.bf16.msra.mxu0 %v938
    %1496 = vmatprep.subr.bf16.mxu0 %v947
    %1497 = vmatpush1.bf16.msra.mxu0 %v946
    %1498 = vmatprep.subr.bf16.mxu0 %v955
    %1499 = vmatpush1.bf16.msra.mxu0 %v954
    %1500 = vmatprep.subr.bf16.mxu0 %v963
    %1501 = vmatpush1.bf16.msra.mxu0 %v962
    %1502 = vmatprep.subr.bf16.mxu0 %v971
    %1503 = vmatpush1.bf16.msra.mxu0 %v970
    %1504 = vmatprep.subr.bf16.mxu0 %v979
    %1505 = vmatpush1.bf16.msra.mxu0 %v978
    %1506 = vmatprep.mubr.bf16.mxu0 %v1350
    %1507 = vmatmul.mubr.bf16.gmra.mrb[0].mxu0 %v1349
    %v1508 = vpop.f32.mrb[0].mxu0
    %v1509 = vadd.f32 0.0, %v1508
    %v1510 = vpop.f32.mrb[0].mxu0
    %v1511 = vadd.f32 0.0, %v1510
    %v1512 = vpop.f32.mrb[0].mxu0
    %v1513 = vpop.f32.mrb[0].mxu0
    %1514 = vdwg.mxu0
    %v1515 = vadd.f32 %v1386, %v1276
    %v1516 = vadd.f32 %v1388, %v1280
    %v1517 = vadd.f32 %v1427, %v1284
    %v1518 = vadd.f32 %v1429, %v1288
    %v1519 = vxor.u32 %v1515, 2147483648
    %v1520 = vxor.u32 %v1516, 2147483648
    %v1521 = vxor.u32 %v1517, 2147483648
    %v1522 = vmul.f32 %v1519, 1.442695
    %v1523 = vpow.pop %v1522
    %v1524 = vmul.f32 %v1520, 1.442695
    %v1525 = vpow.pop %v1524
    %v1526 = vmul.f32 %v1521, 1.442695
    %v1527 = vpow.pop %v1526
    %v1528 = vadd.f32 %v1523, 1.0
    %v1529 = vadd.f32 %v1525, 1.0
    %v1530 = vadd.f32 %v1527, 1.0
    %v1531 = vrcp.pop %v1528
    %v1532 = vmul.f32 1.0, %v1531
    %v1533 = vrcp.pop %v1529
    %v1534 = vmul.f32 1.0, %v1533
    %v1535 = vrcp.pop %v1530
    %v1536 = vmul.f32 1.0, %v1535
    %v1537 = vtanh.pop %v1518
    %v1538 = vmul.f32 %v1534, %v1318
    %v1539 = vmul.f32 %v1532, %v1537
    %v1540 = vadd.f32 %v1538, %v1539
    %v1541 = vtanh.pop %v1540
    %v1542 = vmul.f32 %v1536, %v1541
    %v1543 = vadd.f32 %v208, %v1468
    %v1544 = vadd.f32 %v210, %v1470
    %v1545 = vadd.f32 %v281, %v1509
    %v1546 = vadd.f32 %v283, %v1511
    %v1547 = vxor.u32 %v1543, 2147483648
    %v1548 = vxor.u32 %v1544, 2147483648
    %v1549 = vxor.u32 %v1545, 2147483648
    %v1550 = vmul.f32 %v1547, 1.442695
    %v1551 = vpow.pop %v1550
    %v1552 = vmul.f32 %v1548, 1.442695
    %v1553 = vpow.pop %v1552
    %v1554 = vmul.f32 %v1549, 1.442695
    %v1555 = vpow.pop %v1554
    %v1556 = vadd.f32 %v1551, 1.0
    %v1557 = vadd.f32 %v1553, 1.0
    %v1558 = vadd.f32 %v1555, 1.0
    %v1559 = vrcp.pop %v1556
    %v1560 = vmul.f32 1.0, %v1559
    %v1561 = vrcp.pop %v1557
    %v1562 = vmul.f32 1.0, %v1561
    %v1563 = vrcp.pop %v1558
    %v1564 = vmul.f32 1.0, %v1563
    %v1565 = vtanh.pop %v1546
    %v1566 = vmul.f32 %v1562, %v1346
    %v1567 = vmul.f32 %v1560, %v1565
    %v1568 = vadd.f32 %v1566, %v1567
    %v1569 = vtanh.pop %v1568
    %v1570 = vmul.f32 %v1564, %v1569
    %v1571 = vpack.c.bf16 %v1570, %v1570
    %v1572 = vpack.c.bf16 %v1542, %v1542
    %1573 = vmatprep.subr.bf16.mxu0 %v853
    %1574 = vmatpush1.bf16.msra.mxu0 %v852
    %1575 = vmatprep.subr.bf16.mxu0 %v861
    %1576 = vmatpush1.bf16.msra.mxu0 %v860
    %1577 = vmatprep.subr.bf16.mxu0 %v869
    %1578 = vmatpush1.bf16.msra.mxu0 %v868
    %1579 = vmatprep.subr.bf16.mxu0 %v877
    %1580 = vmatpush1.bf16.msra.mxu0 %v876
    %1581 = vmatprep.subr.bf16.mxu0 %v885
    %1582 = vmatpush1.bf16.msra.mxu0 %v884
    %1583 = vmatprep.subr.bf16.mxu0 %v893
    %1584 = vmatpush1.bf16.msra.mxu0 %v892
    %1585 = vmatprep.subr.bf16.mxu0 %v901
    %1586 = vmatpush1.bf16.msra.mxu0 %v900
    %1587 = vmatprep.subr.bf16.mxu0 %v909
    %1588 = vmatpush1.bf16.msra.mxu0 %v908
    %1589 = vmatprep.subr.bf16.mxu0 %v917
    %1590 = vmatpush1.bf16.msra.mxu0 %v916
    %1591 = vmatprep.subr.bf16.mxu0 %v925
    %1592 = vmatpush1.bf16.msra.mxu0 %v924
    %1593 = vmatprep.subr.bf16.mxu0 %v933
    %1594 = vmatpush1.bf16.msra.mxu0 %v932
    %1595 = vmatprep.subr.bf16.mxu0 %v941
    %1596 = vmatpush1.bf16.msra.mxu0 %v940
    %1597 = vmatprep.subr.bf16.mxu0 %v949
    %1598 = vmatpush1.bf16.msra.mxu0 %v948
    %1599 = vmatprep.subr.bf16.mxu0 %v957
    %1600 = vmatpush1.bf16.msra.mxu0 %v956
    %1601 = vmatprep.subr.bf16.mxu0 %v965
    %1602 = vmatpush1.bf16.msra.mxu0 %v964
    %1603 = vmatprep.subr.bf16.mxu0 %v973
    %1604 = vmatpush1.bf16.msra.mxu0 %v972
    %1605 = vmatprep.mubr.bf16.mxu0 %v1572
    %1606 = vmatmul.mubr.bf16.gmra.mrb[0].mxu0 %v1571
    %v1607 = vpop.f32.mrb[0].mxu0
    %v1608 = vadd.f32 0.0, %v1607
    %v1609 = vpop.f32.mrb[0].mxu0
    %v1610 = vadd.f32 0.0, %v1609
    %v1611 = vpop.f32.mrb[0].mxu0
    %v1612 = vpop.f32.mrb[0].mxu0
    %1613 = vdwg.mxu0
    %1614 = vmatprep.subr.bf16.mxu0 %v855
    %1615 = vmatpush1.bf16.msra.mxu0 %v854
    %1616 = vmatprep.subr.bf16.mxu0 %v863
    %1617 = vmatpush1.bf16.msra.mxu0 %v862
    %1618 = vmatprep.subr.bf16.mxu0 %v871
    %1619 = vmatpush1.bf16.msra.mxu0 %v870
    %1620 = vmatprep.subr.bf16.mxu0 %v879
    %1621 = vmatpush1.bf16.msra.mxu0 %v878
    %1622 = vmatprep.subr.bf16.mxu0 %v887
    %1623 = vmatpush1.bf16.msra.mxu0 %v886
    %1624 = vmatprep.subr.bf16.mxu0 %v895
    %1625 = vmatpush1.bf16.msra.mxu0 %v894
    %1626 = vmatprep.subr.bf16.mxu0 %v903
    %1627 = vmatpush1.bf16.msra.mxu0 %v902
    %1628 = vmatprep.subr.bf16.mxu0 %v911
    %1629 = vmatpush1.bf16.msra.mxu0 %v910
    %1630 = vmatprep.subr.bf16.mxu0 %v919
    %1631 = vmatpush1.bf16.msra.mxu0 %v918
    %1632 = vmatprep.subr.bf16.mxu0 %v927
    %1633 = vmatpush1.bf16.msra.mxu0 %v926
    %1634 = vmatprep.subr.bf16.mxu0 %v935
    %1635 = vmatpush1.bf16.msra.mxu0 %v934
    %1636 = vmatprep.subr.bf16.mxu0 %v943
    %1637 = vmatpush1.bf16.msra.mxu0 %v942
    %1638 = vmatprep.subr.bf16.mxu0 %v951
    %1639 = vmatpush1.bf16.msra.mxu0 %v950
    %1640 = vmatprep.subr.bf16.mxu0 %v959
    %1641 = vmatpush1.bf16.msra.mxu0 %v958
    %1642 = vmatprep.subr.bf16.mxu0 %v967
    %1643 = vmatpush1.bf16.msra.mxu0 %v966
    %1644 = vmatprep.subr.bf16.mxu0 %v975
    %1645 = vmatpush1.bf16.msra.mxu0 %v974
    %1646 = vmatprep.mubr.bf16.mxu0 %v1572
    %1647 = vmatmul.mubr.bf16.gmra.mrb[0].mxu0 %v1571
    %v1648 = vpop.f32.mrb[0].mxu0
    %v1649 = vadd.f32 0.0, %v1648
    %v1650 = vpop.f32.mrb[0].mxu0
    %v1651 = vadd.f32 0.0, %v1650
    %v1652 = vpop.f32.mrb[0].mxu0
    %v1653 = vpop.f32.mrb[0].mxu0
    %1654 = vdwg.mxu0
    %1655 = vmatprep.subr.bf16.mxu0 %v857
    %1656 = vmatpush1.bf16.msra.mxu0 %v856
    %1657 = vmatprep.subr.bf16.mxu0 %v865
    %1658 = vmatpush1.bf16.msra.mxu0 %v864
    %1659 = vmatprep.subr.bf16.mxu0 %v873
    %1660 = vmatpush1.bf16.msra.mxu0 %v872
    %1661 = vmatprep.subr.bf16.mxu0 %v881
    %1662 = vmatpush1.bf16.msra.mxu0 %v880
    %1663 = vmatprep.subr.bf16.mxu0 %v889
    %1664 = vmatpush1.bf16.msra.mxu0 %v888
    %1665 = vmatprep.subr.bf16.mxu0 %v897
    %1666 = vmatpush1.bf16.msra.mxu0 %v896
    %1667 = vmatprep.subr.bf16.mxu0 %v905
    %1668 = vmatpush1.bf16.msra.mxu0 %v904
    %1669 = vmatprep.subr.bf16.mxu0 %v913
    %1670 = vmatpush1.bf16.msra.mxu0 %v912
    %1671 = vmatprep.subr.bf16.mxu0 %v921
    %1672 = vmatpush1.bf16.msra.mxu0 %v920
    %1673 = vmatprep.subr.bf16.mxu0 %v929
    %1674 = vmatpush1.bf16.msra.mxu0 %v928
    %1675 = vmatprep.subr.bf16.mxu0 %v937
    %1676 = vmatpush1.bf16.msra.mxu0 %v936
    %1677 = vmatprep.subr.bf16.mxu0 %v945
    %1678 = vmatpush1.bf16.msra.mxu0 %v944
    %1679 = vmatprep.subr.bf16.mxu0 %v953
    %1680 = vmatpush1.bf16.msra.mxu0 %v952
    %1681 = vmatprep.subr.bf16.mxu0 %v961
    %1682 = vmatpush1.bf16.msra.mxu0 %v960
    %1683 = vmatprep.subr.bf16.mxu0 %v969
    %1684 = vmatpush1.bf16.msra.mxu0 %v968
    %1685 = vmatprep.subr.bf16.mxu0 %v977
    %1686 = vmatpush1.bf16.msra.mxu0 %v976
    %1687 = vmatprep.mubr.bf16.mxu0 %v1572
    %1688 = vmatmul.mubr.bf16.gmra.mrb[0].mxu0 %v1571
    %v1689 = vpop.f32.mrb[0].mxu0
    %v1690 = vadd.f32 0.0, %v1689
    %v1691 = vpop.f32.mrb[0].mxu0
    %v1692 = vadd.f32 0.0, %v1691
    %v1693 = vpop.f32.mrb[0].mxu0
    %v1694 = vpop.f32.mrb[0].mxu0
    %1695 = vdwg.mxu0
    %1696 = vmatprep.subr.bf16.mxu0 %v859
    %1697 = vmatpush1.bf16.msra.mxu0 %v858
    %1698 = vmatprep.subr.bf16.mxu0 %v867
    %1699 = vmatpush1.bf16.msra.mxu0 %v866
    %1700 = vmatprep.subr.bf16.mxu0 %v875
    %1701 = vmatpush1.bf16.msra.mxu0 %v874
    %1702 = vmatprep.subr.bf16.mxu0 %v883
    %1703 = vmatpush1.bf16.msra.mxu0 %v882
    %1704 = vmatprep.subr.bf16.mxu0 %v891
    %1705 = vmatpush1.bf16.msra.mxu0 %v890
    %1706 = vmatprep.subr.bf16.mxu0 %v899
    %1707 = vmatpush1.bf16.msra.mxu0 %v898
    %1708 = vmatprep.subr.bf16.mxu0 %v907
    %1709 = vmatpush1.bf16.msra.mxu0 %v906
    %1710 = vmatprep.subr.bf16.mxu0 %v915
    %1711 = vmatpush1.bf16.msra.mxu0 %v914
    %1712 = vmatprep.subr.bf16.mxu0 %v923
    %1713 = vmatpush1.bf16.msra.mxu0 %v922
    %1714 = vmatprep.subr.bf16.mxu0 %v931
    %1715 = vmatpush1.bf16.msra.mxu0 %v930
    %1716 = vmatprep.subr.bf16.mxu0 %v939
    %1717 = vmatpush1.bf16.msra.mxu0 %v938
    %1718 = vmatprep.subr.bf16.mxu0 %v947
    %1719 = vmatpush1.bf16.msra.mxu0 %v946
    %1720 = vmatprep.subr.bf16.mxu0 %v955
    %1721 = vmatpush1.bf16.msra.mxu0 %v954
    %1722 = vmatprep.subr.bf16.mxu0 %v963
    %1723 = vmatpush1.bf16.msra.mxu0 %v962
    %1724 = vmatprep.subr.bf16.mxu0 %v971
    %1725 = vmatpush1.bf16.msra.mxu0 %v970
    %1726 = vmatprep.subr.bf16.mxu0 %v979
    %1727 = vmatpush1.bf16.msra.mxu0 %v978
    %1728 = vmatprep.mubr.bf16.mxu0 %v1572
    %1729 = vmatmul.mubr.bf16.gmra.mrb[0].mxu0 %v1571
    %v1730 = vpop.f32.mrb[0].mxu0
    %v1731 = vadd.f32 0.0, %v1730
    %v1732 = vpop.f32.mrb[0].mxu0
    %v1733 = vadd.f32 0.0, %v1732
    %v1734 = vpop.f32.mrb[0].mxu0
    %v1735 = vpop.f32.mrb[0].mxu0
    %1736 = vdwg.mxu0
    %v1737 = vadd.f32 %v1608, %v1276
    %v1738 = vadd.f32 %v1610, %v1280
    %v1739 = vadd.f32 %v1649, %v1284
    %v1740 = vadd.f32 %v1651, %v1288
    %v1741 = vxor.u32 %v1737, 2147483648
    %v1742 = vxor.u32 %v1738, 2147483648
    %v1743 = vxor.u32 %v1739, 2147483648
    %v1744 = vmul.f32 %v1741, 1.442695
    %v1745 = vpow.pop %v1744
    %v1746 = vmul.f32 %v1742, 1.442695
    %v1747 = vpow.pop %v1746
    %v1748 = vmul.f32 %v1743, 1.442695
    %v1749 = vpow.pop %v1748
    %v1750 = vadd.f32 %v1745, 1.0
    %v1751 = vadd.f32 %v1747, 1.0
    %v1752 = vadd.f32 %v1749, 1.0
    %v1753 = vrcp.pop %v1750
    %v1754 = vmul.f32 1.0, %v1753
    %v1755 = vrcp.pop %v1751
    %v1756 = vmul.f32 1.0, %v1755
    %v1757 = vrcp.pop %v1752
    %v1758 = vmul.f32 1.0, %v1757
    %v1759 = vtanh.pop %v1740
    %v1760 = vmul.f32 %v1756, %v1540
    %v1761 = vmul.f32 %v1754, %v1759
    %v1762 = vadd.f32 %v1760, %v1761
    %v1763 = vtanh.pop %v1762
    %v1764 = vmul.f32 %v1758, %v1763
    %v1765 = vadd.f32 %v212, %v1690
    %v1766 = vadd.f32 %v214, %v1692
    %v1767 = vadd.f32 %v285, %v1731
    %v1768 = vadd.f32 %v287, %v1733
    %v1769 = vxor.u32 %v1765, 2147483648
    %v1770 = vxor.u32 %v1766, 2147483648
    %v1771 = vxor.u32 %v1767, 2147483648
    %v1772 = vmul.f32 %v1769, 1.442695
    %v1773 = vpow.pop %v1772
    %v1774 = vmul.f32 %v1770, 1.442695
    %v1775 = vpow.pop %v1774
    %v1776 = vmul.f32 %v1771, 1.442695
    %v1777 = vpow.pop %v1776
    %v1778 = vadd.f32 %v1773, 1.0
    %v1779 = vadd.f32 %v1775, 1.0
    %v1780 = vadd.f32 %v1777, 1.0
    %v1781 = vrcp.pop %v1778
    %v1782 = vmul.f32 1.0, %v1781
    %v1783 = vrcp.pop %v1779
    %v1784 = vmul.f32 1.0, %v1783
    %v1785 = vrcp.pop %v1780
    %v1786 = vmul.f32 1.0, %v1785
    %v1787 = vtanh.pop %v1768
    %v1788 = vmul.f32 %v1784, %v1568
    %v1789 = vmul.f32 %v1782, %v1787
    %v1790 = vadd.f32 %v1788, %v1789
    %v1791 = vtanh.pop %v1790
    %v1792 = vmul.f32 %v1786, %v1791
    %v1793 = vpack.c.bf16 %v1792, %v1792
    %v1794 = vpack.c.bf16 %v1764, %v1764
    %1795 = vmatprep.subr.bf16.mxu0 %v853
    %1796 = vmatpush1.bf16.msra.mxu0 %v852
    %1797 = vmatprep.subr.bf16.mxu0 %v861
    %1798 = vmatpush1.bf16.msra.mxu0 %v860
    %1799 = vmatprep.subr.bf16.mxu0 %v869
    %1800 = vmatpush1.bf16.msra.mxu0 %v868
    %1801 = vmatprep.subr.bf16.mxu0 %v877
    %1802 = vmatpush1.bf16.msra.mxu0 %v876
    %1803 = vmatprep.subr.bf16.mxu0 %v885
    %1804 = vmatpush1.bf16.msra.mxu0 %v884
    %1805 = vmatprep.subr.bf16.mxu0 %v893
    %1806 = vmatpush1.bf16.msra.mxu0 %v892
    %1807 = vmatprep.subr.bf16.mxu0 %v901
    %1808 = vmatpush1.bf16.msra.mxu0 %v900
    %1809 = vmatprep.subr.bf16.mxu0 %v909
    %1810 = vmatpush1.bf16.msra.mxu0 %v908
    %1811 = vmatprep.subr.bf16.mxu0 %v917
    %1812 = vmatpush1.bf16.msra.mxu0 %v916
    %1813 = vmatprep.subr.bf16.mxu0 %v925
    %1814 = vmatpush1.bf16.msra.mxu0 %v924
    %1815 = vmatprep.subr.bf16.mxu0 %v933
    %1816 = vmatpush1.bf16.msra.mxu0 %v932
    %1817 = vmatprep.subr.bf16.mxu0 %v941
    %1818 = vmatpush1.bf16.msra.mxu0 %v940
    %1819 = vmatprep.subr.bf16.mxu0 %v949
    %1820 = vmatpush1.bf16.msra.mxu0 %v948
    %1821 = vmatprep.subr.bf16.mxu0 %v957
    %1822 = vmatpush1.bf16.msra.mxu0 %v956
    %1823 = vmatprep.subr.bf16.mxu0 %v965
    %1824 = vmatpush1.bf16.msra.mxu0 %v964
    %1825 = vmatprep.subr.bf16.mxu0 %v973
    %1826 = vmatpush1.bf16.msra.mxu0 %v972
    %1827 = vmatprep.mubr.bf16.mxu0 %v1794
    %1828 = vmatmul.mubr.bf16.gmra.mrb[0].mxu0 %v1793
    %v1829 = vpop.f32.mrb[0].mxu0
    %v1830 = vadd.f32 0.0, %v1829
    %v1831 = vpop.f32.mrb[0].mxu0
    %v1832 = vadd.f32 0.0, %v1831
    %v1833 = vpop.f32.mrb[0].mxu0
    %v1834 = vpop.f32.mrb[0].mxu0
    %1835 = vdwg.mxu0
    %1836 = vmatprep.subr.bf16.mxu0 %v855
    %1837 = vmatpush1.bf16.msra.mxu0 %v854
    %1838 = vmatprep.subr.bf16.mxu0 %v863
    %1839 = vmatpush1.bf16.msra.mxu0 %v862
    %1840 = vmatprep.subr.bf16.mxu0 %v871
    %1841 = vmatpush1.bf16.msra.mxu0 %v870
    %1842 = vmatprep.subr.bf16.mxu0 %v879
    %1843 = vmatpush1.bf16.msra.mxu0 %v878
    %1844 = vmatprep.subr.bf16.mxu0 %v887
    %1845 = vmatpush1.bf16.msra.mxu0 %v886
    %1846 = vmatprep.subr.bf16.mxu0 %v895
    %1847 = vmatpush1.bf16.msra.mxu0 %v894
    %1848 = vmatprep.subr.bf16.mxu0 %v903
    %1849 = vmatpush1.bf16.msra.mxu0 %v902
    %1850 = vmatprep.subr.bf16.mxu0 %v911
    %1851 = vmatpush1.bf16.msra.mxu0 %v910
    %1852 = vmatprep.subr.bf16.mxu0 %v919
    %1853 = vmatpush1.bf16.msra.mxu0 %v918
    %1854 = vmatprep.subr.bf16.mxu0 %v927
    %1855 = vmatpush1.bf16.msra.mxu0 %v926
    %1856 = vmatprep.subr.bf16.mxu0 %v935
    %1857 = vmatpush1.bf16.msra.mxu0 %v934
    %1858 = vmatprep.subr.bf16.mxu0 %v943
    %1859 = vmatpush1.bf16.msra.mxu0 %v942
    %1860 = vmatprep.subr.bf16.mxu0 %v951
    %1861 = vmatpush1.bf16.msra.mxu0 %v950
    %1862 = vmatprep.subr.bf16.mxu0 %v959
    %1863 = vmatpush1.bf16.msra.mxu0 %v958
    %1864 = vmatprep.subr.bf16.mxu0 %v967
    %1865 = vmatpush1.bf16.msra.mxu0 %v966
    %1866 = vmatprep.subr.bf16.mxu0 %v975
    %1867 = vmatpush1.bf16.msra.mxu0 %v974
    %1868 = vmatprep.mubr.bf16.mxu0 %v1794
    %1869 = vmatmul.mubr.bf16.gmra.mrb[0].mxu0 %v1793
    %v1870 = vpop.f32.mrb[0].mxu0
    %v1871 = vadd.f32 0.0, %v1870
    %v1872 = vpop.f32.mrb[0].mxu0
    %v1873 = vadd.f32 0.0, %v1872
    %v1874 = vpop.f32.mrb[0].mxu0
    %v1875 = vpop.f32.mrb[0].mxu0
    %1876 = vdwg.mxu0
    %1877 = vmatprep.subr.bf16.mxu0 %v857
    %1878 = vmatpush1.bf16.msra.mxu0 %v856
    %1879 = vmatprep.subr.bf16.mxu0 %v865
    %1880 = vmatpush1.bf16.msra.mxu0 %v864
    %1881 = vmatprep.subr.bf16.mxu0 %v873
    %1882 = vmatpush1.bf16.msra.mxu0 %v872
    %1883 = vmatprep.subr.bf16.mxu0 %v881
    %1884 = vmatpush1.bf16.msra.mxu0 %v880
    %1885 = vmatprep.subr.bf16.mxu0 %v889
    %1886 = vmatpush1.bf16.msra.mxu0 %v888
    %1887 = vmatprep.subr.bf16.mxu0 %v897
    %1888 = vmatpush1.bf16.msra.mxu0 %v896
    %1889 = vmatprep.subr.bf16.mxu0 %v905
    %1890 = vmatpush1.bf16.msra.mxu0 %v904
    %1891 = vmatprep.subr.bf16.mxu0 %v913
    %1892 = vmatpush1.bf16.msra.mxu0 %v912
    %1893 = vmatprep.subr.bf16.mxu0 %v921
    %1894 = vmatpush1.bf16.msra.mxu0 %v920
    %1895 = vmatprep.subr.bf16.mxu0 %v929
    %1896 = vmatpush1.bf16.msra.mxu0 %v928
    %1897 = vmatprep.subr.bf16.mxu0 %v937
    %1898 = vmatpush1.bf16.msra.mxu0 %v936
    %1899 = vmatprep.subr.bf16.mxu0 %v945
    %1900 = vmatpush1.bf16.msra.mxu0 %v944
    %1901 = vmatprep.subr.bf16.mxu0 %v953
    %1902 = vmatpush1.bf16.msra.mxu0 %v952
    %1903 = vmatprep.subr.bf16.mxu0 %v961
    %1904 = vmatpush1.bf16.msra.mxu0 %v960
    %1905 = vmatprep.subr.bf16.mxu0 %v969
    %1906 = vmatpush1.bf16.msra.mxu0 %v968
    %1907 = vmatprep.subr.bf16.mxu0 %v977
    %1908 = vmatpush1.bf16.msra.mxu0 %v976
    %1909 = vmatprep.mubr.bf16.mxu0 %v1794
    %1910 = vmatmul.mubr.bf16.gmra.mrb[0].mxu0 %v1793
    %v1911 = vpop.f32.mrb[0].mxu0
    %v1912 = vadd.f32 0.0, %v1911
    %v1913 = vpop.f32.mrb[0].mxu0
    %v1914 = vadd.f32 0.0, %v1913
    %v1915 = vpop.f32.mrb[0].mxu0
    %v1916 = vpop.f32.mrb[0].mxu0
    %1917 = vdwg.mxu0
    %1918 = vmatprep.subr.bf16.mxu0 %v859
    %1919 = vmatpush1.bf16.msra.mxu0 %v858
    %1920 = vmatprep.subr.bf16.mxu0 %v867
    %1921 = vmatpush1.bf16.msra.mxu0 %v866
    %1922 = vmatprep.subr.bf16.mxu0 %v875
    %1923 = vmatpush1.bf16.msra.mxu0 %v874
    %1924 = vmatprep.subr.bf16.mxu0 %v883
    %1925 = vmatpush1.bf16.msra.mxu0 %v882
    %1926 = vmatprep.subr.bf16.mxu0 %v891
    %1927 = vmatpush1.bf16.msra.mxu0 %v890
    %1928 = vmatprep.subr.bf16.mxu0 %v899
    %1929 = vmatpush1.bf16.msra.mxu0 %v898
    %1930 = vmatprep.subr.bf16.mxu0 %v907
    %1931 = vmatpush1.bf16.msra.mxu0 %v906
    %1932 = vmatprep.subr.bf16.mxu0 %v915
    %1933 = vmatpush1.bf16.msra.mxu0 %v914
    %1934 = vmatprep.subr.bf16.mxu0 %v923
    %1935 = vmatpush1.bf16.msra.mxu0 %v922
    %1936 = vmatprep.subr.bf16.mxu0 %v931
    %1937 = vmatpush1.bf16.msra.mxu0 %v930
    %1938 = vmatprep.subr.bf16.mxu0 %v939
    %1939 = vmatpush1.bf16.msra.mxu0 %v938
    %1940 = vmatprep.subr.bf16.mxu0 %v947
    %1941 = vmatpush1.bf16.msra.mxu0 %v946
    %1942 = vmatprep.subr.bf16.mxu0 %v955
    %1943 = vmatpush1.bf16.msra.mxu0 %v954
    %1944 = vmatprep.subr.bf16.mxu0 %v963
    %1945 = vmatpush1.bf16.msra.mxu0 %v962
    %1946 = vmatprep.subr.bf16.mxu0 %v971
    %1947 = vmatpush1.bf16.msra.mxu0 %v970
    %1948 = vmatprep.subr.bf16.mxu0 %v979
    %1949 = vmatpush1.bf16.msra.mxu0 %v978
    %1950 = vmatprep.mubr.bf16.mxu0 %v1794
    %1951 = vmatmul.mubr.bf16.gmra.mrb[0].mxu0 %v1793
    %v1952 = vpop.f32.mrb[0].mxu0
    %v1953 = vadd.f32 0.0, %v1952
    %v1954 = vpop.f32.mrb[0].mxu0
    %v1955 = vadd.f32 0.0, %v1954
    %v1956 = vpop.f32.mrb[0].mxu0
    %v1957 = vpop.f32.mrb[0].mxu0
    %1958 = vdwg.mxu0
    %v1959 = vadd.f32 %v1830, %v1276
    %v1960 = vadd.f32 %v1832, %v1280
    %v1961 = vadd.f32 %v1871, %v1284
    %v1962 = vadd.f32 %v1873, %v1288
    %v1963 = vxor.u32 %v1959, 2147483648
    %v1964 = vxor.u32 %v1960, 2147483648
    %v1965 = vxor.u32 %v1961, 2147483648
    %v1966 = vmul.f32 %v1963, 1.442695
    %v1967 = vpow.pop %v1966
    %v1968 = vmul.f32 %v1964, 1.442695
    %v1969 = vpow.pop %v1968
    %v1970 = vmul.f32 %v1965, 1.442695
    %v1971 = vpow.pop %v1970
    %v1972 = vadd.f32 %v1967, 1.0
    %v1973 = vadd.f32 %v1969, 1.0
    %v1974 = vadd.f32 %v1971, 1.0
    %v1975 = vrcp.pop %v1972
    %v1976 = vmul.f32 1.0, %v1975
    %v1977 = vrcp.pop %v1973
    %v1978 = vmul.f32 1.0, %v1977
    %v1979 = vrcp.pop %v1974
    %v1980 = vmul.f32 1.0, %v1979
    %v1981 = vtanh.pop %v1962
    %v1982 = vmul.f32 %v1978, %v1762
    %v1983 = vmul.f32 %v1976, %v1981
    %v1984 = vadd.f32 %v1982, %v1983
    %v1985 = vtanh.pop %v1984
    %v1986 = vmul.f32 %v1980, %v1985
    %v1987 = vadd.f32 %v218, %v1912
    %v1988 = vadd.f32 %v220, %v1914
    %v1989 = vadd.f32 %v291, %v1953
    %v1990 = vadd.f32 %v293, %v1955
    %v1991 = vxor.u32 %v1987, 2147483648
    %v1992 = vxor.u32 %v1988, 2147483648
    %v1993 = vxor.u32 %v1989, 2147483648
    %v1994 = vmul.f32 %v1991, 1.442695
    %v1995 = vpow.pop %v1994
    %v1996 = vmul.f32 %v1992, 1.442695
    %v1997 = vpow.pop %v1996
    %v1998 = vmul.f32 %v1993, 1.442695
    %v1999 = vpow.pop %v1998
    %v2000 = vadd.f32 %v1995, 1.0
    %v2001 = vadd.f32 %v1997, 1.0
    %v2002 = vadd.f32 %v1999, 1.0
    %v2003 = vrcp.pop %v2000
    %v2004 = vmul.f32 1.0, %v2003
    %v2005 = vrcp.pop %v2001
    %v2006 = vmul.f32 1.0, %v2005
    %v2007 = vrcp.pop %v2002
    %v2008 = vmul.f32 1.0, %v2007
    %v2009 = vtanh.pop %v1990
    %v2010 = vmul.f32 %v2006, %v1790
    %v2011 = vmul.f32 %v2004, %v2009
    %v2012 = vadd.f32 %v2010, %v2011
    %v2013 = vtanh.pop %v2012
    %v2014 = vmul.f32 %v2008, %v2013
    %v2015 = vpack.c.bf16 %v2014, %v2014
    %v2016 = vpack.c.bf16 %v1986, %v1986
    %2017 = vmatprep.subr.bf16.mxu0 %v853
    %2018 = vmatpush1.bf16.msra.mxu0 %v852
    %2019 = vmatprep.subr.bf16.mxu0 %v861
    %2020 = vmatpush1.bf16.msra.mxu0 %v860
    %2021 = vmatprep.subr.bf16.mxu0 %v869
    %2022 = vmatpush1.bf16.msra.mxu0 %v868
    %2023 = vmatprep.subr.bf16.mxu0 %v877
    %2024 = vmatpush1.bf16.msra.mxu0 %v876
    %2025 = vmatprep.subr.bf16.mxu0 %v885
    %2026 = vmatpush1.bf16.msra.mxu0 %v884
    %2027 = vmatprep.subr.bf16.mxu0 %v893
    %2028 = vmatpush1.bf16.msra.mxu0 %v892
    %2029 = vmatprep.subr.bf16.mxu0 %v901
    %2030 = vmatpush1.bf16.msra.mxu0 %v900
    %2031 = vmatprep.subr.bf16.mxu0 %v909
    %2032 = vmatpush1.bf16.msra.mxu0 %v908
    %2033 = vmatprep.subr.bf16.mxu0 %v917
    %2034 = vmatpush1.bf16.msra.mxu0 %v916
    %2035 = vmatprep.subr.bf16.mxu0 %v925
    %2036 = vmatpush1.bf16.msra.mxu0 %v924
    %2037 = vmatprep.subr.bf16.mxu0 %v933
    %2038 = vmatpush1.bf16.msra.mxu0 %v932
    %2039 = vmatprep.subr.bf16.mxu0 %v941
    %2040 = vmatpush1.bf16.msra.mxu0 %v940
    %2041 = vmatprep.subr.bf16.mxu0 %v949
    %2042 = vmatpush1.bf16.msra.mxu0 %v948
    %2043 = vmatprep.subr.bf16.mxu0 %v957
    %2044 = vmatpush1.bf16.msra.mxu0 %v956
    %2045 = vmatprep.subr.bf16.mxu0 %v965
    %2046 = vmatpush1.bf16.msra.mxu0 %v964
    %2047 = vmatprep.subr.bf16.mxu0 %v973
    %2048 = vmatpush1.bf16.msra.mxu0 %v972
    %2049 = vmatprep.mubr.bf16.mxu0 %v2016
    %2050 = vmatmul.mubr.bf16.gmra.mrb[0].mxu0 %v2015
    %v2051 = vpop.f32.mrb[0].mxu0
    %v2052 = vadd.f32 0.0, %v2051
    %v2053 = vpop.f32.mrb[0].mxu0
    %v2054 = vadd.f32 0.0, %v2053
    %v2055 = vpop.f32.mrb[0].mxu0
    %v2056 = vpop.f32.mrb[0].mxu0
    %2057 = vdwg.mxu0
    %2058 = vmatprep.subr.bf16.mxu0 %v855
    %2059 = vmatpush1.bf16.msra.mxu0 %v854
    %2060 = vmatprep.subr.bf16.mxu0 %v863
    %2061 = vmatpush1.bf16.msra.mxu0 %v862
    %2062 = vmatprep.subr.bf16.mxu0 %v871
    %2063 = vmatpush1.bf16.msra.mxu0 %v870
    %2064 = vmatprep.subr.bf16.mxu0 %v879
    %2065 = vmatpush1.bf16.msra.mxu0 %v878
    %2066 = vmatprep.subr.bf16.mxu0 %v887
    %2067 = vmatpush1.bf16.msra.mxu0 %v886
    %2068 = vmatprep.subr.bf16.mxu0 %v895
    %2069 = vmatpush1.bf16.msra.mxu0 %v894
    %2070 = vmatprep.subr.bf16.mxu0 %v903
    %2071 = vmatpush1.bf16.msra.mxu0 %v902
    %2072 = vmatprep.subr.bf16.mxu0 %v911
    %2073 = vmatpush1.bf16.msra.mxu0 %v910
    %2074 = vmatprep.subr.bf16.mxu0 %v919
    %2075 = vmatpush1.bf16.msra.mxu0 %v918
    %2076 = vmatprep.subr.bf16.mxu0 %v927
    %2077 = vmatpush1.bf16.msra.mxu0 %v926
    %2078 = vmatprep.subr.bf16.mxu0 %v935
    %2079 = vmatpush1.bf16.msra.mxu0 %v934
    %2080 = vmatprep.subr.bf16.mxu0 %v943
    %2081 = vmatpush1.bf16.msra.mxu0 %v942
    %2082 = vmatprep.subr.bf16.mxu0 %v951
    %2083 = vmatpush1.bf16.msra.mxu0 %v950
    %2084 = vmatprep.subr.bf16.mxu0 %v959
    %2085 = vmatpush1.bf16.msra.mxu0 %v958
    %2086 = vmatprep.subr.bf16.mxu0 %v967
    %2087 = vmatpush1.bf16.msra.mxu0 %v966
    %2088 = vmatprep.subr.bf16.mxu0 %v975
    %2089 = vmatpush1.bf16.msra.mxu0 %v974
    %2090 = vmatprep.mubr.bf16.mxu0 %v2016
    %2091 = vmatmul.mubr.bf16.gmra.mrb[0].mxu0 %v2015
    %v2092 = vpop.f32.mrb[0].mxu0
    %v2093 = vadd.f32 0.0, %v2092
    %v2094 = vpop.f32.mrb[0].mxu0
    %v2095 = vadd.f32 0.0, %v2094
    %v2096 = vpop.f32.mrb[0].mxu0
    %v2097 = vpop.f32.mrb[0].mxu0
    %2098 = vdwg.mxu0
    %2099 = vmatprep.subr.bf16.mxu0 %v857
    %2100 = vmatpush1.bf16.msra.mxu0 %v856
    %2101 = vmatprep.subr.bf16.mxu0 %v865
    %2102 = vmatpush1.bf16.msra.mxu0 %v864
    %2103 = vmatprep.subr.bf16.mxu0 %v873
    %2104 = vmatpush1.bf16.msra.mxu0 %v872
    %2105 = vmatprep.subr.bf16.mxu0 %v881
    %2106 = vmatpush1.bf16.msra.mxu0 %v880
    %2107 = vmatprep.subr.bf16.mxu0 %v889
    %2108 = vmatpush1.bf16.msra.mxu0 %v888
    %2109 = vmatprep.subr.bf16.mxu0 %v897
    %2110 = vmatpush1.bf16.msra.mxu0 %v896
    %2111 = vmatprep.subr.bf16.mxu0 %v905
    %2112 = vmatpush1.bf16.msra.mxu0 %v904
    %2113 = vmatprep.subr.bf16.mxu0 %v913
    %2114 = vmatpush1.bf16.msra.mxu0 %v912
    %2115 = vmatprep.subr.bf16.mxu0 %v921
    %2116 = vmatpush1.bf16.msra.mxu0 %v920
    %2117 = vmatprep.subr.bf16.mxu0 %v929
    %2118 = vmatpush1.bf16.msra.mxu0 %v928
    %2119 = vmatprep.subr.bf16.mxu0 %v937
    %2120 = vmatpush1.bf16.msra.mxu0 %v936
    %2121 = vmatprep.subr.bf16.mxu0 %v945
    %2122 = vmatpush1.bf16.msra.mxu0 %v944
    %2123 = vmatprep.subr.bf16.mxu0 %v953
    %2124 = vmatpush1.bf16.msra.mxu0 %v952
    %2125 = vmatprep.subr.bf16.mxu0 %v961
    %2126 = vmatpush1.bf16.msra.mxu0 %v960
    %2127 = vmatprep.subr.bf16.mxu0 %v969
    %2128 = vmatpush1.bf16.msra.mxu0 %v968
    %2129 = vmatprep.subr.bf16.mxu0 %v977
    %2130 = vmatpush1.bf16.msra.mxu0 %v976
    %2131 = vmatprep.mubr.bf16.mxu0 %v2016
    %2132 = vmatmul.mubr.bf16.gmra.mrb[0].mxu0 %v2015
    %v2133 = vpop.f32.mrb[0].mxu0
    %v2134 = vadd.f32 0.0, %v2133
    %v2135 = vpop.f32.mrb[0].mxu0
    %v2136 = vadd.f32 0.0, %v2135
    %v2137 = vpop.f32.mrb[0].mxu0
    %v2138 = vpop.f32.mrb[0].mxu0
    %2139 = vdwg.mxu0
    %2140 = vmatprep.subr.bf16.mxu0 %v859
    %2141 = vmatpush1.bf16.msra.mxu0 %v858
    %2142 = vmatprep.subr.bf16.mxu0 %v867
    %2143 = vmatpush1.bf16.msra.mxu0 %v866
    %2144 = vmatprep.subr.bf16.mxu0 %v875
    %2145 = vmatpush1.bf16.msra.mxu0 %v874
    %2146 = vmatprep.subr.bf16.mxu0 %v883
    %2147 = vmatpush1.bf16.msra.mxu0 %v882
    %2148 = vmatprep.subr.bf16.mxu0 %v891
    %2149 = vmatpush1.bf16.msra.mxu0 %v890
    %2150 = vmatprep.subr.bf16.mxu0 %v899
    %2151 = vmatpush1.bf16.msra.mxu0 %v898
    %2152 = vmatprep.subr.bf16.mxu0 %v907
    %2153 = vmatpush1.bf16.msra.mxu0 %v906
    %2154 = vmatprep.subr.bf16.mxu0 %v915
    %2155 = vmatpush1.bf16.msra.mxu0 %v914
    %2156 = vmatprep.subr.bf16.mxu0 %v923
    %2157 = vmatpush1.bf16.msra.mxu0 %v922
    %2158 = vmatprep.subr.bf16.mxu0 %v931
    %2159 = vmatpush1.bf16.msra.mxu0 %v930
    %2160 = vmatprep.subr.bf16.mxu0 %v939
    %2161 = vmatpush1.bf16.msra.mxu0 %v938
    %2162 = vmatprep.subr.bf16.mxu0 %v947
    %2163 = vmatpush1.bf16.msra.mxu0 %v946
    %2164 = vmatprep.subr.bf16.mxu0 %v955
    %2165 = vmatpush1.bf16.msra.mxu0 %v954
    %2166 = vmatprep.subr.bf16.mxu0 %v963
    %2167 = vmatpush1.bf16.msra.mxu0 %v962
    %2168 = vmatprep.subr.bf16.mxu0 %v971
    %2169 = vmatpush1.bf16.msra.mxu0 %v970
    %2170 = vmatprep.subr.bf16.mxu0 %v979
    %2171 = vmatpush1.bf16.msra.mxu0 %v978
    %2172 = vmatprep.mubr.bf16.mxu0 %v2016
    %2173 = vmatmul.mubr.bf16.gmra.mrb[0].mxu0 %v2015
    %v2174 = vpop.f32.mrb[0].mxu0
    %v2175 = vadd.f32 0.0, %v2174
    %v2176 = vpop.f32.mrb[0].mxu0
    %v2177 = vadd.f32 0.0, %v2176
    %v2178 = vpop.f32.mrb[0].mxu0
    %v2179 = vpop.f32.mrb[0].mxu0
    %2180 = vdwg.mxu0
    %v2181 = vadd.f32 %v2052, %v1276
    %v2182 = vadd.f32 %v2054, %v1280
    %v2183 = vadd.f32 %v2093, %v1284
    %v2184 = vadd.f32 %v2095, %v1288
    %v2185 = vxor.u32 %v2181, 2147483648
    %v2186 = vxor.u32 %v2182, 2147483648
    %v2187 = vxor.u32 %v2183, 2147483648
    %v2188 = vmul.f32 %v2185, 1.442695
    %v2189 = vpow.pop %v2188
    %v2190 = vmul.f32 %v2186, 1.442695
    %v2191 = vpow.pop %v2190
    %v2192 = vmul.f32 %v2187, 1.442695
    %v2193 = vpow.pop %v2192
    %v2194 = vadd.f32 %v2189, 1.0
    %v2195 = vadd.f32 %v2191, 1.0
    %v2196 = vadd.f32 %v2193, 1.0
    %v2197 = vrcp.pop %v2194
    %v2198 = vmul.f32 1.0, %v2197
    %v2199 = vrcp.pop %v2195
    %v2200 = vmul.f32 1.0, %v2199
    %v2201 = vrcp.pop %v2196
    %v2202 = vmul.f32 1.0, %v2201
    %v2203 = vtanh.pop %v2184
    %v2204 = vmul.f32 %v2200, %v1984
    %v2205 = vmul.f32 %v2198, %v2203
    %v2206 = vadd.f32 %v2204, %v2205
    %v2207 = vtanh.pop %v2206
    %v2208 = vmul.f32 %v2202, %v2207
    %v2209 = vadd.f32 %v222, %v2134
    %v2210 = vadd.f32 %v224, %v2136
    %v2211 = vadd.f32 %v295, %v2175
    %v2212 = vadd.f32 %v297, %v2177
    %v2213 = vxor.u32 %v2209, 2147483648
    %v2214 = vxor.u32 %v2210, 2147483648
    %v2215 = vxor.u32 %v2211, 2147483648
    %v2216 = vmul.f32 %v2213, 1.442695
    %v2217 = vpow.pop %v2216
    %v2218 = vmul.f32 %v2214, 1.442695
    %v2219 = vpow.pop %v2218
    %v2220 = vmul.f32 %v2215, 1.442695
    %v2221 = vpow.pop %v2220
    %v2222 = vadd.f32 %v2217, 1.0
    %v2223 = vadd.f32 %v2219, 1.0
    %v2224 = vadd.f32 %v2221, 1.0
    %v2225 = vrcp.pop %v2222
    %v2226 = vmul.f32 1.0, %v2225
    %v2227 = vrcp.pop %v2223
    %v2228 = vmul.f32 1.0, %v2227
    %v2229 = vrcp.pop %v2224
    %v2230 = vmul.f32 1.0, %v2229
    %v2231 = vtanh.pop %v2212
    %v2232 = vmul.f32 %v2228, %v2012
    %v2233 = vmul.f32 %v2226, %v2231
    %v2234 = vadd.f32 %v2232, %v2233
    %v2235 = vtanh.pop %v2234
    %v2236 = vmul.f32 %v2230, %v2235
    %v2237 = vpack.c.bf16 %v2236, %v2236
    %v2238 = vpack.c.bf16 %v2208, %v2208
    %2239 = vmatprep.subr.bf16.mxu0 %v853
    %2240 = vmatpush1.bf16.msra.mxu0 %v852
    %2241 = vmatprep.subr.bf16.mxu0 %v861
    %2242 = vmatpush1.bf16.msra.mxu0 %v860
    %2243 = vmatprep.subr.bf16.mxu0 %v869
    %2244 = vmatpush1.bf16.msra.mxu0 %v868
    %2245 = vmatprep.subr.bf16.mxu0 %v877
    %2246 = vmatpush1.bf16.msra.mxu0 %v876
    %2247 = vmatprep.subr.bf16.mxu0 %v885
    %2248 = vmatpush1.bf16.msra.mxu0 %v884
    %2249 = vmatprep.subr.bf16.mxu0 %v893
    %2250 = vmatpush1.bf16.msra.mxu0 %v892
    %2251 = vmatprep.subr.bf16.mxu0 %v901
    %2252 = vmatpush1.bf16.msra.mxu0 %v900
    %2253 = vmatprep.subr.bf16.mxu0 %v909
    %2254 = vmatpush1.bf16.msra.mxu0 %v908
    %2255 = vmatprep.subr.bf16.mxu0 %v917
    %2256 = vmatpush1.bf16.msra.mxu0 %v916
    %2257 = vmatprep.subr.bf16.mxu0 %v925
    %2258 = vmatpush1.bf16.msra.mxu0 %v924
    %2259 = vmatprep.subr.bf16.mxu0 %v933
    %2260 = vmatpush1.bf16.msra.mxu0 %v932
    %2261 = vmatprep.subr.bf16.mxu0 %v941
    %2262 = vmatpush1.bf16.msra.mxu0 %v940
    %2263 = vmatprep.subr.bf16.mxu0 %v949
    %2264 = vmatpush1.bf16.msra.mxu0 %v948
    %2265 = vmatprep.subr.bf16.mxu0 %v957
    %2266 = vmatpush1.bf16.msra.mxu0 %v956
    %2267 = vmatprep.subr.bf16.mxu0 %v965
    %2268 = vmatpush1.bf16.msra.mxu0 %v964
    %2269 = vmatprep.subr.bf16.mxu0 %v973
    %2270 = vmatpush1.bf16.msra.mxu0 %v972
    %2271 = vmatprep.mubr.bf16.mxu0 %v2238
    %2272 = vmatmul.mubr.bf16.gmra.mrb[0].mxu0 %v2237
    %v2273 = vpop.f32.mrb[0].mxu0
    %v2274 = vadd.f32 0.0, %v2273
    %v2275 = vpop.f32.mrb[0].mxu0
    %v2276 = vadd.f32 0.0, %v2275
    %v2277 = vpop.f32.mrb[0].mxu0
    %v2278 = vpop.f32.mrb[0].mxu0
    %2279 = vdwg.mxu0
    %2280 = vmatprep.subr.bf16.mxu0 %v855
    %2281 = vmatpush1.bf16.msra.mxu0 %v854
    %2282 = vmatprep.subr.bf16.mxu0 %v863
    %2283 = vmatpush1.bf16.msra.mxu0 %v862
    %2284 = vmatprep.subr.bf16.mxu0 %v871
    %2285 = vmatpush1.bf16.msra.mxu0 %v870
    %2286 = vmatprep.subr.bf16.mxu0 %v879
    %2287 = vmatpush1.bf16.msra.mxu0 %v878
    %2288 = vmatprep.subr.bf16.mxu0 %v887
    %2289 = vmatpush1.bf16.msra.mxu0 %v886
    %2290 = vmatprep.subr.bf16.mxu0 %v895
    %2291 = vmatpush1.bf16.msra.mxu0 %v894
    %2292 = vmatprep.subr.bf16.mxu0 %v903
    %2293 = vmatpush1.bf16.msra.mxu0 %v902
    %2294 = vmatprep.subr.bf16.mxu0 %v911
    %2295 = vmatpush1.bf16.msra.mxu0 %v910
    %2296 = vmatprep.subr.bf16.mxu0 %v919
    %2297 = vmatpush1.bf16.msra.mxu0 %v918
    %2298 = vmatprep.subr.bf16.mxu0 %v927
    %2299 = vmatpush1.bf16.msra.mxu0 %v926
    %2300 = vmatprep.subr.bf16.mxu0 %v935
    %2301 = vmatpush1.bf16.msra.mxu0 %v934
    %2302 = vmatprep.subr.bf16.mxu0 %v943
    %2303 = vmatpush1.bf16.msra.mxu0 %v942
    %2304 = vmatprep.subr.bf16.mxu0 %v951
    %2305 = vmatpush1.bf16.msra.mxu0 %v950
    %2306 = vmatprep.subr.bf16.mxu0 %v959
    %2307 = vmatpush1.bf16.msra.mxu0 %v958
    %2308 = vmatprep.subr.bf16.mxu0 %v967
    %2309 = vmatpush1.bf16.msra.mxu0 %v966
    %2310 = vmatprep.subr.bf16.mxu0 %v975
    %2311 = vmatpush1.bf16.msra.mxu0 %v974
    %2312 = vmatprep.mubr.bf16.mxu0 %v2238
    %2313 = vmatmul.mubr.bf16.gmra.mrb[0].mxu0 %v2237
    %v2314 = vpop.f32.mrb[0].mxu0
    %v2315 = vadd.f32 0.0, %v2314
    %v2316 = vpop.f32.mrb[0].mxu0
    %v2317 = vadd.f32 0.0, %v2316
    %v2318 = vpop.f32.mrb[0].mxu0
    %v2319 = vpop.f32.mrb[0].mxu0
    %2320 = vdwg.mxu0
    %2321 = vmatprep.subr.bf16.mxu0 %v857
    %2322 = vmatpush1.bf16.msra.mxu0 %v856
    %2323 = vmatprep.subr.bf16.mxu0 %v865
    %2324 = vmatpush1.bf16.msra.mxu0 %v864
    %2325 = vmatprep.subr.bf16.mxu0 %v873
    %2326 = vmatpush1.bf16.msra.mxu0 %v872
    %2327 = vmatprep.subr.bf16.mxu0 %v881
    %2328 = vmatpush1.bf16.msra.mxu0 %v880
    %2329 = vmatprep.subr.bf16.mxu0 %v889
    %2330 = vmatpush1.bf16.msra.mxu0 %v888
    %2331 = vmatprep.subr.bf16.mxu0 %v897
    %2332 = vmatpush1.bf16.msra.mxu0 %v896
    %2333 = vmatprep.subr.bf16.mxu0 %v905
    %2334 = vmatpush1.bf16.msra.mxu0 %v904
    %2335 = vmatprep.subr.bf16.mxu0 %v913
    %2336 = vmatpush1.bf16.msra.mxu0 %v912
    %2337 = vmatprep.subr.bf16.mxu0 %v921
    %2338 = vmatpush1.bf16.msra.mxu0 %v920
    %2339 = vmatprep.subr.bf16.mxu0 %v929
    %2340 = vmatpush1.bf16.msra.mxu0 %v928
    %2341 = vmatprep.subr.bf16.mxu0 %v937
    %2342 = vmatpush1.bf16.msra.mxu0 %v936
    %2343 = vmatprep.subr.bf16.mxu0 %v945
    %2344 = vmatpush1.bf16.msra.mxu0 %v944
    %2345 = vmatprep.subr.bf16.mxu0 %v953
    %2346 = vmatpush1.bf16.msra.mxu0 %v952
    %2347 = vmatprep.subr.bf16.mxu0 %v961
    %2348 = vmatpush1.bf16.msra.mxu0 %v960
    %2349 = vmatprep.subr.bf16.mxu0 %v969
    %2350 = vmatpush1.bf16.msra.mxu0 %v968
    %2351 = vmatprep.subr.bf16.mxu0 %v977
    %2352 = vmatpush1.bf16.msra.mxu0 %v976
    %2353 = vmatprep.mubr.bf16.mxu0 %v2238
    %2354 = vmatmul.mubr.bf16.gmra.mrb[0].mxu0 %v2237
    %v2355 = vpop.f32.mrb[0].mxu0
    %v2356 = vadd.f32 0.0, %v2355
    %v2357 = vpop.f32.mrb[0].mxu0
    %v2358 = vadd.f32 0.0, %v2357
    %v2359 = vpop.f32.mrb[0].mxu0
    %v2360 = vpop.f32.mrb[0].mxu0
    %2361 = vdwg.mxu0
    %2362 = vmatprep.subr.bf16.mxu0 %v859
    %2363 = vmatpush1.bf16.msra.mxu0 %v858
    %2364 = vmatprep.subr.bf16.mxu0 %v867
    %2365 = vmatpush1.bf16.msra.mxu0 %v866
    %2366 = vmatprep.subr.bf16.mxu0 %v875
    %2367 = vmatpush1.bf16.msra.mxu0 %v874
    %2368 = vmatprep.subr.bf16.mxu0 %v883
    %2369 = vmatpush1.bf16.msra.mxu0 %v882
    %2370 = vmatprep.subr.bf16.mxu0 %v891
    %2371 = vmatpush1.bf16.msra.mxu0 %v890
    %2372 = vmatprep.subr.bf16.mxu0 %v899
    %2373 = vmatpush1.bf16.msra.mxu0 %v898
    %2374 = vmatprep.subr.bf16.mxu0 %v907
    %2375 = vmatpush1.bf16.msra.mxu0 %v906
    %2376 = vmatprep.subr.bf16.mxu0 %v915
    %2377 = vmatpush1.bf16.msra.mxu0 %v914
    %2378 = vmatprep.subr.bf16.mxu0 %v923
    %2379 = vmatpush1.bf16.msra.mxu0 %v922
    %2380 = vmatprep.subr.bf16.mxu0 %v931
    %2381 = vmatpush1.bf16.msra.mxu0 %v930
    %2382 = vmatprep.subr.bf16.mxu0 %v939
    %2383 = vmatpush1.bf16.msra.mxu0 %v938
    %2384 = vmatprep.subr.bf16.mxu0 %v947
    %2385 = vmatpush1.bf16.msra.mxu0 %v946
    %2386 = vmatprep.subr.bf16.mxu0 %v955
    %2387 = vmatpush1.bf16.msra.mxu0 %v954
    %2388 = vmatprep.subr.bf16.mxu0 %v963
    %2389 = vmatpush1.bf16.msra.mxu0 %v962
    %2390 = vmatprep.subr.bf16.mxu0 %v971
    %2391 = vmatpush1.bf16.msra.mxu0 %v970
    %2392 = vmatprep.subr.bf16.mxu0 %v979
    %2393 = vmatpush1.bf16.msra.mxu0 %v978
    %2394 = vmatprep.mubr.bf16.mxu0 %v2238
    %2395 = vmatmul.mubr.bf16.gmra.mrb[0].mxu0 %v2237
    %v2396 = vpop.f32.mrb[0].mxu0
    %v2397 = vadd.f32 0.0, %v2396
    %v2398 = vpop.f32.mrb[0].mxu0
    %v2399 = vadd.f32 0.0, %v2398
    %v2400 = vpop.f32.mrb[0].mxu0
    %v2401 = vpop.f32.mrb[0].mxu0
    %2402 = vdwg.mxu0
    %v2403 = vadd.f32 %v2274, %v1276
    %v2404 = vadd.f32 %v2276, %v1280
    %v2405 = vadd.f32 %v2315, %v1284
    %v2406 = vadd.f32 %v2317, %v1288
    %v2407 = vxor.u32 %v2403, 2147483648
    %v2408 = vxor.u32 %v2404, 2147483648
    %v2409 = vxor.u32 %v2405, 2147483648
    %v2410 = vmul.f32 %v2407, 1.442695
    %v2411 = vpow.pop %v2410
    %v2412 = vmul.f32 %v2408, 1.442695
    %v2413 = vpow.pop %v2412
    %v2414 = vmul.f32 %v2409, 1.442695
    %v2415 = vpow.pop %v2414
    %v2416 = vadd.f32 %v2411, 1.0
    %v2417 = vadd.f32 %v2413, 1.0
    %v2418 = vadd.f32 %v2415, 1.0
    %v2419 = vrcp.pop %v2416
    %v2420 = vmul.f32 1.0, %v2419
    %v2421 = vrcp.pop %v2417
    %v2422 = vmul.f32 1.0, %v2421
    %v2423 = vrcp.pop %v2418
    %v2424 = vmul.f32 1.0, %v2423
    %v2425 = vtanh.pop %v2406
    %v2426 = vmul.f32 %v2422, %v2206
    %v2427 = vmul.f32 %v2420, %v2425
    %v2428 = vadd.f32 %v2426, %v2427
    %v2429 = vtanh.pop %v2428
    %v2430 = vmul.f32 %v2424, %v2429
    %v2431 = vadd.f32 %v228, %v2356
    %v2432 = vadd.f32 %v230, %v2358
    %v2433 = vadd.f32 %v301, %v2397
    %v2434 = vadd.f32 %v303, %v2399
    %v2435 = vxor.u32 %v2431, 2147483648
    %v2436 = vxor.u32 %v2432, 2147483648
    %v2437 = vxor.u32 %v2433, 2147483648
    %v2438 = vmul.f32 %v2435, 1.442695
    %v2439 = vpow.pop %v2438
    %v2440 = vmul.f32 %v2436, 1.442695
    %v2441 = vpow.pop %v2440
    %v2442 = vmul.f32 %v2437, 1.442695
    %v2443 = vpow.pop %v2442
    %v2444 = vadd.f32 %v2439, 1.0
    %v2445 = vadd.f32 %v2441, 1.0
    %v2446 = vadd.f32 %v2443, 1.0
    %v2447 = vrcp.pop %v2444
    %v2448 = vmul.f32 1.0, %v2447
    %v2449 = vrcp.pop %v2445
    %v2450 = vmul.f32 1.0, %v2449
    %v2451 = vrcp.pop %v2446
    %v2452 = vmul.f32 1.0, %v2451
    %v2453 = vtanh.pop %v2434
    %v2454 = vmul.f32 %v2450, %v2234
    %v2455 = vmul.f32 %v2448, %v2453
    %v2456 = vadd.f32 %v2454, %v2455
    %v2457 = vtanh.pop %v2456
    %v2458 = vmul.f32 %v2452, %v2457
    %v2459 = vpack.c.bf16 %v2458, %v2458
    %v2460 = vpack.c.bf16 %v2430, %v2430
    %2461 = vmatprep.subr.bf16.mxu0 %v853
    %2462 = vmatpush1.bf16.msra.mxu0 %v852
    %2463 = vmatprep.subr.bf16.mxu0 %v861
    %2464 = vmatpush1.bf16.msra.mxu0 %v860
    %2465 = vmatprep.subr.bf16.mxu0 %v869
    %2466 = vmatpush1.bf16.msra.mxu0 %v868
    %2467 = vmatprep.subr.bf16.mxu0 %v877
    %2468 = vmatpush1.bf16.msra.mxu0 %v876
    %2469 = vmatprep.subr.bf16.mxu0 %v885
    %2470 = vmatpush1.bf16.msra.mxu0 %v884
    %2471 = vmatprep.subr.bf16.mxu0 %v893
    %2472 = vmatpush1.bf16.msra.mxu0 %v892
    %2473 = vmatprep.subr.bf16.mxu0 %v901
    %2474 = vmatpush1.bf16.msra.mxu0 %v900
    %2475 = vmatprep.subr.bf16.mxu0 %v909
    %2476 = vmatpush1.bf16.msra.mxu0 %v908
    %2477 = vmatprep.subr.bf16.mxu0 %v917
    %2478 = vmatpush1.bf16.msra.mxu0 %v916
    %2479 = vmatprep.subr.bf16.mxu0 %v925
    %2480 = vmatpush1.bf16.msra.mxu0 %v924
    %2481 = vmatprep.subr.bf16.mxu0 %v933
    %2482 = vmatpush1.bf16.msra.mxu0 %v932
    %2483 = vmatprep.subr.bf16.mxu0 %v941
    %2484 = vmatpush1.bf16.msra.mxu0 %v940
    %2485 = vmatprep.subr.bf16.mxu0 %v949
    %2486 = vmatpush1.bf16.msra.mxu0 %v948
    %2487 = vmatprep.subr.bf16.mxu0 %v957
    %2488 = vmatpush1.bf16.msra.mxu0 %v956
    %2489 = vmatprep.subr.bf16.mxu0 %v965
    %2490 = vmatpush1.bf16.msra.mxu0 %v964
    %2491 = vmatprep.subr.bf16.mxu0 %v973
    %2492 = vmatpush1.bf16.msra.mxu0 %v972
    %2493 = vmatprep.mubr.bf16.mxu0 %v2460
    %2494 = vmatmul.mubr.bf16.gmra.mrb[0].mxu0 %v2459
    %v2495 = vpop.f32.mrb[0].mxu0
    %v2496 = vadd.f32 0.0, %v2495
    %v2497 = vpop.f32.mrb[0].mxu0
    %v2498 = vadd.f32 0.0, %v2497
    %v2499 = vpop.f32.mrb[0].mxu0
    %v2500 = vpop.f32.mrb[0].mxu0
    %2501 = vdwg.mxu0
    %2502 = vmatprep.subr.bf16.mxu0 %v855
    %2503 = vmatpush1.bf16.msra.mxu0 %v854
    %2504 = vmatprep.subr.bf16.mxu0 %v863
    %2505 = vmatpush1.bf16.msra.mxu0 %v862
    %2506 = vmatprep.subr.bf16.mxu0 %v871
    %2507 = vmatpush1.bf16.msra.mxu0 %v870
    %2508 = vmatprep.subr.bf16.mxu0 %v879
    %2509 = vmatpush1.bf16.msra.mxu0 %v878
    %2510 = vmatprep.subr.bf16.mxu0 %v887
    %2511 = vmatpush1.bf16.msra.mxu0 %v886
    %2512 = vmatprep.subr.bf16.mxu0 %v895
    %2513 = vmatpush1.bf16.msra.mxu0 %v894
    %2514 = vmatprep.subr.bf16.mxu0 %v903
    %2515 = vmatpush1.bf16.msra.mxu0 %v902
    %2516 = vmatprep.subr.bf16.mxu0 %v911
    %2517 = vmatpush1.bf16.msra.mxu0 %v910
    %2518 = vmatprep.subr.bf16.mxu0 %v919
    %2519 = vmatpush1.bf16.msra.mxu0 %v918
    %2520 = vmatprep.subr.bf16.mxu0 %v927
    %2521 = vmatpush1.bf16.msra.mxu0 %v926
    %2522 = vmatprep.subr.bf16.mxu0 %v935
    %2523 = vmatpush1.bf16.msra.mxu0 %v934
    %2524 = vmatprep.subr.bf16.mxu0 %v943
    %2525 = vmatpush1.bf16.msra.mxu0 %v942
    %2526 = vmatprep.subr.bf16.mxu0 %v951
    %2527 = vmatpush1.bf16.msra.mxu0 %v950
    %2528 = vmatprep.subr.bf16.mxu0 %v959
    %2529 = vmatpush1.bf16.msra.mxu0 %v958
    %2530 = vmatprep.subr.bf16.mxu0 %v967
    %2531 = vmatpush1.bf16.msra.mxu0 %v966
    %2532 = vmatprep.subr.bf16.mxu0 %v975
    %2533 = vmatpush1.bf16.msra.mxu0 %v974
    %2534 = vmatprep.mubr.bf16.mxu0 %v2460
    %2535 = vmatmul.mubr.bf16.gmra.mrb[0].mxu0 %v2459
    %v2536 = vpop.f32.mrb[0].mxu0
    %v2537 = vadd.f32 0.0, %v2536
    %v2538 = vpop.f32.mrb[0].mxu0
    %v2539 = vadd.f32 0.0, %v2538
    %v2540 = vpop.f32.mrb[0].mxu0
    %v2541 = vpop.f32.mrb[0].mxu0
    %2542 = vdwg.mxu0
    %2543 = vmatprep.subr.bf16.mxu0 %v857
    %2544 = vmatpush1.bf16.msra.mxu0 %v856
    %2545 = vmatprep.subr.bf16.mxu0 %v865
    %2546 = vmatpush1.bf16.msra.mxu0 %v864
    %2547 = vmatprep.subr.bf16.mxu0 %v873
    %2548 = vmatpush1.bf16.msra.mxu0 %v872
    %2549 = vmatprep.subr.bf16.mxu0 %v881
    %2550 = vmatpush1.bf16.msra.mxu0 %v880
    %2551 = vmatprep.subr.bf16.mxu0 %v889
    %2552 = vmatpush1.bf16.msra.mxu0 %v888
    %2553 = vmatprep.subr.bf16.mxu0 %v897
    %2554 = vmatpush1.bf16.msra.mxu0 %v896
    %2555 = vmatprep.subr.bf16.mxu0 %v905
    %2556 = vmatpush1.bf16.msra.mxu0 %v904
    %2557 = vmatprep.subr.bf16.mxu0 %v913
    %2558 = vmatpush1.bf16.msra.mxu0 %v912
    %2559 = vmatprep.subr.bf16.mxu0 %v921
    %2560 = vmatpush1.bf16.msra.mxu0 %v920
    %2561 = vmatprep.subr.bf16.mxu0 %v929
    %2562 = vmatpush1.bf16.msra.mxu0 %v928
    %2563 = vmatprep.subr.bf16.mxu0 %v937
    %2564 = vmatpush1.bf16.msra.mxu0 %v936
    %2565 = vmatprep.subr.bf16.mxu0 %v945
    %2566 = vmatpush1.bf16.msra.mxu0 %v944
    %2567 = vmatprep.subr.bf16.mxu0 %v953
    %2568 = vmatpush1.bf16.msra.mxu0 %v952
    %2569 = vmatprep.subr.bf16.mxu0 %v961
    %2570 = vmatpush1.bf16.msra.mxu0 %v960
    %2571 = vmatprep.subr.bf16.mxu0 %v969
    %2572 = vmatpush1.bf16.msra.mxu0 %v968
    %2573 = vmatprep.subr.bf16.mxu0 %v977
    %2574 = vmatpush1.bf16.msra.mxu0 %v976
    %2575 = vmatprep.mubr.bf16.mxu0 %v2460
    %2576 = vmatmul.mubr.bf16.gmra.mrb[0].mxu0 %v2459
    %v2577 = vpop.f32.mrb[0].mxu0
    %v2578 = vadd.f32 0.0, %v2577
    %v2579 = vpop.f32.mrb[0].mxu0
    %v2580 = vadd.f32 0.0, %v2579
    %v2581 = vpop.f32.mrb[0].mxu0
    %v2582 = vpop.f32.mrb[0].mxu0
    %2583 = vdwg.mxu0
    %2584 = vmatprep.subr.bf16.mxu0 %v859
    %2585 = vmatpush1.bf16.msra.mxu0 %v858
    %2586 = vmatprep.subr.bf16.mxu0 %v867
    %2587 = vmatpush1.bf16.msra.mxu0 %v866
    %2588 = vmatprep.subr.bf16.mxu0 %v875
    %2589 = vmatpush1.bf16.msra.mxu0 %v874
    %2590 = vmatprep.subr.bf16.mxu0 %v883
    %2591 = vmatpush1.bf16.msra.mxu0 %v882
    %2592 = vmatprep.subr.bf16.mxu0 %v891
    %2593 = vmatpush1.bf16.msra.mxu0 %v890
    %2594 = vmatprep.subr.bf16.mxu0 %v899
    %2595 = vmatpush1.bf16.msra.mxu0 %v898
    %2596 = vmatprep.subr.bf16.mxu0 %v907
    %2597 = vmatpush1.bf16.msra.mxu0 %v906
    %2598 = vmatprep.subr.bf16.mxu0 %v915
    %2599 = vmatpush1.bf16.msra.mxu0 %v914
    %2600 = vmatprep.subr.bf16.mxu0 %v923
    %2601 = vmatpush1.bf16.msra.mxu0 %v922
    %2602 = vmatprep.subr.bf16.mxu0 %v931
    %2603 = vmatpush1.bf16.msra.mxu0 %v930
    %2604 = vmatprep.subr.bf16.mxu0 %v939
    %2605 = vmatpush1.bf16.msra.mxu0 %v938
    %2606 = vmatprep.subr.bf16.mxu0 %v947
    %2607 = vmatpush1.bf16.msra.mxu0 %v946
    %2608 = vmatprep.subr.bf16.mxu0 %v955
    %2609 = vmatpush1.bf16.msra.mxu0 %v954
    %2610 = vmatprep.subr.bf16.mxu0 %v963
    %2611 = vmatpush1.bf16.msra.mxu0 %v962
    %2612 = vmatprep.subr.bf16.mxu0 %v971
    %2613 = vmatpush1.bf16.msra.mxu0 %v970
    %2614 = vmatprep.subr.bf16.mxu0 %v979
    %2615 = vmatpush1.bf16.msra.mxu0 %v978
    %2616 = vmatprep.mubr.bf16.mxu0 %v2460
    %2617 = vmatmul.mubr.bf16.gmra.mrb[0].mxu0 %v2459
    %v2618 = vpop.f32.mrb[0].mxu0
    %v2619 = vadd.f32 0.0, %v2618
    %v2620 = vpop.f32.mrb[0].mxu0
    %v2621 = vadd.f32 0.0, %v2620
    %v2622 = vpop.f32.mrb[0].mxu0
    %v2623 = vpop.f32.mrb[0].mxu0
    %2624 = vdwg.mxu0
    %v2625 = vadd.f32 %v2496, %v1276
    %v2626 = vadd.f32 %v2498, %v1280
    %v2627 = vadd.f32 %v2537, %v1284
    %v2628 = vadd.f32 %v2539, %v1288
    %v2629 = vxor.u32 %v2625, 2147483648
    %v2630 = vxor.u32 %v2626, 2147483648
    %v2631 = vxor.u32 %v2627, 2147483648
    %v2632 = vmul.f32 %v2629, 1.442695
    %v2633 = vpow.pop %v2632
    %v2634 = vmul.f32 %v2630, 1.442695
    %v2635 = vpow.pop %v2634
    %v2636 = vmul.f32 %v2631, 1.442695
    %v2637 = vpow.pop %v2636
    %v2638 = vadd.f32 %v2633, 1.0
    %v2639 = vadd.f32 %v2635, 1.0
    %v2640 = vadd.f32 %v2637, 1.0
    %v2641 = vrcp.pop %v2638
    %v2642 = vmul.f32 1.0, %v2641
    %v2643 = vrcp.pop %v2639
    %v2644 = vmul.f32 1.0, %v2643
    %v2645 = vrcp.pop %v2640
    %v2646 = vmul.f32 1.0, %v2645
    %v2647 = vtanh.pop %v2628
    %v2648 = vmul.f32 %v2644, %v2428
    %v2649 = vmul.f32 %v2642, %v2647
    %v2650 = vadd.f32 %v2648, %v2649
    %v2651 = vtanh.pop %v2650
    %v2652 = vmul.f32 %v2646, %v2651
    %v2653 = vadd.f32 %v232, %v2578
    %v2654 = vadd.f32 %v234, %v2580
    %v2655 = vadd.f32 %v305, %v2619
    %v2656 = vadd.f32 %v307, %v2621
    %v2657 = vxor.u32 %v2653, 2147483648
    %v2658 = vxor.u32 %v2654, 2147483648
    %v2659 = vxor.u32 %v2655, 2147483648
    %v2660 = vmul.f32 %v2657, 1.442695
    %v2661 = vpow.pop %v2660
    %v2662 = vmul.f32 %v2658, 1.442695
    %v2663 = vpow.pop %v2662
    %v2664 = vmul.f32 %v2659, 1.442695
    %v2665 = vpow.pop %v2664
    %v2666 = vadd.f32 %v2661, 1.0
    %v2667 = vadd.f32 %v2663, 1.0
    %v2668 = vadd.f32 %v2665, 1.0
    %v2669 = vrcp.pop %v2666
    %v2670 = vmul.f32 1.0, %v2669
    %v2671 = vrcp.pop %v2667
    %v2672 = vmul.f32 1.0, %v2671
    %v2673 = vrcp.pop %v2668
    %v2674 = vmul.f32 1.0, %v2673
    %v2675 = vtanh.pop %v2656
    %v2676 = vmul.f32 %v2672, %v2456
    %v2677 = vmul.f32 %v2670, %v2675
    %v2678 = vadd.f32 %v2676, %v2677
    %v2679 = vtanh.pop %v2678
    %v2680 = vmul.f32 %v2674, %v2679
    %v2681 = vpack.c.bf16 %v2680, %v2680
    %v2682 = vpack.c.bf16 %v2652, %v2652
    %2683 = vmatprep.subr.bf16.mxu0 %v853
    %2684 = vmatpush1.bf16.msra.mxu0 %v852
    %2685 = vmatprep.subr.bf16.mxu0 %v861
    %2686 = vmatpush1.bf16.msra.mxu0 %v860
    %2687 = vmatprep.subr.bf16.mxu0 %v869
    %2688 = vmatpush1.bf16.msra.mxu0 %v868
    %2689 = vmatprep.subr.bf16.mxu0 %v877
    %2690 = vmatpush1.bf16.msra.mxu0 %v876
    %2691 = vmatprep.subr.bf16.mxu0 %v885
    %2692 = vmatpush1.bf16.msra.mxu0 %v884
    %2693 = vmatprep.subr.bf16.mxu0 %v893
    %2694 = vmatpush1.bf16.msra.mxu0 %v892
    %2695 = vmatprep.subr.bf16.mxu0 %v901
    %2696 = vmatpush1.bf16.msra.mxu0 %v900
    %2697 = vmatprep.subr.bf16.mxu0 %v909
    %2698 = vmatpush1.bf16.msra.mxu0 %v908
    %2699 = vmatprep.subr.bf16.mxu0 %v917
    %2700 = vmatpush1.bf16.msra.mxu0 %v916
    %2701 = vmatprep.subr.bf16.mxu0 %v925
    %2702 = vmatpush1.bf16.msra.mxu0 %v924
    %2703 = vmatprep.subr.bf16.mxu0 %v933
    %2704 = vmatpush1.bf16.msra.mxu0 %v932
    %2705 = vmatprep.subr.bf16.mxu0 %v941
    %2706 = vmatpush1.bf16.msra.mxu0 %v940
    %2707 = vmatprep.subr.bf16.mxu0 %v949
    %2708 = vmatpush1.bf16.msra.mxu0 %v948
    %2709 = vmatprep.subr.bf16.mxu0 %v957
    %2710 = vmatpush1.bf16.msra.mxu0 %v956
    %2711 = vmatprep.subr.bf16.mxu0 %v965
    %2712 = vmatpush1.bf16.msra.mxu0 %v964
    %2713 = vmatprep.subr.bf16.mxu0 %v973
    %2714 = vmatpush1.bf16.msra.mxu0 %v972
    %2715 = vmatprep.mubr.bf16.mxu0 %v2682
    %2716 = vmatmul.mubr.bf16.gmra.mrb[0].mxu0 %v2681
    %v2717 = vpop.f32.mrb[0].mxu0
    %v2718 = vadd.f32 0.0, %v2717
    %v2719 = vpop.f32.mrb[0].mxu0
    %v2720 = vadd.f32 0.0, %v2719
    %v2721 = vpop.f32.mrb[0].mxu0
    %v2722 = vpop.f32.mrb[0].mxu0
    %2723 = vdwg.mxu0
    %2724 = vmatprep.subr.bf16.mxu0 %v855
    %2725 = vmatpush1.bf16.msra.mxu0 %v854
    %2726 = vmatprep.subr.bf16.mxu0 %v863
    %2727 = vmatpush1.bf16.msra.mxu0 %v862
    %2728 = vmatprep.subr.bf16.mxu0 %v871
    %2729 = vmatpush1.bf16.msra.mxu0 %v870
    %2730 = vmatprep.subr.bf16.mxu0 %v879
    %2731 = vmatpush1.bf16.msra.mxu0 %v878
    %2732 = vmatprep.subr.bf16.mxu0 %v887
    %2733 = vmatpush1.bf16.msra.mxu0 %v886
    %2734 = vmatprep.subr.bf16.mxu0 %v895
    %2735 = vmatpush1.bf16.msra.mxu0 %v894
    %2736 = vmatprep.subr.bf16.mxu0 %v903
    %2737 = vmatpush1.bf16.msra.mxu0 %v902
    %2738 = vmatprep.subr.bf16.mxu0 %v911
    %2739 = vmatpush1.bf16.msra.mxu0 %v910
    %2740 = vmatprep.subr.bf16.mxu0 %v919
    %2741 = vmatpush1.bf16.msra.mxu0 %v918
    %2742 = vmatprep.subr.bf16.mxu0 %v927
    %2743 = vmatpush1.bf16.msra.mxu0 %v926
    %2744 = vmatprep.subr.bf16.mxu0 %v935
    %2745 = vmatpush1.bf16.msra.mxu0 %v934
    %2746 = vmatprep.subr.bf16.mxu0 %v943
    %2747 = vmatpush1.bf16.msra.mxu0 %v942
    %2748 = vmatprep.subr.bf16.mxu0 %v951
    %2749 = vmatpush1.bf16.msra.mxu0 %v950
    %2750 = vmatprep.subr.bf16.mxu0 %v959
    %2751 = vmatpush1.bf16.msra.mxu0 %v958
    %2752 = vmatprep.subr.bf16.mxu0 %v967
    %2753 = vmatpush1.bf16.msra.mxu0 %v966
    %2754 = vmatprep.subr.bf16.mxu0 %v975
    %2755 = vmatpush1.bf16.msra.mxu0 %v974
    %2756 = vmatprep.mubr.bf16.mxu0 %v2682
    %2757 = vmatmul.mubr.bf16.gmra.mrb[0].mxu0 %v2681
    %v2758 = vpop.f32.mrb[0].mxu0
    %v2759 = vadd.f32 0.0, %v2758
    %v2760 = vpop.f32.mrb[0].mxu0
    %v2761 = vadd.f32 0.0, %v2760
    %v2762 = vpop.f32.mrb[0].mxu0
    %v2763 = vpop.f32.mrb[0].mxu0
    %2764 = vdwg.mxu0
    %v2765 = vadd.f32 %v2718, %v1276
    %v2766 = vadd.f32 %v2720, %v1280
    %v2767 = vadd.f32 %v2759, %v1284
    %v2768 = vadd.f32 %v2761, %v1288
    %v2769 = vxor.u32 %v2765, 2147483648
    %v2770 = vxor.u32 %v2766, 2147483648
    %v2771 = vxor.u32 %v2767, 2147483648
    %v2772 = vmul.f32 %v2769, 1.442695
    %v2773 = vpow.pop %v2772
    %v2774 = vmul.f32 %v2770, 1.442695
    %v2775 = vpow.pop %v2774
    %v2776 = vmul.f32 %v2771, 1.442695
    %v2777 = vpow.pop %v2776
    %v2778 = vadd.f32 %v2773, 1.0
    %v2779 = vadd.f32 %v2775, 1.0
    %v2780 = vadd.f32 %v2777, 1.0
    %v2781 = vrcp.pop %v2778
    %v2782 = vmul.f32 1.0, %v2781
    %v2783 = vrcp.pop %v2779
    %v2784 = vmul.f32 1.0, %v2783
    %v2785 = vrcp.pop %v2780
    %v2786 = vmul.f32 1.0, %v2785
    %v2787 = vtanh.pop %v2768
    %v2788 = vmul.f32 %v2784, %v2650
    %v2789 = vmul.f32 %v2782, %v2787
    %v2790 = vadd.f32 %v2788, %v2789
    %v2791 = vtanh.pop %v2790
    %v2792 = vmul.f32 %v2786, %v2791
    %v2793 = vpack.c.bf16 %v2792, %v2792
    %v2794 = vld [vmem:[%s5] sm:$0xf]
    %v2795 = vld [vmem:[%s5 + $0x4] sm:$0xf]
    %v2796 = vld [vmem:[%s5 + $0x8] sm:$0xf]
    %v2797 = vld [vmem:[%s5 + $0xc] sm:$0xf]
    %v2798 = vld [vmem:[%s5 + $0x10] sm:$0xf]
    %v2799 = vld [vmem:[%s5 + $0x14] sm:$0xf]
    %v2800 = vld [vmem:[%s5 + $0x18] sm:$0xf]
    %v2801 = vld [vmem:[%s5 + $0x1c] sm:$0xf]
    %v2802 = vld [vmem:[%s5 + $0x20] sm:$0xf]
    %v2803 = vld [vmem:[%s5 + $0x24] sm:$0xf]
    %v2804 = vld [vmem:[%s5 + $0x28] sm:$0xf]
    %v2805 = vld [vmem:[%s5 + $0x2c] sm:$0xf]
    %v2806 = vld [vmem:[%s5 + $0x30] sm:$0xf]
    %v2807 = vld [vmem:[%s5 + $0x34] sm:$0xf]
    %v2808 = vld [vmem:[%s5 + $0x38] sm:$0xf]
    %v2809 = vld [vmem:[%s5 + $0x3c] sm:$0xf]
    %v2810 = vld [vmem:[%s6] sm:$0x1]
    %v2812 = vlaneseq
    %v2813 = vshrl.u32 %v2812, 7
    %v2814 = vsub.s32 0, %v2813
    %v2815 = vrot.slane %v2810, %v2814
    %v2833 = vunpack.c.l.b16 %v2794
    %v2834 = vunpack.c.l.b16 %v2795
    %v2835 = vunpack.c.l.b16 %v2796
    %v2836 = vunpack.c.l.b16 %v2797
    %v2837 = vunpack.c.l.b16 %v2798
    %v2838 = vunpack.c.l.b16 %v2799
    %v2839 = vunpack.c.l.b16 %v2800
    %v2840 = vunpack.c.l.b16 %v2801
    %v2841 = vunpack.c.l.b16 %v2802
    %v2842 = vunpack.c.l.b16 %v2803
    %v2843 = vunpack.c.l.b16 %v2804
    %v2844 = vunpack.c.l.b16 %v2805
    %v2845 = vunpack.c.l.b16 %v2806
    %v2846 = vunpack.c.l.b16 %v2807
    %v2847 = vunpack.c.l.b16 %v2808
    %v2848 = vunpack.c.l.b16 %v2809
    %v2849 = vpack.c.b16 %v2834, %v2833
    %v2850 = vpack.c.b16 %v2836, %v2835
    %v2851 = vpack.c.b16 %v2838, %v2837
    %v2852 = vpack.c.b16 %v2840, %v2839
    %v2853 = vpack.c.b16 %v2842, %v2841
    %v2854 = vpack.c.b16 %v2844, %v2843
    %v2855 = vpack.c.b16 %v2846, %v2845
    %v2856 = vpack.c.b16 %v2848, %v2847
    %2865 = vmatprep.subr.bf16.mxu0 0
    %2866 = vmatpush1.bf16.msra.mxu0 %v2849
    %2867 = vmatprep.subr.bf16.mxu0 0
    %2868 = vmatpush1.bf16.msra.mxu0 %v2850
    %2869 = vmatprep.subr.bf16.mxu0 0
    %2870 = vmatpush1.bf16.msra.mxu0 %v2851
    %2871 = vmatprep.subr.bf16.mxu0 0
    %2872 = vmatpush1.bf16.msra.mxu0 %v2852
    %2873 = vmatprep.subr.bf16.mxu0 0
    %2874 = vmatpush1.bf16.msra.mxu0 %v2853
    %2875 = vmatprep.subr.bf16.mxu0 0
    %2876 = vmatpush1.bf16.msra.mxu0 %v2854
    %2877 = vmatprep.subr.bf16.mxu0 0
    %2878 = vmatpush1.bf16.msra.mxu0 %v2855
    %2879 = vmatprep.subr.bf16.mxu0 0
    %2880 = vmatpush1.bf16.msra.mxu0 %v2856
    %2881 = vmatprep.subr.bf16.mxu0 0
    %2882 = vmatpush1.bf16.msra.mxu0 0
    %2883 = vmatprep.subr.bf16.mxu0 0
    %2884 = vmatpush1.bf16.msra.mxu0 0
    %2885 = vmatprep.subr.bf16.mxu0 0
    %2886 = vmatpush1.bf16.msra.mxu0 0
    %2887 = vmatprep.subr.bf16.mxu0 0
    %2888 = vmatpush1.bf16.msra.mxu0 0
    %2889 = vmatprep.subr.bf16.mxu0 0
    %2890 = vmatpush1.bf16.msra.mxu0 0
    %2891 = vmatprep.subr.bf16.mxu0 0
    %2892 = vmatpush1.bf16.msra.mxu0 0
    %2893 = vmatprep.subr.bf16.mxu0 0
    %2894 = vmatpush1.bf16.msra.mxu0 0
    %2895 = vmatprep.subr.bf16.mxu0 0
    %2896 = vmatpush1.bf16.msra.mxu0 0
    %2897 = vmatprep.mubr.bf16.mxu0 0
    %2898 = vmatmul.mubr.bf16.gmra.mrb[0].mxu0 %v2793
    %v2899 = vpop.f32.mrb[0].mxu0
    %v2900 = vadd.f32 %v2815, %v2899
    %v2901 = vpop.f32.mrb[0].mxu0
    %v2902 = vpop.f32.mrb[0].mxu0
    %v2903 = vpop.f32.mrb[0].mxu0
    %2904 = vdwg.mxu0
    %2905 = vst [vmem:[%s7] sm:$0xff] %v2900
    // Predicated region
    $region42: #{lstm_model_forward.1} parent=1 // pred_check
      _
    $region43: #{lstm_model_forward.1} parent=1 // pred_check_branch
      %2907 = sbr.rel (0) target = $region45
    $region44: #{lstm_model_forward.1} parent=1 // pred_region
      _
    $region45: #{lstm_model_forward.1} parent=1 // pred_fallthru
      _
    // Predicated region
    $region46: #{lstm_model_forward.1} parent=1 // pred_check
      _
    $region47: #{lstm_model_forward.1} parent=1 // pred_check_branch
      %2909 = sbr.rel (0) target = $region49
    $region48: #{lstm_model_forward.1} parent=1 // pred_region
      _
    $region49: #{lstm_model_forward.1} parent=1 // pred_fallthru
      _
    %2910 = vsyncpa [#allocation3], 1
    %2911 = vsyncpa [#allocation5], 1

</llo_original>
